<compile_context>
chip_gen: v6e
topology: v6e:2x2x1
jax: 0.10.0
libtpu: 0.0.40
codegen_flags: <defaults>
</compile_context>

<pallas_src>
import numpy as np
import jax
import jax.numpy as jnp
from jax.experimental import pallas as pl
from jax.experimental.pallas import tpu as pltpu


_KT = ((3, 1), (2, 0))  # (output parity, tap) -> transposed-conv kernel index (rows == cols)


def _fold_lanes(v, chan, lanes):
    """v: (1, lanes) per-(col, chan) sums, lane index = col*chan + c.
    Returns per-channel totals broadcast back over every (col, chan) lane.
    Requires width = lanes // chan to be a power of two (true for this config)."""
    step = chan
    while step < lanes:
        v = v + pltpu.roll(v, step, 1)
        step *= 2
    return v


def _make_fused_kernel(plan, cout_pads, B, ps, c0):
    """plan: tuple of (H, W, Cin, Cout) per deconv block (input spatial dims)."""

    def kernel(z2_ref, w2_ref, w_ref, gb_ref, o_ref):
        # Projection: bf16 MXU matmul, f32 accumulation.  The block-diagonal z expansion and
        # the permuted projection weight (built host-side) make this directly emit block-1's
        # row-packed (B*H, W*C0) activation -- no reshape needed.
        x = jnp.dot(z2_ref[...], w2_ref[...], preferred_element_type=jnp.float32)

        gb = gb_ref[...]  # (2*n_blocks, 128) f32 -- all gamma/beta rows in a single vreg load

        for bi, (H, W, Cin, Cout) in enumerate(plan):
            L = W * Cin
            Np = 2 * W * cout_pads[bi]
            BH = B * H

            # ---- BatchNorm2d (training-mode batch stats, biased var) + ReLU, f32 ----
            inv_cnt = 1.0 / float(B * H * W)
            s = jnp.sum(x, axis=0, keepdims=True)                      # (1, L)
            mean = _fold_lanes(s, Cin, L) * inv_cnt
            d = x - mean
            ss = jnp.sum(d * d, axis=0, keepdims=True)
            var = _fold_lanes(ss, Cin, L) * inv_cnt
            scale = jax.lax.rsqrt(var + 1e-5) * gb[2 * bi:2 * bi + 1, :L]
            xn = jnp.maximum(d * scale + gb[2 * bi + 1:2 * bi + 2, :L], 0.0)   # (BH, L)

            # ---- Row taps: sublane rolls (XLU) + per-image boundary masks ----
            # (the deconv's implicit zero row-padding; no zero-halo buffers, no concat chain)
            rmod = jax.lax.broadcasted_iota(jnp.int32, (BH, L), 0) & (H - 1)
            up = jnp.where(rmod == 0, 0.0, pltpu.roll(xn, 1, 0))        # row m-1 (0 at top)
            dn = jnp.where(rmod == H - 1, 0.0, pltpu.roll(xn, BH - 1, 0))  # row m+1 (0 at bottom)

            # ---- 2 K-stacked bf16 MXU matmuls (K = 2L), f32 accumulation ----
            # Even output rows consume [row m-1 | row m]; odd rows consume [row m | row m+1].
            # Column taps + the output-column interleave are folded into the weight slabs.
            xb = xn.astype(jnp.bfloat16)
            a_ev = jnp.concatenate([up.astype(jnp.bfloat16), xb], axis=1)   # (BH, 2L)
            a_od = jnp.concatenate([xb, dn.astype(jnp.bfloat16)], axis=1)   # (BH, 2L)
            y0 = jnp.dot(a_ev, w_ref[bi, 0][:2 * L, :Np],
                         preferred_element_type=jnp.float32)                # even rows
            y1 = jnp.dot(a_od, w_ref[bi, 1][:2 * L, :Np],
                         preferred_element_type=jnp.float32)                # odd rows

            # ---- Interleave the two output-row parities (the one inherent per-block
            #      row-doubling relayout; lane dim untouched, major-dim merge reshape). ----
            x = jnp.concatenate([y0.reshape(BH, 1, Np), y1.reshape(BH, 1, Np)],
                                axis=1).reshape(2 * BH, Np)

        o_ref[...] = jnp.tanh(x)   # lane-dense (B*H_out, 128) f32 store

    return kernel


# ---------------------------- host-side parameter prep ----------------------------

def _make_block_weights(wt, W, cout_pad):
    """wt: (Cin, Cout, 4, 4) torch ConvTranspose2d weight ->
    (2, 2*W*Cin, 2*W*cout_pad) K-stacked block-banded matmul slabs:
      slab 0 (even output rows) consumes [row m-1 | row m]   (K order: up-tap, mid-tap),
      slab 1 (odd  output rows) consumes [row m   | row m+1] (K order: mid-tap, dn-tap).
    Output channels beyond Cout (lane padding) are left zero."""
    cin, cout = wt.shape[0], wt.shape[1]
    out = np.zeros((2, 2, W * cin, 2 * W * cout_pad), np.float32)
    for dy in range(2):              # output row parity
        for r in range(2):           # row tap within the K-stack
            for n in range(W):
                for dx in range(2):
                    oc = 2 * n + dx
                    for s in range(2):
                        j = n + dx + s - 1            # contributing input column
                        if 0 <= j < W:
                            out[dy, r, j * cin:(j + 1) * cin,
                                oc * cout_pad:oc * cout_pad + cout] = \
                                wt[:, :, _KT[dy][r], _KT[dx][s]]
    return out.reshape(2, 2 * W * cin, 2 * W * cout_pad)


class DCGANGeneratorPallas:
    def __init__(self, key, ngf=8, size=32, zdim=16, nc=3, n_convs=4):
        self.size = size
        self.zdim = zdim
        self.nc = nc

        # Mirror the torch constructor's (reverse-built) channel / spatial plan.
        nchannels = ngf
        proj_size = size
        convs_rev = [(nchannels, nc)]
        proj_size = int(np.ceil(proj_size / 2.0))
        for _ in range(n_convs - 1):
            nchannels *= 2
            convs_rev.append((nchannels, nchannels // 2))
            proj_size = int(np.ceil(proj_size / 2.0))
        self.convs = convs_rev[::-1]            # forward order: [(64,32),(32,16),(16,8),(8,3)]
        self.ini_channels = nchannels
        self.proj_size = proj_size

        plan = []
        h = self.proj_size
        for cin, cout in self.convs:
            assert h >= 1 and (h & (h - 1)) == 0, "spatial width must be a power of two"
            plan.append((h, h, cin, cout))
            h *= 2
        self.plan = tuple(plan)
        self.out_hw = 2 * self.plan[-1][0]

        # Pad ONLY the last block's Cout so the final matmul / tanh / store are 128-lane dense.
        cout_pads = [c for (_, _, _, c) in self.plan]
        lw = self.plan[-1][1]
        n_last = 2 * lw * cout_pads[-1]
        n_tgt = int(np.ceil(n_last / 128.0) * 128)
        if n_tgt % (2 * lw) == 0:
            cout_pads[-1] = n_tgt // (2 * lw)
        self.cout_pads = tuple(cout_pads)

        keys = jax.random.split(key, 2 * len(self.convs) + 1)
        ps, c0 = self.proj_size, self.ini_channels
        out_dim = c0 * ps * ps

        # nn.Linear default-style init (deterministic synthetic weights), torch layout (out, in).
        bound = 1.0 / np.sqrt(zdim)
        proj_w = np.asarray(
            jax.random.uniform(keys[0], (out_dim, zdim), jnp.float32, -bound, bound))
        # Fold the row-expansion + NCHW -> row-packed permutation into the projection weight:
        #   w2[i*zdim + d, x*C0 + c] = proj_w[c*ps*ps + i*ps + x, d]
        w2 = proj_w.reshape(c0, ps, ps, zdim).transpose(1, 3, 2, 0).reshape(ps * zdim, ps * c0)
        self.w2 = jnp.asarray(w2, jnp.bfloat16)      # bf16 projection weight (halved DMA)

        # All block weight slabs packed into ONE bf16 array + all gamma/beta into ONE f32 array.
        slabs, gammas, betas = [], [], []
        for i, (_, Wb, cin, cout) in enumerate(self.plan):
            w = 0.02 * jax.random.normal(keys[1 + 2 * i], (cin, cout, 4, 4), jnp.float32)
            gamma = 1.0 + 0.02 * jax.random.normal(keys[2 + 2 * i], (cin,), jnp.float32)
            beta = np.zeros((cin,), np.float32)
            slabs.append(_make_block_weights(np.asarray(w), Wb, self.cout_pads[i]))
            gammas.append(np.tile(np.asarray(gamma), Wb))
            betas.append(np.tile(beta, Wb))
        kmax = max(s.shape[1] for s in slabs)
        nmax = max(s.shape[2] for s in slabs)
        lmax = max(g.shape[0] for g in gammas)
        w_all = np.zeros((len(slabs), 2, kmax, nmax), np.float32)
        gb = np.zeros((2 * len(slabs), lmax), np.float32)
        for i, s in enumerate(slabs):
            w_all[i, :, :s.shape[1], :s.shape[2]] = s
            gb[2 * i, :gammas[i].shape[0]] = gammas[i]
            gb[2 * i + 1, :betas[i].shape[0]] = betas[i]
        self.w_all = jnp.asarray(w_all, jnp.bfloat16)   # (n_blocks, 2, 2L, N)
        self.gb = jnp.asarray(gb, jnp.float32)          # (2*n_blocks, L)

    def forward(self, z):
        B, zd = z.shape
        ps, c0 = self.proj_size, self.ini_channels
        h_f = self.out_hw
        cp_last = self.cout_pads[-1]
        l_f = 2 * self.plan[-1][1] * cp_last

        # Expand z (bf16) so the in-kernel projection matmul directly emits row-packed rows:
        #   z2[(b, i), (k, d)] = z[b, d] * (i == k)
        eye = jnp.eye(ps, dtype=jnp.bfloat16)
        z2 = (eye[None, :, :, None] *
              z.astype(jnp.bfloat16)[:, None, None, :]).reshape(B * ps, ps * zd)

        kernel = _make_fused_kernel(self.plan, self.cout_pads, B, ps, c0)
        out = pl.pallas_call(
            kernel,
            out_shape=jax.ShapeDtypeStruct((B * h_f, l_f), jnp.float32),
            in_specs=[pl.BlockSpec(memory_space=pltpu.MemorySpace.VMEM)] * 4,
            out_specs=pl.BlockSpec(memory_space=pltpu.MemorySpace.VMEM),
        )(z2, self.w2, self.w_all, self.gb)

        # Single tiny post-kernel rearrange: row-packed (B*H, W*cp) -> NCHW, drop pad channel.
        img = out.reshape(B, h_f, h_f, cp_last)[..., :self.nc].transpose(0, 3, 1, 2)
        if img.shape[2] > self.size:
            img = img[:, :, :self.size, :self.size]
        return img


if __name__ == "__main__":
    key = jax.random.PRNGKey(0)
    k_model, k_z = jax.random.split(key)
    # Small-but-faithful config: ngf=8, size=32, zdim=16, nc=3, n_convs=4, batch=2.
    gen = DCGANGeneratorPallas(k_model, ngf=8, size=32, zdim=16, nc=3, n_convs=4)
    z = jax.random.normal(k_z, (2, 16), jnp.float32)
    out = gen.forward(z)
    out = jax.block_until_ready(out)
    assert out.shape == (2, 3, 32, 32), out.shape
    assert bool(jnp.all(jnp.isfinite(out)))
    print("KERNEL_OK")
</pallas_src>

<mosaic_0001>
module attributes {stable_mosaic.version = 11 : i64} {
  func.func @kernel(%arg0: memref<4x32xbf16, #tpu.memory_space<vmem>>, %arg1: memref<32x128xbf16, #tpu.memory_space<vmem>>, %arg2: memref<4x2x256x128xbf16, #tpu.memory_space<vmem>>, %arg3: memref<8x128xf32, #tpu.memory_space<vmem>>, %arg4: memref<64x128xf32, #tpu.memory_space<vmem>>) attributes {dimension_semantics = [], scalar_prefetch = 0 : i64, scratch_operands = 0 : i64, tpu.core_type = #tpu.core_type<tc>} {
    %c0 = arith.constant 0 : index
    %c0_0 = arith.constant 0 : index
    %0 = vector.load %arg0[%c0, %c0_0] : memref<4x32xbf16, #tpu.memory_space<vmem>>, vector<4x32xbf16>
    %c0_1 = arith.constant 0 : index
    %c0_2 = arith.constant 0 : index
    %1 = vector.load %arg1[%c0_1, %c0_2] : memref<32x128xbf16, #tpu.memory_space<vmem>>, vector<32x128xbf16>
    %cst = arith.constant dense<0.000000e+00> : vector<4x128xf32>
    %2 = tpu.matmul %0, %1, %cst {dimension_numbers = #tpu.dot_dimension_numbers<[1], [0], [0], [1], [0, 0, 1, 1], [], []>} : vector<4x32xbf16>, vector<32x128xbf16>, vector<4x128xf32> -> vector<4x128xf32>
    %c0_3 = arith.constant 0 : index
    %c0_4 = arith.constant 0 : index
    %3 = vector.load %arg3[%c0_3, %c0_4] : memref<8x128xf32, #tpu.memory_space<vmem>>, vector<8x128xf32>
    %cst_5 = arith.constant dense<0.000000e+00> : vector<128xf32>
    %4 = vector.multi_reduction <add>, %2, %cst_5 [0] : vector<4x128xf32> to vector<128xf32>
    %5 = vector.shape_cast %4 : vector<128xf32> to vector<1x128xf32>
    %c64_i32 = arith.constant 64 : i32
    %6 = tpu.dynamic_rotate %5 by %c64_i32 dim 1 : vector<1x128xf32>, i32 -> vector<1x128xf32>
    %7 = arith.addf %5, %6 : vector<1x128xf32>
    %cst_6 = arith.constant 1.250000e-01 : f32
    %8 = vector.broadcast %cst_6 : f32 to vector<1x128xf32>
    %9 = arith.mulf %7, %8 : vector<1x128xf32>
    %10 = vector.broadcast %9 : vector<1x128xf32> to vector<4x128xf32>
    %11 = arith.subf %2, %10 : vector<4x128xf32>
    %12 = arith.mulf %11, %11 : vector<4x128xf32>
    %cst_7 = arith.constant dense<0.000000e+00> : vector<128xf32>
    %13 = vector.multi_reduction <add>, %12, %cst_7 [0] : vector<4x128xf32> to vector<128xf32>
    %14 = vector.shape_cast %13 : vector<128xf32> to vector<1x128xf32>
    %c64_i32_8 = arith.constant 64 : i32
    %15 = tpu.dynamic_rotate %14 by %c64_i32_8 dim 1 : vector<1x128xf32>, i32 -> vector<1x128xf32>
    %16 = arith.addf %14, %15 : vector<1x128xf32>
    %cst_9 = arith.constant 1.250000e-01 : f32
    %17 = vector.broadcast %cst_9 : f32 to vector<1x128xf32>
    %18 = arith.mulf %16, %17 : vector<1x128xf32>
    %cst_10 = arith.constant 9.99999974E-6 : f32
    %19 = vector.broadcast %cst_10 : f32 to vector<1x128xf32>
    %20 = arith.addf %18, %19 : vector<1x128xf32>
    %21 = math.rsqrt %20 : vector<1x128xf32>
    %22 = vector.extract_strided_slice %3 {offsets = [0, 0], sizes = [1, 128], strides = [1, 1]} : vector<8x128xf32> to vector<1x128xf32>
    %23 = arith.mulf %21, %22 : vector<1x128xf32>
    %24 = vector.broadcast %23 : vector<1x128xf32> to vector<4x128xf32>
    %25 = arith.mulf %11, %24 : vector<4x128xf32>
    %26 = vector.extract_strided_slice %3 {offsets = [1, 0], sizes = [1, 128], strides = [1, 1]} : vector<8x128xf32> to vector<1x128xf32>
    %27 = vector.broadcast %26 : vector<1x128xf32> to vector<4x128xf32>
    %28 = arith.addf %25, %27 : vector<4x128xf32>
    %cst_11 = arith.constant 0.000000e+00 : f32
    %29 = vector.broadcast %cst_11 : f32 to vector<4x128xf32>
    %30 = arith.maximumf %28, %29 : vector<4x128xf32>
    %31 = tpu.iota {dimensions = array<i32: 0>} : vector<4x128xi32>
    %c1_i32 = arith.constant 1 : i32
    %32 = vector.broadcast %c1_i32 : i32 to vector<4x128xi32>
    %33 = arith.andi %31, %32 : vector<4x128xi32>
    %c0_i32 = arith.constant 0 : i32
    %34 = vector.broadcast %c0_i32 : i32 to vector<4x128xi32>
    %35 = arith.cmpi eq, %33, %34 : vector<4x128xi32>
    %c1_i32_12 = arith.constant 1 : i32
    %36 = tpu.dynamic_rotate %30 by %c1_i32_12 dim 0 : vector<4x128xf32>, i32 -> vector<4x128xf32>
    %cst_13 = arith.constant 0.000000e+00 : f32
    %37 = vector.broadcast %cst_13 : f32 to vector<4x128xf32>
    %38 = arith.select %35, %37, %36 : vector<4x128xi1>, vector<4x128xf32>
    %c1_i32_14 = arith.constant 1 : i32
    %39 = vector.broadcast %c1_i32_14 : i32 to vector<4x128xi32>
    %40 = arith.cmpi eq, %33, %39 : vector<4x128xi32>
    %c3_i32 = arith.constant 3 : i32
    %41 = tpu.dynamic_rotate %30 by %c3_i32 dim 0 : vector<4x128xf32>, i32 -> vector<4x128xf32>
    %cst_15 = arith.constant 0.000000e+00 : f32
    %42 = vector.broadcast %cst_15 : f32 to vector<4x128xf32>
    %43 = arith.select %40, %42, %41 : vector<4x128xi1>, vector<4x128xf32>
    %44 = arith.truncf %30 : vector<4x128xf32> to vector<4x128xbf16>
    %45 = arith.truncf %38 : vector<4x128xf32> to vector<4x128xbf16>
    %46 = tpu.concatenate %45, %44 in 1 : vector<4x128xbf16>, vector<4x128xbf16> -> vector<4x256xbf16>
    %47 = arith.truncf %43 : vector<4x128xf32> to vector<4x128xbf16>
    %48 = tpu.concatenate %44, %47 in 1 : vector<4x128xbf16>, vector<4x128xbf16> -> vector<4x256xbf16>
    %c0_16 = arith.constant 0 : index
    %c0_17 = arith.constant 0 : index
    %c0_18 = arith.constant 0 : index
    %c0_19 = arith.constant 0 : index
    %49 = vector.load %arg2[%c0_16, %c0_17, %c0_18, %c0_19] : memref<4x2x256x128xbf16, #tpu.memory_space<vmem>>, vector<1x1x256x128xbf16>
    %50 = vector.shape_cast %49 : vector<1x1x256x128xbf16> to vector<256x128xbf16>
    %cst_20 = arith.constant dense<0.000000e+00> : vector<4x128xf32>
    %51 = tpu.matmul %46, %50, %cst_20 {dimension_numbers = #tpu.dot_dimension_numbers<[1], [0], [0], [1], [0, 0, 1, 1], [], []>} : vector<4x256xbf16>, vector<256x128xbf16>, vector<4x128xf32> -> vector<4x128xf32>
    %c0_21 = arith.constant 0 : index
    %c1 = arith.constant 1 : index
    %c0_22 = arith.constant 0 : index
    %c0_23 = arith.constant 0 : index
    %52 = vector.load %arg2[%c0_21, %c1, %c0_22, %c0_23] : memref<4x2x256x128xbf16, #tpu.memory_space<vmem>>, vector<1x1x256x128xbf16>
    %53 = vector.shape_cast %52 : vector<1x1x256x128xbf16> to vector<256x128xbf16>
    %cst_24 = arith.constant dense<0.000000e+00> : vector<4x128xf32>
    %54 = tpu.matmul %48, %53, %cst_24 {dimension_numbers = #tpu.dot_dimension_numbers<[1], [0], [0], [1], [0, 0, 1, 1], [], []>} : vector<4x256xbf16>, vector<256x128xbf16>, vector<4x128xf32> -> vector<4x128xf32>
    %55 = vector.shape_cast %51 : vector<4x128xf32> to vector<4x1x128xf32>
    %56 = vector.shape_cast %54 : vector<4x128xf32> to vector<4x1x128xf32>
    %57 = tpu.concatenate %55, %56 in 1 : vector<4x1x128xf32>, vector<4x1x128xf32> -> vector<4x2x128xf32>
    %58 = vector.shape_cast %57 : vector<4x2x128xf32> to vector<8x128xf32>
    %cst_25 = arith.constant dense<0.000000e+00> : vector<128xf32>
    %59 = vector.multi_reduction <add>, %58, %cst_25 [0] : vector<8x128xf32> to vector<128xf32>
    %60 = vector.shape_cast %59 : vector<128xf32> to vector<1x128xf32>
    %c32_i32 = arith.constant 32 : i32
    %61 = tpu.dynamic_rotate %60 by %c32_i32 dim 1 : vector<1x128xf32>, i32 -> vector<1x128xf32>
    %62 = arith.addf %60, %61 : vector<1x128xf32>
    %c64_i32_26 = arith.constant 64 : i32
    %63 = tpu.dynamic_rotate %62 by %c64_i32_26 dim 1 : vector<1x128xf32>, i32 -> vector<1x128xf32>
    %64 = arith.addf %62, %63 : vector<1x128xf32>
    %cst_27 = arith.constant 3.125000e-02 : f32
    %65 = vector.broadcast %cst_27 : f32 to vector<1x128xf32>
    %66 = arith.mulf %64, %65 : vector<1x128xf32>
    %67 = vector.broadcast %66 : vector<1x128xf32> to vector<8x128xf32>
    %68 = arith.subf %58, %67 : vector<8x128xf32>
    %69 = arith.mulf %68, %68 : vector<8x128xf32>
    %cst_28 = arith.constant dense<0.000000e+00> : vector<128xf32>
    %70 = vector.multi_reduction <add>, %69, %cst_28 [0] : vector<8x128xf32> to vector<128xf32>
    %71 = vector.shape_cast %70 : vector<128xf32> to vector<1x128xf32>
    %c32_i32_29 = arith.constant 32 : i32
    %72 = tpu.dynamic_rotate %71 by %c32_i32_29 dim 1 : vector<1x128xf32>, i32 -> vector<1x128xf32>
    %73 = arith.addf %71, %72 : vector<1x128xf32>
    %c64_i32_30 = arith.constant 64 : i32
    %74 = tpu.dynamic_rotate %73 by %c64_i32_30 dim 1 : vector<1x128xf32>, i32 -> vector<1x128xf32>
    %75 = arith.addf %73, %74 : vector<1x128xf32>
    %cst_31 = arith.constant 3.125000e-02 : f32
    %76 = vector.broadcast %cst_31 : f32 to vector<1x128xf32>
    %77 = arith.mulf %75, %76 : vector<1x128xf32>
    %cst_32 = arith.constant 9.99999974E-6 : f32
    %78 = vector.broadcast %cst_32 : f32 to vector<1x128xf32>
    %79 = arith.addf %77, %78 : vector<1x128xf32>
    %80 = math.rsqrt %79 : vector<1x128xf32>
    %81 = vector.extract_strided_slice %3 {offsets = [2, 0], sizes = [1, 128], strides = [1, 1]} : vector<8x128xf32> to vector<1x128xf32>
    %82 = arith.mulf %80, %81 : vector<1x128xf32>
    %83 = vector.broadcast %82 : vector<1x128xf32> to vector<8x128xf32>
    %84 = arith.mulf %68, %83 : vector<8x128xf32>
    %85 = vector.extract_strided_slice %3 {offsets = [3, 0], sizes = [1, 128], strides = [1, 1]} : vector<8x128xf32> to vector<1x128xf32>
    %86 = vector.broadcast %85 : vector<1x128xf32> to vector<8x128xf32>
    %87 = arith.addf %84, %86 : vector<8x128xf32>
    %cst_33 = arith.constant 0.000000e+00 : f32
    %88 = vector.broadcast %cst_33 : f32 to vector<8x128xf32>
    %89 = arith.maximumf %87, %88 : vector<8x128xf32>
    %90 = tpu.iota {dimensions = array<i32: 0>} : vector<8x128xi32>
    %c3_i32_34 = arith.constant 3 : i32
    %91 = vector.broadcast %c3_i32_34 : i32 to vector<8x128xi32>
    %92 = arith.andi %90, %91 : vector<8x128xi32>
    %c0_i32_35 = arith.constant 0 : i32
    %93 = vector.broadcast %c0_i32_35 : i32 to vector<8x128xi32>
    %94 = arith.cmpi eq, %92, %93 : vector<8x128xi32>
    %c1_i32_36 = arith.constant 1 : i32
    %95 = tpu.dynamic_rotate %89 by %c1_i32_36 dim 0 : vector<8x128xf32>, i32 -> vector<8x128xf32>
    %cst_37 = arith.constant 0.000000e+00 : f32
    %96 = vector.broadcast %cst_37 : f32 to vector<8x128xf32>
    %97 = arith.select %94, %96, %95 : vector<8x128xi1>, vector<8x128xf32>
    %c3_i32_38 = arith.constant 3 : i32
    %98 = vector.broadcast %c3_i32_38 : i32 to vector<8x128xi32>
    %99 = arith.cmpi eq, %92, %98 : vector<8x128xi32>
    %c7_i32 = arith.constant 7 : i32
    %100 = tpu.dynamic_rotate %89 by %c7_i32 dim 0 : vector<8x128xf32>, i32 -> vector<8x128xf32>
    %cst_39 = arith.constant 0.000000e+00 : f32
    %101 = vector.broadcast %cst_39 : f32 to vector<8x128xf32>
    %102 = arith.select %99, %101, %100 : vector<8x128xi1>, vector<8x128xf32>
    %103 = arith.truncf %89 : vector<8x128xf32> to vector<8x128xbf16>
    %104 = arith.truncf %97 : vector<8x128xf32> to vector<8x128xbf16>
    %105 = tpu.concatenate %104, %103 in 1 : vector<8x128xbf16>, vector<8x128xbf16> -> vector<8x256xbf16>
    %106 = arith.truncf %102 : vector<8x128xf32> to vector<8x128xbf16>
    %107 = tpu.concatenate %103, %106 in 1 : vector<8x128xbf16>, vector<8x128xbf16> -> vector<8x256xbf16>
    %c1_40 = arith.constant 1 : index
    %c0_41 = arith.constant 0 : index
    %c0_42 = arith.constant 0 : index
    %c0_43 = arith.constant 0 : index
    %108 = vector.load %arg2[%c1_40, %c0_41, %c0_42, %c0_43] : memref<4x2x256x128xbf16, #tpu.memory_space<vmem>>, vector<1x1x256x128xbf16>
    %109 = vector.shape_cast %108 : vector<1x1x256x128xbf16> to vector<256x128xbf16>
    %cst_44 = arith.constant dense<0.000000e+00> : vector<8x128xf32>
    %110 = tpu.matmul %105, %109, %cst_44 {dimension_numbers = #tpu.dot_dimension_numbers<[1], [0], [0], [1], [0, 0, 1, 1], [], []>} : vector<8x256xbf16>, vector<256x128xbf16>, vector<8x128xf32> -> vector<8x128xf32>
    %c1_45 = arith.constant 1 : index
    %c1_46 = arith.constant 1 : index
    %c0_47 = arith.constant 0 : index
    %c0_48 = arith.constant 0 : index
    %111 = vector.load %arg2[%c1_45, %c1_46, %c0_47, %c0_48] : memref<4x2x256x128xbf16, #tpu.memory_space<vmem>>, vector<1x1x256x128xbf16>
    %112 = vector.shape_cast %111 : vector<1x1x256x128xbf16> to vector<256x128xbf16>
    %cst_49 = arith.constant dense<0.000000e+00> : vector<8x128xf32>
    %113 = tpu.matmul %107, %112, %cst_49 {dimension_numbers = #tpu.dot_dimension_numbers<[1], [0], [0], [1], [0, 0, 1, 1], [], []>} : vector<8x256xbf16>, vector<256x128xbf16>, vector<8x128xf32> -> vector<8x128xf32>
    %114 = vector.shape_cast %110 : vector<8x128xf32> to vector<8x1x128xf32>
    %115 = vector.shape_cast %113 : vector<8x128xf32> to vector<8x1x128xf32>
    %116 = tpu.concatenate %114, %115 in 1 : vector<8x1x128xf32>, vector<8x1x128xf32> -> vector<8x2x128xf32>
    %117 = vector.shape_cast %116 : vector<8x2x128xf32> to vector<16x128xf32>
    %cst_50 = arith.constant dense<0.000000e+00> : vector<128xf32>
    %118 = vector.multi_reduction <add>, %117, %cst_50 [0] : vector<16x128xf32> to vector<128xf32>
    %119 = vector.shape_cast %118 : vector<128xf32> to vector<1x128xf32>
    %c16_i32 = arith.constant 16 : i32
    %120 = tpu.dynamic_rotate %119 by %c16_i32 dim 1 : vector<1x128xf32>, i32 -> vector<1x128xf32>
    %121 = arith.addf %119, %120 : vector<1x128xf32>
    %c32_i32_51 = arith.constant 32 : i32
    %122 = tpu.dynamic_rotate %121 by %c32_i32_51 dim 1 : vector<1x128xf32>, i32 -> vector<1x128xf32>
    %123 = arith.addf %121, %122 : vector<1x128xf32>
    %c64_i32_52 = arith.constant 64 : i32
    %124 = tpu.dynamic_rotate %123 by %c64_i32_52 dim 1 : vector<1x128xf32>, i32 -> vector<1x128xf32>
    %125 = arith.addf %123, %124 : vector<1x128xf32>
    %cst_53 = arith.constant 7.812500e-03 : f32
    %126 = vector.broadcast %cst_53 : f32 to vector<1x128xf32>
    %127 = arith.mulf %125, %126 : vector<1x128xf32>
    %128 = vector.broadcast %127 : vector<1x128xf32> to vector<16x128xf32>
    %129 = arith.subf %117, %128 : vector<16x128xf32>
    %130 = arith.mulf %129, %129 : vector<16x128xf32>
    %cst_54 = arith.constant dense<0.000000e+00> : vector<128xf32>
    %131 = vector.multi_reduction <add>, %130, %cst_54 [0] : vector<16x128xf32> to vector<128xf32>
    %132 = vector.shape_cast %131 : vector<128xf32> to vector<1x128xf32>
    %c16_i32_55 = arith.constant 16 : i32
    %133 = tpu.dynamic_rotate %132 by %c16_i32_55 dim 1 : vector<1x128xf32>, i32 -> vector<1x128xf32>
    %134 = arith.addf %132, %133 : vector<1x128xf32>
    %c32_i32_56 = arith.constant 32 : i32
    %135 = tpu.dynamic_rotate %134 by %c32_i32_56 dim 1 : vector<1x128xf32>, i32 -> vector<1x128xf32>
    %136 = arith.addf %134, %135 : vector<1x128xf32>
    %c64_i32_57 = arith.constant 64 : i32
    %137 = tpu.dynamic_rotate %136 by %c64_i32_57 dim 1 : vector<1x128xf32>, i32 -> vector<1x128xf32>
    %138 = arith.addf %136, %137 : vector<1x128xf32>
    %cst_58 = arith.constant 7.812500e-03 : f32
    %139 = vector.broadcast %cst_58 : f32 to vector<1x128xf32>
    %140 = arith.mulf %138, %139 : vector<1x128xf32>
    %cst_59 = arith.constant 9.99999974E-6 : f32
    %141 = vector.broadcast %cst_59 : f32 to vector<1x128xf32>
    %142 = arith.addf %140, %141 : vector<1x128xf32>
    %143 = math.rsqrt %142 : vector<1x128xf32>
    %144 = vector.extract_strided_slice %3 {offsets = [4, 0], sizes = [1, 128], strides = [1, 1]} : vector<8x128xf32> to vector<1x128xf32>
    %145 = arith.mulf %143, %144 : vector<1x128xf32>
    %146 = vector.broadcast %145 : vector<1x128xf32> to vector<16x128xf32>
    %147 = arith.mulf %129, %146 : vector<16x128xf32>
    %148 = vector.extract_strided_slice %3 {offsets = [5, 0], sizes = [1, 128], strides = [1, 1]} : vector<8x128xf32> to vector<1x128xf32>
    %149 = vector.broadcast %148 : vector<1x128xf32> to vector<16x128xf32>
    %150 = arith.addf %147, %149 : vector<16x128xf32>
    %cst_60 = arith.constant 0.000000e+00 : f32
    %151 = vector.broadcast %cst_60 : f32 to vector<16x128xf32>
    %152 = arith.maximumf %150, %151 : vector<16x128xf32>
    %153 = tpu.iota {dimensions = array<i32: 0>} : vector<16x128xi32>
    %c7_i32_61 = arith.constant 7 : i32
    %154 = vector.broadcast %c7_i32_61 : i32 to vector<16x128xi32>
    %155 = arith.andi %153, %154 : vector<16x128xi32>
    %c0_i32_62 = arith.constant 0 : i32
    %156 = vector.broadcast %c0_i32_62 : i32 to vector<16x128xi32>
    %157 = arith.cmpi eq, %155, %156 : vector<16x128xi32>
    %c1_i32_63 = arith.constant 1 : i32
    %158 = tpu.dynamic_rotate %152 by %c1_i32_63 dim 0 : vector<16x128xf32>, i32 -> vector<16x128xf32>
    %cst_64 = arith.constant 0.000000e+00 : f32
    %159 = vector.broadcast %cst_64 : f32 to vector<16x128xf32>
    %160 = arith.select %157, %159, %158 : vector<16x128xi1>, vector<16x128xf32>
    %c7_i32_65 = arith.constant 7 : i32
    %161 = vector.broadcast %c7_i32_65 : i32 to vector<16x128xi32>
    %162 = arith.cmpi eq, %155, %161 : vector<16x128xi32>
    %c15_i32 = arith.constant 15 : i32
    %163 = tpu.dynamic_rotate %152 by %c15_i32 dim 0 : vector<16x128xf32>, i32 -> vector<16x128xf32>
    %cst_66 = arith.constant 0.000000e+00 : f32
    %164 = vector.broadcast %cst_66 : f32 to vector<16x128xf32>
    %165 = arith.select %162, %164, %163 : vector<16x128xi1>, vector<16x128xf32>
    %166 = arith.truncf %152 : vector<16x128xf32> to vector<16x128xbf16>
    %167 = arith.truncf %160 : vector<16x128xf32> to vector<16x128xbf16>
    %168 = tpu.concatenate %167, %166 in 1 : vector<16x128xbf16>, vector<16x128xbf16> -> vector<16x256xbf16>
    %169 = arith.truncf %165 : vector<16x128xf32> to vector<16x128xbf16>
    %170 = tpu.concatenate %166, %169 in 1 : vector<16x128xbf16>, vector<16x128xbf16> -> vector<16x256xbf16>
    %c2 = arith.constant 2 : index
    %c0_67 = arith.constant 0 : index
    %c0_68 = arith.constant 0 : index
    %c0_69 = arith.constant 0 : index
    %171 = vector.load %arg2[%c2, %c0_67, %c0_68, %c0_69] : memref<4x2x256x128xbf16, #tpu.memory_space<vmem>>, vector<1x1x256x128xbf16>
    %172 = vector.shape_cast %171 : vector<1x1x256x128xbf16> to vector<256x128xbf16>
    %cst_70 = arith.constant dense<0.000000e+00> : vector<16x128xf32>
    %173 = tpu.matmul %168, %172, %cst_70 {dimension_numbers = #tpu.dot_dimension_numbers<[1], [0], [0], [1], [0, 0, 1, 1], [], []>} : vector<16x256xbf16>, vector<256x128xbf16>, vector<16x128xf32> -> vector<16x128xf32>
    %c2_71 = arith.constant 2 : index
    %c1_72 = arith.constant 1 : index
    %c0_73 = arith.constant 0 : index
    %c0_74 = arith.constant 0 : index
    %174 = vector.load %arg2[%c2_71, %c1_72, %c0_73, %c0_74] : memref<4x2x256x128xbf16, #tpu.memory_space<vmem>>, vector<1x1x256x128xbf16>
    %175 = vector.shape_cast %174 : vector<1x1x256x128xbf16> to vector<256x128xbf16>
    %cst_75 = arith.constant dense<0.000000e+00> : vector<16x128xf32>
    %176 = tpu.matmul %170, %175, %cst_75 {dimension_numbers = #tpu.dot_dimension_numbers<[1], [0], [0], [1], [0, 0, 1, 1], [], []>} : vector<16x256xbf16>, vector<256x128xbf16>, vector<16x128xf32> -> vector<16x128xf32>
    %177 = vector.shape_cast %173 : vector<16x128xf32> to vector<16x1x128xf32>
    %178 = vector.shape_cast %176 : vector<16x128xf32> to vector<16x1x128xf32>
    %179 = tpu.concatenate %177, %178 in 1 : vector<16x1x128xf32>, vector<16x1x128xf32> -> vector<16x2x128xf32>
    %180 = vector.shape_cast %179 : vector<16x2x128xf32> to vector<32x128xf32>
    %cst_76 = arith.constant dense<0.000000e+00> : vector<128xf32>
    %181 = vector.multi_reduction <add>, %180, %cst_76 [0] : vector<32x128xf32> to vector<128xf32>
    %182 = vector.shape_cast %181 : vector<128xf32> to vector<1x128xf32>
    %c8_i32 = arith.constant 8 : i32
    %183 = tpu.dynamic_rotate %182 by %c8_i32 dim 1 : vector<1x128xf32>, i32 -> vector<1x128xf32>
    %184 = arith.addf %182, %183 : vector<1x128xf32>
    %c16_i32_77 = arith.constant 16 : i32
    %185 = tpu.dynamic_rotate %184 by %c16_i32_77 dim 1 : vector<1x128xf32>, i32 -> vector<1x128xf32>
    %186 = arith.addf %184, %185 : vector<1x128xf32>
    %c32_i32_78 = arith.constant 32 : i32
    %187 = tpu.dynamic_rotate %186 by %c32_i32_78 dim 1 : vector<1x128xf32>, i32 -> vector<1x128xf32>
    %188 = arith.addf %186, %187 : vector<1x128xf32>
    %c64_i32_79 = arith.constant 64 : i32
    %189 = tpu.dynamic_rotate %188 by %c64_i32_79 dim 1 : vector<1x128xf32>, i32 -> vector<1x128xf32>
    %190 = arith.addf %188, %189 : vector<1x128xf32>
    %cst_80 = arith.constant 0.001953125 : f32
    %191 = vector.broadcast %cst_80 : f32 to vector<1x128xf32>
    %192 = arith.mulf %190, %191 : vector<1x128xf32>
    %193 = vector.broadcast %192 : vector<1x128xf32> to vector<32x128xf32>
    %194 = arith.subf %180, %193 : vector<32x128xf32>
    %195 = arith.mulf %194, %194 : vector<32x128xf32>
    %cst_81 = arith.constant dense<0.000000e+00> : vector<128xf32>
    %196 = vector.multi_reduction <add>, %195, %cst_81 [0] : vector<32x128xf32> to vector<128xf32>
    %197 = vector.shape_cast %196 : vector<128xf32> to vector<1x128xf32>
    %c8_i32_82 = arith.constant 8 : i32
    %198 = tpu.dynamic_rotate %197 by %c8_i32_82 dim 1 : vector<1x128xf32>, i32 -> vector<1x128xf32>
    %199 = arith.addf %197, %198 : vector<1x128xf32>
    %c16_i32_83 = arith.constant 16 : i32
    %200 = tpu.dynamic_rotate %199 by %c16_i32_83 dim 1 : vector<1x128xf32>, i32 -> vector<1x128xf32>
    %201 = arith.addf %199, %200 : vector<1x128xf32>
    %c32_i32_84 = arith.constant 32 : i32
    %202 = tpu.dynamic_rotate %201 by %c32_i32_84 dim 1 : vector<1x128xf32>, i32 -> vector<1x128xf32>
    %203 = arith.addf %201, %202 : vector<1x128xf32>
    %c64_i32_85 = arith.constant 64 : i32
    %204 = tpu.dynamic_rotate %203 by %c64_i32_85 dim 1 : vector<1x128xf32>, i32 -> vector<1x128xf32>
    %205 = arith.addf %203, %204 : vector<1x128xf32>
    %cst_86 = arith.constant 0.001953125 : f32
    %206 = vector.broadcast %cst_86 : f32 to vector<1x128xf32>
    %207 = arith.mulf %205, %206 : vector<1x128xf32>
    %cst_87 = arith.constant 9.99999974E-6 : f32
    %208 = vector.broadcast %cst_87 : f32 to vector<1x128xf32>
    %209 = arith.addf %207, %208 : vector<1x128xf32>
    %210 = math.rsqrt %209 : vector<1x128xf32>
    %211 = vector.extract_strided_slice %3 {offsets = [6, 0], sizes = [1, 128], strides = [1, 1]} : vector<8x128xf32> to vector<1x128xf32>
    %212 = arith.mulf %210, %211 : vector<1x128xf32>
    %213 = vector.broadcast %212 : vector<1x128xf32> to vector<32x128xf32>
    %214 = arith.mulf %194, %213 : vector<32x128xf32>
    %215 = vector.extract_strided_slice %3 {offsets = [7, 0], sizes = [1, 128], strides = [1, 1]} : vector<8x128xf32> to vector<1x128xf32>
    %216 = vector.broadcast %215 : vector<1x128xf32> to vector<32x128xf32>
    %217 = arith.addf %214, %216 : vector<32x128xf32>
    %cst_88 = arith.constant 0.000000e+00 : f32
    %218 = vector.broadcast %cst_88 : f32 to vector<32x128xf32>
    %219 = arith.maximumf %217, %218 : vector<32x128xf32>
    %220 = tpu.iota {dimensions = array<i32: 0>} : vector<32x128xi32>
    %c15_i32_89 = arith.constant 15 : i32
    %221 = vector.broadcast %c15_i32_89 : i32 to vector<32x128xi32>
    %222 = arith.andi %220, %221 : vector<32x128xi32>
    %c0_i32_90 = arith.constant 0 : i32
    %223 = vector.broadcast %c0_i32_90 : i32 to vector<32x128xi32>
    %224 = arith.cmpi eq, %222, %223 : vector<32x128xi32>
    %c1_i32_91 = arith.constant 1 : i32
    %225 = tpu.dynamic_rotate %219 by %c1_i32_91 dim 0 : vector<32x128xf32>, i32 -> vector<32x128xf32>
    %cst_92 = arith.constant 0.000000e+00 : f32
    %226 = vector.broadcast %cst_92 : f32 to vector<32x128xf32>
    %227 = arith.select %224, %226, %225 : vector<32x128xi1>, vector<32x128xf32>
    %c15_i32_93 = arith.constant 15 : i32
    %228 = vector.broadcast %c15_i32_93 : i32 to vector<32x128xi32>
    %229 = arith.cmpi eq, %222, %228 : vector<32x128xi32>
    %c31_i32 = arith.constant 31 : i32
    %230 = tpu.dynamic_rotate %219 by %c31_i32 dim 0 : vector<32x128xf32>, i32 -> vector<32x128xf32>
    %cst_94 = arith.constant 0.000000e+00 : f32
    %231 = vector.broadcast %cst_94 : f32 to vector<32x128xf32>
    %232 = arith.select %229, %231, %230 : vector<32x128xi1>, vector<32x128xf32>
    %233 = arith.truncf %219 : vector<32x128xf32> to vector<32x128xbf16>
    %234 = arith.truncf %227 : vector<32x128xf32> to vector<32x128xbf16>
    %235 = tpu.concatenate %234, %233 in 1 : vector<32x128xbf16>, vector<32x128xbf16> -> vector<32x256xbf16>
    %236 = arith.truncf %232 : vector<32x128xf32> to vector<32x128xbf16>
    %237 = tpu.concatenate %233, %236 in 1 : vector<32x128xbf16>, vector<32x128xbf16> -> vector<32x256xbf16>
    %c3 = arith.constant 3 : index
    %c0_95 = arith.constant 0 : index
    %c0_96 = arith.constant 0 : index
    %c0_97 = arith.constant 0 : index
    %238 = vector.load %arg2[%c3, %c0_95, %c0_96, %c0_97] : memref<4x2x256x128xbf16, #tpu.memory_space<vmem>>, vector<1x1x256x128xbf16>
    %239 = vector.shape_cast %238 : vector<1x1x256x128xbf16> to vector<256x128xbf16>
    %cst_98 = arith.constant dense<0.000000e+00> : vector<32x128xf32>
    %240 = tpu.matmul %235, %239, %cst_98 {dimension_numbers = #tpu.dot_dimension_numbers<[1], [0], [0], [1], [0, 0, 1, 1], [], []>} : vector<32x256xbf16>, vector<256x128xbf16>, vector<32x128xf32> -> vector<32x128xf32>
    %c3_99 = arith.constant 3 : index
    %c1_100 = arith.constant 1 : index
    %c0_101 = arith.constant 0 : index
    %c0_102 = arith.constant 0 : index
    %241 = vector.load %arg2[%c3_99, %c1_100, %c0_101, %c0_102] : memref<4x2x256x128xbf16, #tpu.memory_space<vmem>>, vector<1x1x256x128xbf16>
    %242 = vector.shape_cast %241 : vector<1x1x256x128xbf16> to vector<256x128xbf16>
    %cst_103 = arith.constant dense<0.000000e+00> : vector<32x128xf32>
    %243 = tpu.matmul %237, %242, %cst_103 {dimension_numbers = #tpu.dot_dimension_numbers<[1], [0], [0], [1], [0, 0, 1, 1], [], []>} : vector<32x256xbf16>, vector<256x128xbf16>, vector<32x128xf32> -> vector<32x128xf32>
    %244 = vector.shape_cast %240 : vector<32x128xf32> to vector<32x1x128xf32>
    %245 = vector.shape_cast %243 : vector<32x128xf32> to vector<32x1x128xf32>
    %246 = tpu.concatenate %244, %245 in 1 : vector<32x1x128xf32>, vector<32x1x128xf32> -> vector<32x2x128xf32>
    %247 = vector.shape_cast %246 : vector<32x2x128xf32> to vector<64x128xf32>
    %248 = math.tanh %247 : vector<64x128xf32>
    %c0_104 = arith.constant 0 : index
    %c0_105 = arith.constant 0 : index
    %249 = vector.load %arg4[%c0_104, %c0_105] : memref<64x128xf32, #tpu.memory_space<vmem>>, vector<64x128xf32>
    tpu.vector_store %arg4[%c0_104, %c0_105], %248 {strides = array<i32>} : memref<64x128xf32, #tpu.memory_space<vmem>>, vector<64x128xf32>,
    return
  }
}

</mosaic_0001>

<llo_original>
// kernel: tpu_custom_call.1
$region0: #{tpu_custom_call.1}
  #allocation0 [shape = 'u32[]', space=smem, size = 0x4, offset = 0x4, fixed_abs, tag = 'smem constant byte address 0x4 - core index']
  #allocation1 [shape = 'u32[144,128]{1,0:T(1,128)}', space=vmem, size = 0x12000, scoped, tag = 'internal scratch']
  %s0 = inlined_call_operand.hbm [shape: bf16[4,32], index: 0, kind: input, shape index: {}]
  %s1 = inlined_call_operand.hbm [shape: bf16[32,128], index: 1, kind: input, shape index: {}]
  %s2 = inlined_call_operand.hbm [shape: bf16[4,2,256,128], index: 2, kind: input, shape index: {}]
  %s3 = inlined_call_operand.hbm [shape: f32[8,128], index: 3, kind: input, shape index: {}]
  %s4 = inlined_call_operand.hbm [shape: f32[64,128], index: 4, kind: output, shape index: {}]
  %s5 = sld [smem:[#allocation0]]
  $region42: #{tpu_custom_call.1} parent=0
    _
  %s7 = ssub.s32 1, %s5
  %s8 = scalar_select 0, %s7, %s5
  $region1: #{tpu_custom_call.1} parent=0
    #allocation2 [shape = 'u8[1024]{0}', space=vmem, size = 0x400, scoped, tag = 'input window, operand 0, single buffered']
    #allocation3 [shape = 's32[1]{0}', space=sflag, size = 0x4, scoped, tag = 'scoped memory for tpu_custom_call.1']
    #allocation4 [shape = 's32[1]{0}', space=sflag, size = 0x4, scoped, tag = 'scoped memory for tpu_custom_call.1']
    #allocation5 [shape = 'u8[8192]{0}', space=vmem, size = 0x2000, scoped, tag = 'input window, operand 1, single buffered']
    #allocation6 [shape = 's32[1]{0}', space=sflag, size = 0x4, scoped, tag = 'scoped memory for tpu_custom_call.1']
    #allocation7 [shape = 'u8[524288]{0}', space=vmem, size = 0x80000, scoped, tag = 'input window, operand 2, single buffered']
    #allocation8 [shape = 'u8[4096]{0}', space=vmem, size = 0x1000, scoped, tag = 'input window, operand 3, single buffered']
    #allocation9 [shape = 's32[1]{0}', space=sflag, size = 0x4, scoped, tag = 'scoped memory for tpu_custom_call.1']
    #allocation10 [shape = 'u8[32768]{0}', space=vmem, size = 0x8000, scoped, tag = 'output window, operand 0, single buffered']
    %9 = vsyncpa [#allocation3], 0
    %10 = vsyncpa [#allocation6], 0
    %11 = vsyncpa [#allocation9], 0
    %12 = vsyncpa [#allocation4], 0
    // Predicated region
    $region2: #{tpu_custom_call.1} parent=1 // pred_check
      _
    $region3: #{tpu_custom_call.1} parent=1 // pred_check_branch
      %14 = sbr.rel (0) target = $region5
    $region4: #{tpu_custom_call.1} parent=1 // pred_region
      %s16 = ssub.s32 32, 32
      %17 = vsyncadd [#allocation3], %s16
      %s19 = sshll.u32 [#allocation2], 4
      %s20 = int_to_ptr.vmem [resolvable:$true] %s19
      %22 = dma.hbm_to_vmem [thread:$0]  %s0, 32, %s20, [#allocation3]
    $region5: #{tpu_custom_call.1} parent=1 // pred_fallthru
      _
    // Predicated region
    $region6: #{tpu_custom_call.1} parent=1 // pred_check
      _
    $region7: #{tpu_custom_call.1} parent=1 // pred_check_branch
      %24 = sbr.rel (0) target = $region9
    $region8: #{tpu_custom_call.1} parent=1 // pred_region
      %s26 = ssub.s32 256, 256
      %27 = vsyncadd [#allocation6], %s26
      %s28 = sshll.u32 [#allocation5], 4
      %s29 = int_to_ptr.vmem [resolvable:$true] %s28
      %34 = dma.hbm_to_vmem [thread:$0]  %s1, 256, %s29, [#allocation6], 64, 64, 4
    $region9: #{tpu_custom_call.1} parent=1 // pred_fallthru
      _
    // Predicated region
    $region10: #{tpu_custom_call.1} parent=1 // pred_check
      _
    $region11: #{tpu_custom_call.1} parent=1 // pred_check_branch
      %36 = sbr.rel (0) target = $region13
    $region12: #{tpu_custom_call.1} parent=1 // pred_region
      %s38 = ssub.s32 16384, 16384
      %39 = vsyncadd [#allocation6], %s38
      %s40 = sshll.u32 [#allocation7], 4
      %s41 = int_to_ptr.vmem [resolvable:$true] %s40
      %46 = dma.hbm_to_vmem [thread:$0]  %s2, 16384, %s41, [#allocation6], 64, 64, 4
    $region13: #{tpu_custom_call.1} parent=1 // pred_fallthru
      _
    // Predicated region
    $region14: #{tpu_custom_call.1} parent=1 // pred_check
      _
    $region15: #{tpu_custom_call.1} parent=1 // pred_check_branch
      %48 = sbr.rel (0) target = $region17
    $region16: #{tpu_custom_call.1} parent=1 // pred_region
      %s50 = ssub.s32 128, 128
      %51 = vsyncadd [#allocation9], %s50
      %s53 = sshll.u32 [#allocation8], 4
      %s54 = int_to_ptr.vmem [resolvable:$true] %s53
      %56 = dma.hbm_to_vmem [thread:$0]  %s3, 128, %s54, [#allocation9]
    $region17: #{tpu_custom_call.1} parent=1 // pred_fallthru
      _
    // Predicated region
    $region18: #{tpu_custom_call.1} parent=1 // pred_check
      _
    $region19: #{tpu_custom_call.1} parent=1 // pred_check_branch
      %58 = sbr.rel (0) target = $region21
    $region20: #{tpu_custom_call.1} parent=1 // pred_region
      %59 = dma.done [#allocation3], 32
    $region21: #{tpu_custom_call.1} parent=1 // pred_fallthru
      _
    // Predicated region
    $region22: #{tpu_custom_call.1} parent=1 // pred_check
      _
    $region23: #{tpu_custom_call.1} parent=1 // pred_check_branch
      %61 = sbr.rel (0) target = $region25
    $region24: #{tpu_custom_call.1} parent=1 // pred_region
      %62 = dma.done [#allocation6], 256
    $region25: #{tpu_custom_call.1} parent=1 // pred_fallthru
      _
    // Predicated region
    $region26: #{tpu_custom_call.1} parent=1 // pred_check
      _
    $region27: #{tpu_custom_call.1} parent=1 // pred_check_branch
      %64 = sbr.rel (0) target = $region29
    $region28: #{tpu_custom_call.1} parent=1 // pred_region
      %65 = dma.done [#allocation6], 16384
    $region29: #{tpu_custom_call.1} parent=1 // pred_fallthru
      _
    // Predicated region
    $region30: #{tpu_custom_call.1} parent=1 // pred_check
      _
    $region31: #{tpu_custom_call.1} parent=1 // pred_check_branch
      %67 = sbr.rel (0) target = $region33
    $region32: #{tpu_custom_call.1} parent=1 // pred_region
      %68 = dma.done [#allocation9], 128
    $region33: #{tpu_custom_call.1} parent=1 // pred_fallthru
      _
    %v70 = vld [vmem:[#allocation2] sm:$0x3]
    %v71 = vld [vmem:[#allocation5] sm:$0xf]
    %v72 = vld [vmem:[#allocation5 + $0x4] sm:$0xf]
    %v73 = vld [vmem:[#allocation5 + $0x8] sm:$0xf]
    %v74 = vld [vmem:[#allocation5 + $0xc] sm:$0xf]
    %v79 = vunpack.c.l.b16 %v71
    %v80 = vunpack.c.l.b16 %v72
    %v81 = vunpack.c.l.b16 %v73
    %v82 = vunpack.c.l.b16 %v74
    %v83 = vpack.c.b16 %v80, %v79
    %v84 = vpack.c.b16 %v82, %v81
    %vm87 = vcmask 261120
    %v89 = vsel %vm87, %v70, 0
    %91 = vmatprep.subr.bf16.mxu0 0
    %92 = vmatpush1.bf16.msra.mxu0 0
    %93 = vmatprep.subr.bf16.mxu0 0
    %94 = vmatpush1.bf16.msra.mxu0 0
    %95 = vmatprep.subr.bf16.mxu0 0
    %96 = vmatpush1.bf16.msra.mxu0 0
    %97 = vmatprep.subr.bf16.mxu0 0
    %98 = vmatpush1.bf16.msra.mxu0 0
    %99 = vmatprep.subr.bf16.mxu0 0
    %100 = vmatpush1.bf16.msra.mxu0 0
    %101 = vmatprep.subr.bf16.mxu0 0
    %102 = vmatpush1.bf16.msra.mxu0 0
    %103 = vmatprep.subr.bf16.mxu0 0
    %104 = vmatpush1.bf16.msra.mxu0 %v84
    %105 = vmatprep.subr.bf16.mxu0 0
    %106 = vmatpush1.bf16.msra.mxu0 %v83
    %107 = vmatprep.subr.bf16.mxu0 0
    %108 = vmatpush2.bf16.msra.mxu0 0
    %109 = vmatprep.subr.bf16.mxu0 0
    %110 = vmatpush2.bf16.msra.mxu0 0
    %111 = vmatprep.subr.bf16.mxu0 0
    %112 = vmatpush2.bf16.msra.mxu0 0
    %113 = vmatprep.subr.bf16.mxu0 0
    %114 = vmatpush2.bf16.msra.mxu0 0
    %115 = vmatprep.subr.bf16.mxu0 0
    %116 = vmatpush2.bf16.msra.mxu0 0
    %117 = vmatprep.subr.bf16.mxu0 0
    %118 = vmatpush2.bf16.msra.mxu0 0
    %119 = vmatprep.subr.bf16.mxu0 0
    %120 = vmatpush2.bf16.msra.mxu0 0
    %121 = vmatprep.subr.bf16.mxu0 0
    %122 = vmatpush2.bf16.msra.mxu0 0
    %123 = vmatprep.mubr.bf16.mxu0 0
    %124 = vmatmul.mubr.bf16.gmra.mxu0 %v89
    %v125 = vpop.f32.mrf.mxu0
    %v126 = vadd.f32 0.0, %v125
    %v127 = vpop.f32.mrf.mxu0
    %v128 = vpop.f32.mrf.mxu0
    %v129 = vpop.f32.mrf.mxu0
    %130 = vdwg.mxu0
    %v131 = vld [vmem:[#allocation8] sm:$0xff]
    %vm132 = vcmask 1043456
    %v133 = vsel %vm132, %v126, 0.0
    %v134 = vrot.slane %v133, 4
    %v135 = vadd.f32 %v133, %v134
    %v136 = vrot.slane %v135, 2
    %v137 = vadd.f32 %v135, %v136
    %v138 = vrot.slane %v137, 1
    %v139 = vadd.f32 %v137, %v138
    %140 = vrot.lane.b32.xlu0 %v139, 64
    %v141 = vpop.permute.xlu0 %140
    %v142 = vadd.f32 %v139, %v141
    %v143 = vmul.f32 %v142, 0.125
    %v144 = vlaneseq
    %v145 = vshrl.u32 %v144, 7
    %v146 = vsub.s32 0, %v145
    %v147 = vrot.slane %v143, %v146
    %v148 = vsub.f32 %v126, %v147
    %v149 = vmul.f32 %v148, %v148
    %v150 = vsel %vm132, %v149, 0.0
    %v151 = vrot.slane %v150, 4
    %v152 = vadd.f32 %v150, %v151
    %v153 = vrot.slane %v152, 2
    %v154 = vadd.f32 %v152, %v153
    %v155 = vrot.slane %v154, 1
    %v156 = vadd.f32 %v154, %v155
    %157 = vrot.lane.b32.xlu0 %v156, 64
    %v158 = vpop.permute.xlu0 %157
    %v159 = vadd.f32 %v156, %v158
    %v160 = vmul.f32 %v159, 0.125
    %v161 = vadd.f32 %v160, 1e-05
    %v162 = vrsqrt.pop %v161
    %v163 = vmul.f32 %v162, %v131
    %v164 = vlaneseq
    %v165 = vshrl.u32 %v164, 7
    %v166 = vsub.s32 0, %v165
    %v167 = vrot.slane %v163, %v166
    %v168 = vmul.f32 %v148, %v167
    %v169 = vlaneseq
    %v170 = vshrl.u32 %v169, 7
    %v171 = vsub.s32 1, %v170
    %v172 = vrot.slane %v131, %v171
    %v173 = vadd.f32 %v168, %v172
    %v174 = vmax.f32 %v173, 0.0
    %v175 = vlaneseq
    %v176 = vshrl.u32 %v175, 7
    %v177 = vand.u32 %v176, 1
    %vm178 = vcmp.eq.s32.totalorder %v177, 0
    %vm179 = vcmask 1047556
    %v180 = vrot.slane %v174, 4
    %v181 = vsel %vm179, %v180, %v174
    %v182 = vrot.slane %v181, 4
    %v183 = vsel %vm179, %v182, %v174
    %v185 = vrot.slane %v183, 3
    %v187 = vsel %vm178, 0.0, %v185
    %vm188 = vcmp.eq.s32.totalorder %v177, 1
    %v189 = vrot.slane %v183, 1
    %v191 = vsel %vm188, 0.0, %v189
    %v192 = vpack.c.bf16 %v174, %v174
    %v193 = vpack.c.bf16 %v187, %v187
    %v194 = vpack.c.bf16 %v191, %v191
    %v195 = vld [vmem:[#allocation7] sm:$0xf]
    %v196 = vld [vmem:[#allocation7 + $0x4] sm:$0xf]
    %v197 = vld [vmem:[#allocation7 + $0x8] sm:$0xf]
    %v198 = vld [vmem:[#allocation7 + $0xc] sm:$0xf]
    %v199 = vld [vmem:[#allocation7 + $0x10] sm:$0xf]
    %v200 = vld [vmem:[#allocation7 + $0x14] sm:$0xf]
    %v201 = vld [vmem:[#allocation7 + $0x18] sm:$0xf]
    %v202 = vld [vmem:[#allocation7 + $0x1c] sm:$0xf]
    %v203 = vld [vmem:[#allocation7 + $0x20] sm:$0xf]
    %v204 = vld [vmem:[#allocation7 + $0x24] sm:$0xf]
    %v205 = vld [vmem:[#allocation7 + $0x28] sm:$0xf]
    %v206 = vld [vmem:[#allocation7 + $0x2c] sm:$0xf]
    %v207 = vld [vmem:[#allocation7 + $0x30] sm:$0xf]
    %v208 = vld [vmem:[#allocation7 + $0x34] sm:$0xf]
    %v209 = vld [vmem:[#allocation7 + $0x38] sm:$0xf]
    %v210 = vld [vmem:[#allocation7 + $0x3c] sm:$0xf]
    %v211 = vld [vmem:[#allocation7 + $0x40] sm:$0xf]
    %v212 = vld [vmem:[#allocation7 + $0x44] sm:$0xf]
    %v213 = vld [vmem:[#allocation7 + $0x48] sm:$0xf]
    %v214 = vld [vmem:[#allocation7 + $0x4c] sm:$0xf]
    %v215 = vld [vmem:[#allocation7 + $0x50] sm:$0xf]
    %v216 = vld [vmem:[#allocation7 + $0x54] sm:$0xf]
    %v217 = vld [vmem:[#allocation7 + $0x58] sm:$0xf]
    %v218 = vld [vmem:[#allocation7 + $0x5c] sm:$0xf]
    %v219 = vld [vmem:[#allocation7 + $0x60] sm:$0xf]
    %v220 = vld [vmem:[#allocation7 + $0x64] sm:$0xf]
    %v221 = vld [vmem:[#allocation7 + $0x68] sm:$0xf]
    %v222 = vld [vmem:[#allocation7 + $0x6c] sm:$0xf]
    %v223 = vld [vmem:[#allocation7 + $0x70] sm:$0xf]
    %v224 = vld [vmem:[#allocation7 + $0x74] sm:$0xf]
    %v225 = vld [vmem:[#allocation7 + $0x78] sm:$0xf]
    %v226 = vld [vmem:[#allocation7 + $0x7c] sm:$0xf]
    %v259 = vunpack.c.l.b16 %v195
    %v260 = vunpack.c.l.b16 %v196
    %v261 = vunpack.c.l.b16 %v197
    %v262 = vunpack.c.l.b16 %v198
    %v263 = vunpack.c.l.b16 %v199
    %v264 = vunpack.c.l.b16 %v200
    %v265 = vunpack.c.l.b16 %v201
    %v266 = vunpack.c.l.b16 %v202
    %v267 = vunpack.c.l.b16 %v203
    %v268 = vunpack.c.l.b16 %v204
    %v269 = vunpack.c.l.b16 %v205
    %v270 = vunpack.c.l.b16 %v206
    %v271 = vunpack.c.l.b16 %v207
    %v272 = vunpack.c.l.b16 %v208
    %v273 = vunpack.c.l.b16 %v209
    %v274 = vunpack.c.l.b16 %v210
    %v275 = vunpack.c.l.b16 %v211
    %v276 = vunpack.c.l.b16 %v212
    %v277 = vunpack.c.l.b16 %v213
    %v278 = vunpack.c.l.b16 %v214
    %v279 = vunpack.c.l.b16 %v215
    %v280 = vunpack.c.l.b16 %v216
    %v281 = vunpack.c.l.b16 %v217
    %v282 = vunpack.c.l.b16 %v218
    %v283 = vunpack.c.l.b16 %v219
    %v284 = vunpack.c.l.b16 %v220
    %v285 = vunpack.c.l.b16 %v221
    %v286 = vunpack.c.l.b16 %v222
    %v287 = vunpack.c.l.b16 %v223
    %v288 = vunpack.c.l.b16 %v224
    %v289 = vunpack.c.l.b16 %v225
    %v290 = vunpack.c.l.b16 %v226
    %v291 = vpack.c.b16 %v260, %v259
    %v292 = vpack.c.b16 %v262, %v261
    %v293 = vpack.c.b16 %v264, %v263
    %v294 = vpack.c.b16 %v266, %v265
    %v295 = vpack.c.b16 %v268, %v267
    %v296 = vpack.c.b16 %v270, %v269
    %v297 = vpack.c.b16 %v272, %v271
    %v298 = vpack.c.b16 %v274, %v273
    %v299 = vpack.c.b16 %v276, %v275
    %v300 = vpack.c.b16 %v278, %v277
    %v301 = vpack.c.b16 %v280, %v279
    %v302 = vpack.c.b16 %v282, %v281
    %v303 = vpack.c.b16 %v284, %v283
    %v304 = vpack.c.b16 %v286, %v285
    %v305 = vpack.c.b16 %v288, %v287
    %v306 = vpack.c.b16 %v290, %v289
    %323 = vmatprep.subr.bf16.mxu0 0
    %324 = vmatpush1.bf16.msra.mxu0 %v298
    %325 = vmatprep.subr.bf16.mxu0 0
    %326 = vmatpush1.bf16.msra.mxu0 %v297
    %327 = vmatprep.subr.bf16.mxu0 0
    %328 = vmatpush1.bf16.msra.mxu0 %v296
    %329 = vmatprep.subr.bf16.mxu0 0
    %330 = vmatpush1.bf16.msra.mxu0 %v295
    %331 = vmatprep.subr.bf16.mxu0 0
    %332 = vmatpush1.bf16.msra.mxu0 %v294
    %333 = vmatprep.subr.bf16.mxu0 0
    %334 = vmatpush1.bf16.msra.mxu0 %v293
    %335 = vmatprep.subr.bf16.mxu0 0
    %336 = vmatpush1.bf16.msra.mxu0 %v292
    %337 = vmatprep.subr.bf16.mxu0 0
    %338 = vmatpush1.bf16.msra.mxu0 %v291
    %339 = vmatprep.subr.bf16.mxu0 0
    %340 = vmatpush2.bf16.msra.mxu0 %v306
    %341 = vmatprep.subr.bf16.mxu0 0
    %342 = vmatpush2.bf16.msra.mxu0 %v305
    %343 = vmatprep.subr.bf16.mxu0 0
    %344 = vmatpush2.bf16.msra.mxu0 %v304
    %345 = vmatprep.subr.bf16.mxu0 0
    %346 = vmatpush2.bf16.msra.mxu0 %v303
    %347 = vmatprep.subr.bf16.mxu0 0
    %348 = vmatpush2.bf16.msra.mxu0 %v302
    %349 = vmatprep.subr.bf16.mxu0 0
    %350 = vmatpush2.bf16.msra.mxu0 %v301
    %351 = vmatprep.subr.bf16.mxu0 0
    %352 = vmatpush2.bf16.msra.mxu0 %v300
    %353 = vmatprep.subr.bf16.mxu0 0
    %354 = vmatpush2.bf16.msra.mxu0 %v299
    %355 = vmatprep.mubr.bf16.mxu0 %v192
    %356 = vmatmul.mubr.bf16.gmra.mxu0 %v193
    %v357 = vpop.f32.mrf.mxu0
    %v358 = vadd.f32 0.0, %v357
    %v359 = vpop.f32.mrf.mxu0
    %v360 = vpop.f32.mrf.mxu0
    %v361 = vpop.f32.mrf.mxu0
    %362 = vdwg.mxu0
    %s363 = scalar_lea.vmem [#allocation7], 128
    %v364 = vld [vmem:[%s363] sm:$0xf]
    %v365 = vld [vmem:[%s363 + $0x4] sm:$0xf]
    %v366 = vld [vmem:[%s363 + $0x8] sm:$0xf]
    %v367 = vld [vmem:[%s363 + $0xc] sm:$0xf]
    %v368 = vld [vmem:[%s363 + $0x10] sm:$0xf]
    %v369 = vld [vmem:[%s363 + $0x14] sm:$0xf]
    %v370 = vld [vmem:[%s363 + $0x18] sm:$0xf]
    %v371 = vld [vmem:[%s363 + $0x1c] sm:$0xf]
    %v372 = vld [vmem:[%s363 + $0x20] sm:$0xf]
    %v373 = vld [vmem:[%s363 + $0x24] sm:$0xf]
    %v374 = vld [vmem:[%s363 + $0x28] sm:$0xf]
    %v375 = vld [vmem:[%s363 + $0x2c] sm:$0xf]
    %v376 = vld [vmem:[%s363 + $0x30] sm:$0xf]
    %v377 = vld [vmem:[%s363 + $0x34] sm:$0xf]
    %v378 = vld [vmem:[%s363 + $0x38] sm:$0xf]
    %v379 = vld [vmem:[%s363 + $0x3c] sm:$0xf]
    %v380 = vld [vmem:[%s363 + $0x40] sm:$0xf]
    %v381 = vld [vmem:[%s363 + $0x44] sm:$0xf]
    %v382 = vld [vmem:[%s363 + $0x48] sm:$0xf]
    %v383 = vld [vmem:[%s363 + $0x4c] sm:$0xf]
    %v384 = vld [vmem:[%s363 + $0x50] sm:$0xf]
    %v385 = vld [vmem:[%s363 + $0x54] sm:$0xf]
    %v386 = vld [vmem:[%s363 + $0x58] sm:$0xf]
    %v387 = vld [vmem:[%s363 + $0x5c] sm:$0xf]
    %v388 = vld [vmem:[%s363 + $0x60] sm:$0xf]
    %v389 = vld [vmem:[%s363 + $0x64] sm:$0xf]
    %v390 = vld [vmem:[%s363 + $0x68] sm:$0xf]
    %v391 = vld [vmem:[%s363 + $0x6c] sm:$0xf]
    %v392 = vld [vmem:[%s363 + $0x70] sm:$0xf]
    %v393 = vld [vmem:[%s363 + $0x74] sm:$0xf]
    %v394 = vld [vmem:[%s363 + $0x78] sm:$0xf]
    %v395 = vld [vmem:[%s363 + $0x7c] sm:$0xf]
    %v428 = vunpack.c.l.b16 %v364
    %v429 = vunpack.c.l.b16 %v365
    %v430 = vunpack.c.l.b16 %v366
    %v431 = vunpack.c.l.b16 %v367
    %v432 = vunpack.c.l.b16 %v368
    %v433 = vunpack.c.l.b16 %v369
    %v434 = vunpack.c.l.b16 %v370
    %v435 = vunpack.c.l.b16 %v371
    %v436 = vunpack.c.l.b16 %v372
    %v437 = vunpack.c.l.b16 %v373
    %v438 = vunpack.c.l.b16 %v374
    %v439 = vunpack.c.l.b16 %v375
    %v440 = vunpack.c.l.b16 %v376
    %v441 = vunpack.c.l.b16 %v377
    %v442 = vunpack.c.l.b16 %v378
    %v443 = vunpack.c.l.b16 %v379
    %v444 = vunpack.c.l.b16 %v380
    %v445 = vunpack.c.l.b16 %v381
    %v446 = vunpack.c.l.b16 %v382
    %v447 = vunpack.c.l.b16 %v383
    %v448 = vunpack.c.l.b16 %v384
    %v449 = vunpack.c.l.b16 %v385
    %v450 = vunpack.c.l.b16 %v386
    %v451 = vunpack.c.l.b16 %v387
    %v452 = vunpack.c.l.b16 %v388
    %v453 = vunpack.c.l.b16 %v389
    %v454 = vunpack.c.l.b16 %v390
    %v455 = vunpack.c.l.b16 %v391
    %v456 = vunpack.c.l.b16 %v392
    %v457 = vunpack.c.l.b16 %v393
    %v458 = vunpack.c.l.b16 %v394
    %v459 = vunpack.c.l.b16 %v395
    %v460 = vpack.c.b16 %v429, %v428
    %v461 = vpack.c.b16 %v431, %v430
    %v462 = vpack.c.b16 %v433, %v432
    %v463 = vpack.c.b16 %v435, %v434
    %v464 = vpack.c.b16 %v437, %v436
    %v465 = vpack.c.b16 %v439, %v438
    %v466 = vpack.c.b16 %v441, %v440
    %v467 = vpack.c.b16 %v443, %v442
    %v468 = vpack.c.b16 %v445, %v444
    %v469 = vpack.c.b16 %v447, %v446
    %v470 = vpack.c.b16 %v449, %v448
    %v471 = vpack.c.b16 %v451, %v450
    %v472 = vpack.c.b16 %v453, %v452
    %v473 = vpack.c.b16 %v455, %v454
    %v474 = vpack.c.b16 %v457, %v456
    %v475 = vpack.c.b16 %v459, %v458
    %492 = vmatprep.subr.bf16.mxu0 0
    %493 = vmatpush1.bf16.msra.mxu0 %v467
    %494 = vmatprep.subr.bf16.mxu0 0
    %495 = vmatpush1.bf16.msra.mxu0 %v466
    %496 = vmatprep.subr.bf16.mxu0 0
    %497 = vmatpush1.bf16.msra.mxu0 %v465
    %498 = vmatprep.subr.bf16.mxu0 0
    %499 = vmatpush1.bf16.msra.mxu0 %v464
    %500 = vmatprep.subr.bf16.mxu0 0
    %501 = vmatpush1.bf16.msra.mxu0 %v463
    %502 = vmatprep.subr.bf16.mxu0 0
    %503 = vmatpush1.bf16.msra.mxu0 %v462
    %504 = vmatprep.subr.bf16.mxu0 0
    %505 = vmatpush1.bf16.msra.mxu0 %v461
    %506 = vmatprep.subr.bf16.mxu0 0
    %507 = vmatpush1.bf16.msra.mxu0 %v460
    %508 = vmatprep.subr.bf16.mxu0 0
    %509 = vmatpush2.bf16.msra.mxu0 %v475
    %510 = vmatprep.subr.bf16.mxu0 0
    %511 = vmatpush2.bf16.msra.mxu0 %v474
    %512 = vmatprep.subr.bf16.mxu0 0
    %513 = vmatpush2.bf16.msra.mxu0 %v473
    %514 = vmatprep.subr.bf16.mxu0 0
    %515 = vmatpush2.bf16.msra.mxu0 %v472
    %516 = vmatprep.subr.bf16.mxu0 0
    %517 = vmatpush2.bf16.msra.mxu0 %v471
    %518 = vmatprep.subr.bf16.mxu0 0
    %519 = vmatpush2.bf16.msra.mxu0 %v470
    %520 = vmatprep.subr.bf16.mxu0 0
    %521 = vmatpush2.bf16.msra.mxu0 %v469
    %522 = vmatprep.subr.bf16.mxu0 0
    %523 = vmatpush2.bf16.msra.mxu0 %v468
    %524 = vmatprep.mubr.bf16.mxu0 %v194
    %525 = vmatmul.mubr.bf16.gmra.mxu0 %v192
    %v526 = vpop.f32.mrf.mxu0
    %v527 = vadd.f32 0.0, %v526
    %v528 = vpop.f32.mrf.mxu0
    %v529 = vpop.f32.mrf.mxu0
    %v530 = vpop.f32.mrf.mxu0
    %531 = vdwg.mxu0
    %v534 = vunpack.c.l.s4 1966171168
    %v535 = vunpack.c.0.s8 %v534
    %v536 = vlaneseq
    %v537 = vshrl.u32 %v536, 7
    %v538 = vsub.s32 %v535, %v537
    %v539 = vrot.slane %v358, %v538
    %v540 = vcombine.high %v539, %v539
    %v542 = vunpack.c.l.s4 1966171168
    %v543 = vunpack.c.0.s8 %v542
    %v544 = vlaneseq
    %v545 = vshrl.u32 %v544, 7
    %v546 = vsub.s32 %v543, %v545
    %v547 = vrot.slane %v539, %v546
    %v549 = vunpack.c.l.s4 1966171168
    %v550 = vunpack.c.0.s8 %v549
    %v551 = vlaneseq
    %v552 = vshrl.u32 %v551, 7
    %v553 = vsub.s32 %v550, %v552
    %v554 = vrot.slane %v540, %v553
    %v555 = vcombine.high %v547, %v547
    %v556 = vcombine.high %v554, %v554
    %v563 = vunpack.c.l.s4 1966171168
    %v564 = vunpack.c.0.s8 %v563
    %v565 = vlaneseq
    %v566 = vshrl.u32 %v565, 7
    %v567 = vsub.s32 %v564, %v566
    %v568 = vrot.slane %v527, %v567
    %v569 = vcombine.high %v568, %v568
    %v571 = vunpack.c.l.s4 1966171168
    %v572 = vunpack.c.0.s8 %v571
    %v573 = vlaneseq
    %v574 = vshrl.u32 %v573, 7
    %v575 = vsub.s32 %v572, %v574
    %v576 = vrot.slane %v568, %v575
    %v578 = vunpack.c.l.s4 1966171168
    %v579 = vunpack.c.0.s8 %v578
    %v580 = vlaneseq
    %v581 = vshrl.u32 %v580, 7
    %v582 = vsub.s32 %v579, %v581
    %v583 = vrot.slane %v569, %v582
    %v584 = vcombine.high %v576, %v576
    %v585 = vcombine.high %v583, %v583
    %v586 = vlaneseq
    %v587 = vshrl.u32 %v586, 7
    %v588 = vsub.s32 0, %v587
    %v589 = vrot.slane %v576, %v588
    %v590 = vlaneseq
    %v591 = vshrl.u32 %v590, 7
    %v592 = vsub.s32 0, %v591
    %v593 = vrot.slane %v583, %v592
    %v594 = vlaneseq
    %v595 = vshrl.u32 %v594, 7
    %v596 = vsub.s32 0, %v595
    %v597 = vrot.slane %v584, %v596
    %v598 = vlaneseq
    %v599 = vshrl.u32 %v598, 7
    %v600 = vsub.s32 0, %v599
    %v601 = vrot.slane %v585, %v600
    %vm606 = vcmask 1040384
    %v607 = vsel %vm606, %v547, %v589
    %v608 = vsel %vm606, %v554, %v593
    %v609 = vsel %vm606, %v555, %v597
    %v610 = vsel %vm606, %v556, %v601
    %v615 = vcombine.low %v607, %v608
    %v616 = vcombine.low %v609, %v610
    %v618 = vunpack.c.l.s4 1983009808
    %v619 = vunpack.c.0.s8 %v618
    %v620 = vlaneseq
    %v621 = vshrl.u32 %v620, 7
    %v622 = vsub.s32 %v619, %v621
    %v623 = vrot.slane %v615, %v622
    %v625 = vunpack.c.l.s4 1983009808
    %v626 = vunpack.c.0.s8 %v625
    %v627 = vlaneseq
    %v628 = vshrl.u32 %v627, 7
    %v629 = vsub.s32 %v626, %v628
    %v630 = vrot.slane %v616, %v629
    %v631 = vcombine.low %v623, %v630
    %v633 = vrot.slane %v631, 4
    %v634 = vadd.f32 %v631, %v633
    %v635 = vrot.slane %v634, 2
    %v636 = vadd.f32 %v634, %v635
    %v637 = vrot.slane %v636, 1
    %v638 = vadd.f32 %v636, %v637
    %639 = vrot.lane.b32.xlu0 %v638, 32
    %v640 = vpop.permute.xlu0 %639
    %v641 = vadd.f32 %v638, %v640
    %642 = vrot.lane.b32.xlu0 %v641, 64
    %v643 = vpop.permute.xlu0 %642
    %v644 = vadd.f32 %v641, %v643
    %v645 = vmul.f32 %v644, 0.03125
    %v646 = vlaneseq
    %v647 = vshrl.u32 %v646, 7
    %v648 = vsub.s32 0, %v647
    %v649 = vrot.slane %v645, %v648
    %v651 = vcombine.high %v649, %v649
    %v653 = vunpack.c.l.s4 1983009808
    %v654 = vunpack.c.0.s8 %v653
    %v655 = vlaneseq
    %v656 = vshrl.u32 %v655, 7
    %v657 = vsub.s32 %v654, %v656
    %v658 = vrot.slane %v649, %v657
    %v660 = vunpack.c.l.s4 1983009808
    %v661 = vunpack.c.0.s8 %v660
    %v662 = vlaneseq
    %v663 = vshrl.u32 %v662, 7
    %v664 = vsub.s32 %v661, %v663
    %v665 = vrot.slane %v651, %v664
    %v666 = vcombine.high %v658, %v658
    %v667 = vcombine.high %v665, %v665
    %v672 = vsub.f32 %v607, %v658
    %v673 = vsub.f32 %v608, %v666
    %v674 = vsub.f32 %v609, %v665
    %v675 = vsub.f32 %v610, %v667
    %v676 = vmul.f32 %v672, %v672
    %v677 = vmul.f32 %v673, %v673
    %v678 = vmul.f32 %v674, %v674
    %v679 = vmul.f32 %v675, %v675
    %v684 = vcombine.low %v676, %v677
    %v685 = vcombine.low %v678, %v679
    %v687 = vunpack.c.l.s4 1983009808
    %v688 = vunpack.c.0.s8 %v687
    %v689 = vlaneseq
    %v690 = vshrl.u32 %v689, 7
    %v691 = vsub.s32 %v688, %v690
    %v692 = vrot.slane %v684, %v691
    %v694 = vunpack.c.l.s4 1983009808
    %v695 = vunpack.c.0.s8 %v694
    %v696 = vlaneseq
    %v697 = vshrl.u32 %v696, 7
    %v698 = vsub.s32 %v695, %v697
    %v699 = vrot.slane %v685, %v698
    %v700 = vcombine.low %v692, %v699
    %v702 = vrot.slane %v700, 4
    %v703 = vadd.f32 %v700, %v702
    %v704 = vrot.slane %v703, 2
    %v705 = vadd.f32 %v703, %v704
    %v706 = vrot.slane %v705, 1
    %v707 = vadd.f32 %v705, %v706
    %708 = vrot.lane.b32.xlu0 %v707, 32
    %v709 = vpop.permute.xlu0 %708
    %v710 = vadd.f32 %v707, %v709
    %711 = vrot.lane.b32.xlu0 %v710, 64
    %v712 = vpop.permute.xlu0 %711
    %v713 = vadd.f32 %v710, %v712
    %v714 = vmul.f32 %v713, 0.03125
    %v715 = vadd.f32 %v714, 1e-05
    %v716 = vrsqrt.pop %v715
    %v718 = vrot.slane %v131, 2
    %v720 = vmul.f32 %v716, %v718
    %v721 = vlaneseq
    %v722 = vshrl.u32 %v721, 7
    %v723 = vsub.s32 0, %v722
    %v724 = vrot.slane %v720, %v723
    %v726 = vcombine.high %v724, %v724
    %v728 = vunpack.c.l.s4 1983009808
    %v729 = vunpack.c.0.s8 %v728
    %v730 = vlaneseq
    %v731 = vshrl.u32 %v730, 7
    %v732 = vsub.s32 %v729, %v731
    %v733 = vrot.slane %v724, %v732
    %v735 = vunpack.c.l.s4 1983009808
    %v736 = vunpack.c.0.s8 %v735
    %v737 = vlaneseq
    %v738 = vshrl.u32 %v737, 7
    %v739 = vsub.s32 %v736, %v738
    %v740 = vrot.slane %v726, %v739
    %v741 = vcombine.high %v733, %v733
    %v742 = vcombine.high %v740, %v740
    %v747 = vmul.f32 %v672, %v733
    %v748 = vmul.f32 %v673, %v741
    %v749 = vmul.f32 %v674, %v740
    %v750 = vmul.f32 %v675, %v742
    %v751 = vlaneseq
    %v752 = vshrl.u32 %v751, 7
    %v753 = vsub.s32 3, %v752
    %v754 = vrot.slane %v131, %v753
    %v756 = vcombine.high %v754, %v754
    %v758 = vunpack.c.l.s4 1983009808
    %v759 = vunpack.c.0.s8 %v758
    %v760 = vlaneseq
    %v761 = vshrl.u32 %v760, 7
    %v762 = vsub.s32 %v759, %v761
    %v763 = vrot.slane %v754, %v762
    %v765 = vunpack.c.l.s4 1983009808
    %v766 = vunpack.c.0.s8 %v765
    %v767 = vlaneseq
    %v768 = vshrl.u32 %v767, 7
    %v769 = vsub.s32 %v766, %v768
    %v770 = vrot.slane %v756, %v769
    %v771 = vcombine.high %v763, %v763
    %v772 = vcombine.high %v770, %v770
    %v777 = vadd.f32 %v747, %v763
    %v778 = vadd.f32 %v748, %v771
    %v779 = vadd.f32 %v749, %v770
    %v780 = vadd.f32 %v750, %v772
    %v781 = vmax.f32 %v777, 0.0
    %v782 = vmax.f32 %v778, 0.0
    %v783 = vmax.f32 %v779, 0.0
    %v784 = vmax.f32 %v780, 0.0
    %v785 = vand.u32 %v176, 3
    %vm786 = vcmp.eq.s32.totalorder %v785, 0
    %v791 = vcombine.low %v781, %v782
    %v792 = vcombine.low %v783, %v784
    %v794 = vunpack.c.l.s4 1983009808
    %v795 = vunpack.c.0.s8 %v794
    %v796 = vlaneseq
    %v797 = vshrl.u32 %v796, 7
    %v798 = vsub.s32 %v795, %v797
    %v799 = vrot.slane %v791, %v798
    %v801 = vunpack.c.l.s4 1983009808
    %v802 = vunpack.c.0.s8 %v801
    %v803 = vlaneseq
    %v804 = vshrl.u32 %v803, 7
    %v805 = vsub.s32 %v802, %v804
    %v806 = vrot.slane %v792, %v805
    %v807 = vcombine.low %v799, %v806
    %v809 = vrot.slane %v807, 7
    %v810 = vsel %vm786, 0.0, %v809
    %vm811 = vcmp.eq.s32.totalorder %v785, 3
    %v812 = vrot.slane %v807, 1
    %v813 = vsel %vm811, 0.0, %v812
    %v814 = vpack.c.bf16 %v807, %v807
    %v815 = vpack.c.bf16 %v810, %v810
    %v816 = vpack.c.bf16 %v813, %v813
    %s817 = scalar_lea.vmem [#allocation7], 256
    %v818 = vld [vmem:[%s817] sm:$0xf]
    %v819 = vld [vmem:[%s817 + $0x4] sm:$0xf]
    %v820 = vld [vmem:[%s817 + $0x8] sm:$0xf]
    %v821 = vld [vmem:[%s817 + $0xc] sm:$0xf]
    %v822 = vld [vmem:[%s817 + $0x10] sm:$0xf]
    %v823 = vld [vmem:[%s817 + $0x14] sm:$0xf]
    %v824 = vld [vmem:[%s817 + $0x18] sm:$0xf]
    %v825 = vld [vmem:[%s817 + $0x1c] sm:$0xf]
    %v826 = vld [vmem:[%s817 + $0x20] sm:$0xf]
    %v827 = vld [vmem:[%s817 + $0x24] sm:$0xf]
    %v828 = vld [vmem:[%s817 + $0x28] sm:$0xf]
    %v829 = vld [vmem:[%s817 + $0x2c] sm:$0xf]
    %v830 = vld [vmem:[%s817 + $0x30] sm:$0xf]
    %v831 = vld [vmem:[%s817 + $0x34] sm:$0xf]
    %v832 = vld [vmem:[%s817 + $0x38] sm:$0xf]
    %v833 = vld [vmem:[%s817 + $0x3c] sm:$0xf]
    %v834 = vld [vmem:[%s817 + $0x40] sm:$0xf]
    %v835 = vld [vmem:[%s817 + $0x44] sm:$0xf]
    %v836 = vld [vmem:[%s817 + $0x48] sm:$0xf]
    %v837 = vld [vmem:[%s817 + $0x4c] sm:$0xf]
    %v838 = vld [vmem:[%s817 + $0x50] sm:$0xf]
    %v839 = vld [vmem:[%s817 + $0x54] sm:$0xf]
    %v840 = vld [vmem:[%s817 + $0x58] sm:$0xf]
    %v841 = vld [vmem:[%s817 + $0x5c] sm:$0xf]
    %v842 = vld [vmem:[%s817 + $0x60] sm:$0xf]
    %v843 = vld [vmem:[%s817 + $0x64] sm:$0xf]
    %v844 = vld [vmem:[%s817 + $0x68] sm:$0xf]
    %v845 = vld [vmem:[%s817 + $0x6c] sm:$0xf]
    %v846 = vld [vmem:[%s817 + $0x70] sm:$0xf]
    %v847 = vld [vmem:[%s817 + $0x74] sm:$0xf]
    %v848 = vld [vmem:[%s817 + $0x78] sm:$0xf]
    %v849 = vld [vmem:[%s817 + $0x7c] sm:$0xf]
    %v882 = vunpack.c.l.b16 %v818
    %v883 = vunpack.c.l.b16 %v819
    %v884 = vunpack.c.l.b16 %v820
    %v885 = vunpack.c.l.b16 %v821
    %v886 = vunpack.c.l.b16 %v822
    %v887 = vunpack.c.l.b16 %v823
    %v888 = vunpack.c.l.b16 %v824
    %v889 = vunpack.c.l.b16 %v825
    %v890 = vunpack.c.l.b16 %v826
    %v891 = vunpack.c.l.b16 %v827
    %v892 = vunpack.c.l.b16 %v828
    %v893 = vunpack.c.l.b16 %v829
    %v894 = vunpack.c.l.b16 %v830
    %v895 = vunpack.c.l.b16 %v831
    %v896 = vunpack.c.l.b16 %v832
    %v897 = vunpack.c.l.b16 %v833
    %v898 = vunpack.c.l.b16 %v834
    %v899 = vunpack.c.l.b16 %v835
    %v900 = vunpack.c.l.b16 %v836
    %v901 = vunpack.c.l.b16 %v837
    %v902 = vunpack.c.l.b16 %v838
    %v903 = vunpack.c.l.b16 %v839
    %v904 = vunpack.c.l.b16 %v840
    %v905 = vunpack.c.l.b16 %v841
    %v906 = vunpack.c.l.b16 %v842
    %v907 = vunpack.c.l.b16 %v843
    %v908 = vunpack.c.l.b16 %v844
    %v909 = vunpack.c.l.b16 %v845
    %v910 = vunpack.c.l.b16 %v846
    %v911 = vunpack.c.l.b16 %v847
    %v912 = vunpack.c.l.b16 %v848
    %v913 = vunpack.c.l.b16 %v849
    %v914 = vpack.c.b16 %v883, %v882
    %v915 = vpack.c.b16 %v885, %v884
    %v916 = vpack.c.b16 %v887, %v886
    %v917 = vpack.c.b16 %v889, %v888
    %v918 = vpack.c.b16 %v891, %v890
    %v919 = vpack.c.b16 %v893, %v892
    %v920 = vpack.c.b16 %v895, %v894
    %v921 = vpack.c.b16 %v897, %v896
    %v922 = vpack.c.b16 %v899, %v898
    %v923 = vpack.c.b16 %v901, %v900
    %v924 = vpack.c.b16 %v903, %v902
    %v925 = vpack.c.b16 %v905, %v904
    %v926 = vpack.c.b16 %v907, %v906
    %v927 = vpack.c.b16 %v909, %v908
    %v928 = vpack.c.b16 %v911, %v910
    %v929 = vpack.c.b16 %v913, %v912
    %946 = vmatprep.subr.bf16.mxu0 0
    %947 = vmatpush1.bf16.msra.mxu0 %v921
    %948 = vmatprep.subr.bf16.mxu0 0
    %949 = vmatpush1.bf16.msra.mxu0 %v920
    %950 = vmatprep.subr.bf16.mxu0 0
    %951 = vmatpush1.bf16.msra.mxu0 %v919
    %952 = vmatprep.subr.bf16.mxu0 0
    %953 = vmatpush1.bf16.msra.mxu0 %v918
    %954 = vmatprep.subr.bf16.mxu0 0
    %955 = vmatpush1.bf16.msra.mxu0 %v917
    %956 = vmatprep.subr.bf16.mxu0 0
    %957 = vmatpush1.bf16.msra.mxu0 %v916
    %958 = vmatprep.subr.bf16.mxu0 0
    %959 = vmatpush1.bf16.msra.mxu0 %v915
    %960 = vmatprep.subr.bf16.mxu0 0
    %961 = vmatpush1.bf16.msra.mxu0 %v914
    %962 = vmatprep.subr.bf16.mxu0 0
    %963 = vmatpush2.bf16.msra.mxu0 %v929
    %964 = vmatprep.subr.bf16.mxu0 0
    %965 = vmatpush2.bf16.msra.mxu0 %v928
    %966 = vmatprep.subr.bf16.mxu0 0
    %967 = vmatpush2.bf16.msra.mxu0 %v927
    %968 = vmatprep.subr.bf16.mxu0 0
    %969 = vmatpush2.bf16.msra.mxu0 %v926
    %970 = vmatprep.subr.bf16.mxu0 0
    %971 = vmatpush2.bf16.msra.mxu0 %v925
    %972 = vmatprep.subr.bf16.mxu0 0
    %973 = vmatpush2.bf16.msra.mxu0 %v924
    %974 = vmatprep.subr.bf16.mxu0 0
    %975 = vmatpush2.bf16.msra.mxu0 %v923
    %976 = vmatprep.subr.bf16.mxu0 0
    %977 = vmatpush2.bf16.msra.mxu0 %v922
    %978 = vmatprep.mubr.bf16.mxu0 %v814
    %979 = vmatmul.mubr.bf16.gmra.mxu0 %v815
    %v980 = vpop.f32.mrf.mxu0
    %v981 = vadd.f32 0.0, %v980
    %v982 = vpop.f32.mrf.mxu0
    %v983 = vpop.f32.mrf.mxu0
    %v984 = vpop.f32.mrf.mxu0
    %985 = vdwg.mxu0
    %s986 = scalar_lea.vmem [#allocation7], 384
    %v987 = vld [vmem:[%s986] sm:$0xf]
    %v988 = vld [vmem:[%s986 + $0x4] sm:$0xf]
    %v989 = vld [vmem:[%s986 + $0x8] sm:$0xf]
    %v990 = vld [vmem:[%s986 + $0xc] sm:$0xf]
    %v991 = vld [vmem:[%s986 + $0x10] sm:$0xf]
    %v992 = vld [vmem:[%s986 + $0x14] sm:$0xf]
    %v993 = vld [vmem:[%s986 + $0x18] sm:$0xf]
    %v994 = vld [vmem:[%s986 + $0x1c] sm:$0xf]
    %v995 = vld [vmem:[%s986 + $0x20] sm:$0xf]
    %v996 = vld [vmem:[%s986 + $0x24] sm:$0xf]
    %v997 = vld [vmem:[%s986 + $0x28] sm:$0xf]
    %v998 = vld [vmem:[%s986 + $0x2c] sm:$0xf]
    %v999 = vld [vmem:[%s986 + $0x30] sm:$0xf]
    %v1000 = vld [vmem:[%s986 + $0x34] sm:$0xf]
    %v1001 = vld [vmem:[%s986 + $0x38] sm:$0xf]
    %v1002 = vld [vmem:[%s986 + $0x3c] sm:$0xf]
    %v1003 = vld [vmem:[%s986 + $0x40] sm:$0xf]
    %v1004 = vld [vmem:[%s986 + $0x44] sm:$0xf]
    %v1005 = vld [vmem:[%s986 + $0x48] sm:$0xf]
    %v1006 = vld [vmem:[%s986 + $0x4c] sm:$0xf]
    %v1007 = vld [vmem:[%s986 + $0x50] sm:$0xf]
    %v1008 = vld [vmem:[%s986 + $0x54] sm:$0xf]
    %v1009 = vld [vmem:[%s986 + $0x58] sm:$0xf]
    %v1010 = vld [vmem:[%s986 + $0x5c] sm:$0xf]
    %v1011 = vld [vmem:[%s986 + $0x60] sm:$0xf]
    %v1012 = vld [vmem:[%s986 + $0x64] sm:$0xf]
    %v1013 = vld [vmem:[%s986 + $0x68] sm:$0xf]
    %v1014 = vld [vmem:[%s986 + $0x6c] sm:$0xf]
    %v1015 = vld [vmem:[%s986 + $0x70] sm:$0xf]
    %v1016 = vld [vmem:[%s986 + $0x74] sm:$0xf]
    %v1017 = vld [vmem:[%s986 + $0x78] sm:$0xf]
    %v1018 = vld [vmem:[%s986 + $0x7c] sm:$0xf]
    %v1051 = vunpack.c.l.b16 %v987
    %v1052 = vunpack.c.l.b16 %v988
    %v1053 = vunpack.c.l.b16 %v989
    %v1054 = vunpack.c.l.b16 %v990
    %v1055 = vunpack.c.l.b16 %v991
    %v1056 = vunpack.c.l.b16 %v992
    %v1057 = vunpack.c.l.b16 %v993
    %v1058 = vunpack.c.l.b16 %v994
    %v1059 = vunpack.c.l.b16 %v995
    %v1060 = vunpack.c.l.b16 %v996
    %v1061 = vunpack.c.l.b16 %v997
    %v1062 = vunpack.c.l.b16 %v998
    %v1063 = vunpack.c.l.b16 %v999
    %v1064 = vunpack.c.l.b16 %v1000
    %v1065 = vunpack.c.l.b16 %v1001
    %v1066 = vunpack.c.l.b16 %v1002
    %v1067 = vunpack.c.l.b16 %v1003
    %v1068 = vunpack.c.l.b16 %v1004
    %v1069 = vunpack.c.l.b16 %v1005
    %v1070 = vunpack.c.l.b16 %v1006
    %v1071 = vunpack.c.l.b16 %v1007
    %v1072 = vunpack.c.l.b16 %v1008
    %v1073 = vunpack.c.l.b16 %v1009
    %v1074 = vunpack.c.l.b16 %v1010
    %v1075 = vunpack.c.l.b16 %v1011
    %v1076 = vunpack.c.l.b16 %v1012
    %v1077 = vunpack.c.l.b16 %v1013
    %v1078 = vunpack.c.l.b16 %v1014
    %v1079 = vunpack.c.l.b16 %v1015
    %v1080 = vunpack.c.l.b16 %v1016
    %v1081 = vunpack.c.l.b16 %v1017
    %v1082 = vunpack.c.l.b16 %v1018
    %v1083 = vpack.c.b16 %v1052, %v1051
    %v1084 = vpack.c.b16 %v1054, %v1053
    %v1085 = vpack.c.b16 %v1056, %v1055
    %v1086 = vpack.c.b16 %v1058, %v1057
    %v1087 = vpack.c.b16 %v1060, %v1059
    %v1088 = vpack.c.b16 %v1062, %v1061
    %v1089 = vpack.c.b16 %v1064, %v1063
    %v1090 = vpack.c.b16 %v1066, %v1065
    %v1091 = vpack.c.b16 %v1068, %v1067
    %v1092 = vpack.c.b16 %v1070, %v1069
    %v1093 = vpack.c.b16 %v1072, %v1071
    %v1094 = vpack.c.b16 %v1074, %v1073
    %v1095 = vpack.c.b16 %v1076, %v1075
    %v1096 = vpack.c.b16 %v1078, %v1077
    %v1097 = vpack.c.b16 %v1080, %v1079
    %v1098 = vpack.c.b16 %v1082, %v1081
    %1115 = vmatprep.subr.bf16.mxu0 0
    %1116 = vmatpush1.bf16.msra.mxu0 %v1090
    %1117 = vmatprep.subr.bf16.mxu0 0
    %1118 = vmatpush1.bf16.msra.mxu0 %v1089
    %1119 = vmatprep.subr.bf16.mxu0 0
    %1120 = vmatpush1.bf16.msra.mxu0 %v1088
    %1121 = vmatprep.subr.bf16.mxu0 0
    %1122 = vmatpush1.bf16.msra.mxu0 %v1087
    %1123 = vmatprep.subr.bf16.mxu0 0
    %1124 = vmatpush1.bf16.msra.mxu0 %v1086
    %1125 = vmatprep.subr.bf16.mxu0 0
    %1126 = vmatpush1.bf16.msra.mxu0 %v1085
    %1127 = vmatprep.subr.bf16.mxu0 0
    %1128 = vmatpush1.bf16.msra.mxu0 %v1084
    %1129 = vmatprep.subr.bf16.mxu0 0
    %1130 = vmatpush1.bf16.msra.mxu0 %v1083
    %1131 = vmatprep.subr.bf16.mxu0 0
    %1132 = vmatpush2.bf16.msra.mxu0 %v1098
    %1133 = vmatprep.subr.bf16.mxu0 0
    %1134 = vmatpush2.bf16.msra.mxu0 %v1097
    %1135 = vmatprep.subr.bf16.mxu0 0
    %1136 = vmatpush2.bf16.msra.mxu0 %v1096
    %1137 = vmatprep.subr.bf16.mxu0 0
    %1138 = vmatpush2.bf16.msra.mxu0 %v1095
    %1139 = vmatprep.subr.bf16.mxu0 0
    %1140 = vmatpush2.bf16.msra.mxu0 %v1094
    %1141 = vmatprep.subr.bf16.mxu0 0
    %1142 = vmatpush2.bf16.msra.mxu0 %v1093
    %1143 = vmatprep.subr.bf16.mxu0 0
    %1144 = vmatpush2.bf16.msra.mxu0 %v1092
    %1145 = vmatprep.subr.bf16.mxu0 0
    %1146 = vmatpush2.bf16.msra.mxu0 %v1091
    %1147 = vmatprep.mubr.bf16.mxu0 %v816
    %1148 = vmatmul.mubr.bf16.gmra.mxu0 %v814
    %v1149 = vpop.f32.mrf.mxu0
    %v1150 = vadd.f32 0.0, %v1149
    %v1151 = vpop.f32.mrf.mxu0
    %v1152 = vpop.f32.mrf.mxu0
    %v1153 = vpop.f32.mrf.mxu0
    %1154 = vdwg.mxu0
    %v1156 = vcombine.high %v981, %v981
    %v1158 = vunpack.c.l.s4 1966171168
    %v1159 = vunpack.c.0.s8 %v1158
    %v1160 = vlaneseq
    %v1161 = vshrl.u32 %v1160, 7
    %v1162 = vsub.s32 %v1159, %v1161
    %v1163 = vrot.slane %v981, %v1162
    %v1165 = vunpack.c.l.s4 1966171168
    %v1166 = vunpack.c.0.s8 %v1165
    %v1167 = vlaneseq
    %v1168 = vshrl.u32 %v1167, 7
    %v1169 = vsub.s32 %v1166, %v1168
    %v1170 = vrot.slane %v1156, %v1169
    %v1171 = vcombine.high %v1163, %v1163
    %v1172 = vcombine.high %v1170, %v1170
    %v1174 = vunpack.c.l.s4 1966171168
    %v1175 = vunpack.c.0.s8 %v1174
    %v1176 = vlaneseq
    %v1177 = vshrl.u32 %v1176, 7
    %v1178 = vsub.s32 %v1175, %v1177
    %v1179 = vrot.slane %v1163, %v1178
    %v1181 = vunpack.c.l.s4 1966171168
    %v1182 = vunpack.c.0.s8 %v1181
    %v1183 = vlaneseq
    %v1184 = vshrl.u32 %v1183, 7
    %v1185 = vsub.s32 %v1182, %v1184
    %v1186 = vrot.slane %v1170, %v1185
    %v1188 = vunpack.c.l.s4 1966171168
    %v1189 = vunpack.c.0.s8 %v1188
    %v1190 = vlaneseq
    %v1191 = vshrl.u32 %v1190, 7
    %v1192 = vsub.s32 %v1189, %v1191
    %v1193 = vrot.slane %v1171, %v1192
    %v1195 = vunpack.c.l.s4 1966171168
    %v1196 = vunpack.c.0.s8 %v1195
    %v1197 = vlaneseq
    %v1198 = vshrl.u32 %v1197, 7
    %v1199 = vsub.s32 %v1196, %v1198
    %v1200 = vrot.slane %v1172, %v1199
    %v1201 = vcombine.high %v1179, %v1179
    %v1202 = vcombine.high %v1186, %v1186
    %v1203 = vcombine.high %v1193, %v1193
    %v1204 = vcombine.high %v1200, %v1200
    %v1214 = vcombine.high %v1150, %v1150
    %v1216 = vunpack.c.l.s4 1966171168
    %v1217 = vunpack.c.0.s8 %v1216
    %v1218 = vlaneseq
    %v1219 = vshrl.u32 %v1218, 7
    %v1220 = vsub.s32 %v1217, %v1219
    %v1221 = vrot.slane %v1150, %v1220
    %v1223 = vunpack.c.l.s4 1966171168
    %v1224 = vunpack.c.0.s8 %v1223
    %v1225 = vlaneseq
    %v1226 = vshrl.u32 %v1225, 7
    %v1227 = vsub.s32 %v1224, %v1226
    %v1228 = vrot.slane %v1214, %v1227
    %v1229 = vcombine.high %v1221, %v1221
    %v1230 = vcombine.high %v1228, %v1228
    %v1232 = vunpack.c.l.s4 1966171168
    %v1233 = vunpack.c.0.s8 %v1232
    %v1234 = vlaneseq
    %v1235 = vshrl.u32 %v1234, 7
    %v1236 = vsub.s32 %v1233, %v1235
    %v1237 = vrot.slane %v1221, %v1236
    %v1239 = vunpack.c.l.s4 1966171168
    %v1240 = vunpack.c.0.s8 %v1239
    %v1241 = vlaneseq
    %v1242 = vshrl.u32 %v1241, 7
    %v1243 = vsub.s32 %v1240, %v1242
    %v1244 = vrot.slane %v1228, %v1243
    %v1246 = vunpack.c.l.s4 1966171168
    %v1247 = vunpack.c.0.s8 %v1246
    %v1248 = vlaneseq
    %v1249 = vshrl.u32 %v1248, 7
    %v1250 = vsub.s32 %v1247, %v1249
    %v1251 = vrot.slane %v1229, %v1250
    %v1253 = vunpack.c.l.s4 1966171168
    %v1254 = vunpack.c.0.s8 %v1253
    %v1255 = vlaneseq
    %v1256 = vshrl.u32 %v1255, 7
    %v1257 = vsub.s32 %v1254, %v1256
    %v1258 = vrot.slane %v1230, %v1257
    %v1259 = vcombine.high %v1237, %v1237
    %v1260 = vcombine.high %v1244, %v1244
    %v1261 = vcombine.high %v1251, %v1251
    %v1262 = vcombine.high %v1258, %v1258
    %v1263 = vlaneseq
    %v1264 = vshrl.u32 %v1263, 7
    %v1265 = vsub.s32 0, %v1264
    %v1266 = vrot.slane %v1237, %v1265
    %v1267 = vlaneseq
    %v1268 = vshrl.u32 %v1267, 7
    %v1269 = vsub.s32 0, %v1268
    %v1270 = vrot.slane %v1251, %v1269
    %v1271 = vlaneseq
    %v1272 = vshrl.u32 %v1271, 7
    %v1273 = vsub.s32 0, %v1272
    %v1274 = vrot.slane %v1259, %v1273
    %v1275 = vlaneseq
    %v1276 = vshrl.u32 %v1275, 7
    %v1277 = vsub.s32 0, %v1276
    %v1278 = vrot.slane %v1261, %v1277
    %v1279 = vlaneseq
    %v1280 = vshrl.u32 %v1279, 7
    %v1281 = vsub.s32 0, %v1280
    %v1282 = vrot.slane %v1244, %v1281
    %v1283 = vlaneseq
    %v1284 = vshrl.u32 %v1283, 7
    %v1285 = vsub.s32 0, %v1284
    %v1286 = vrot.slane %v1258, %v1285
    %v1287 = vlaneseq
    %v1288 = vshrl.u32 %v1287, 7
    %v1289 = vsub.s32 0, %v1288
    %v1290 = vrot.slane %v1260, %v1289
    %v1291 = vlaneseq
    %v1292 = vshrl.u32 %v1291, 7
    %v1293 = vsub.s32 0, %v1292
    %v1294 = vrot.slane %v1262, %v1293
    %v1303 = vsel %vm606, %v1179, %v1266
    %v1304 = vsel %vm606, %v1193, %v1270
    %v1305 = vsel %vm606, %v1201, %v1274
    %v1306 = vsel %vm606, %v1203, %v1278
    %v1307 = vsel %vm606, %v1186, %v1282
    %v1308 = vsel %vm606, %v1200, %v1286
    %v1309 = vsel %vm606, %v1202, %v1290
    %v1310 = vsel %vm606, %v1204, %v1294
    %v1319 = vcombine.low %v1303, %v1304
    %v1320 = vcombine.low %v1305, %v1306
    %v1322 = vunpack.c.l.s4 1983009808
    %v1323 = vunpack.c.0.s8 %v1322
    %v1324 = vlaneseq
    %v1325 = vshrl.u32 %v1324, 7
    %v1326 = vsub.s32 %v1323, %v1325
    %v1327 = vrot.slane %v1319, %v1326
    %v1329 = vunpack.c.l.s4 1983009808
    %v1330 = vunpack.c.0.s8 %v1329
    %v1331 = vlaneseq
    %v1332 = vshrl.u32 %v1331, 7
    %v1333 = vsub.s32 %v1330, %v1332
    %v1334 = vrot.slane %v1320, %v1333
    %v1335 = vcombine.low %v1327, %v1334
    %v1336 = vcombine.low %v1307, %v1308
    %v1337 = vcombine.low %v1309, %v1310
    %v1339 = vunpack.c.l.s4 1983009808
    %v1340 = vunpack.c.0.s8 %v1339
    %v1341 = vlaneseq
    %v1342 = vshrl.u32 %v1341, 7
    %v1343 = vsub.s32 %v1340, %v1342
    %v1344 = vrot.slane %v1336, %v1343
    %v1346 = vunpack.c.l.s4 1983009808
    %v1347 = vunpack.c.0.s8 %v1346
    %v1348 = vlaneseq
    %v1349 = vshrl.u32 %v1348, 7
    %v1350 = vsub.s32 %v1347, %v1349
    %v1351 = vrot.slane %v1337, %v1350
    %v1352 = vcombine.low %v1344, %v1351
    %v1355 = vadd.f32 %v1335, %v1352
    %v1356 = vrot.slane %v1355, 4
    %v1357 = vadd.f32 %v1355, %v1356
    %v1358 = vrot.slane %v1357, 2
    %v1359 = vadd.f32 %v1357, %v1358
    %v1360 = vrot.slane %v1359, 1
    %v1361 = vadd.f32 %v1359, %v1360
    %1362 = vrot.lane.b32.xlu0 %v1361, 16
    %v1363 = vpop.permute.xlu0 %1362
    %v1364 = vadd.f32 %v1361, %v1363
    %1365 = vrot.lane.b32.xlu0 %v1364, 32
    %v1366 = vpop.permute.xlu0 %1365
    %v1367 = vadd.f32 %v1364, %v1366
    %1368 = vrot.lane.b32.xlu0 %v1367, 64
    %v1369 = vpop.permute.xlu0 %1368
    %v1370 = vadd.f32 %v1367, %v1369
    %v1371 = vmul.f32 %v1370, 0.0078125
    %v1372 = vlaneseq
    %v1373 = vshrl.u32 %v1372, 7
    %v1374 = vsub.s32 0, %v1373
    %v1375 = vrot.slane %v1371, %v1374
    %v1377 = vcombine.high %v1375, %v1375
    %v1379 = vunpack.c.l.s4 1983009808
    %v1380 = vunpack.c.0.s8 %v1379
    %v1381 = vlaneseq
    %v1382 = vshrl.u32 %v1381, 7
    %v1383 = vsub.s32 %v1380, %v1382
    %v1384 = vrot.slane %v1375, %v1383
    %v1386 = vunpack.c.l.s4 1983009808
    %v1387 = vunpack.c.0.s8 %v1386
    %v1388 = vlaneseq
    %v1389 = vshrl.u32 %v1388, 7
    %v1390 = vsub.s32 %v1387, %v1389
    %v1391 = vrot.slane %v1377, %v1390
    %v1392 = vcombine.high %v1384, %v1384
    %v1393 = vcombine.high %v1391, %v1391
    %v1398 = vsub.f32 %v1303, %v1384
    %v1399 = vsub.f32 %v1304, %v1392
    %v1400 = vsub.f32 %v1305, %v1391
    %v1401 = vsub.f32 %v1306, %v1393
    %v1402 = vsub.f32 %v1307, %v1384
    %v1403 = vsub.f32 %v1308, %v1392
    %v1404 = vsub.f32 %v1309, %v1391
    %v1405 = vsub.f32 %v1310, %v1393
    %v1406 = vmul.f32 %v1398, %v1398
    %v1407 = vmul.f32 %v1399, %v1399
    %v1408 = vmul.f32 %v1400, %v1400
    %v1409 = vmul.f32 %v1401, %v1401
    %v1410 = vmul.f32 %v1402, %v1402
    %v1411 = vmul.f32 %v1403, %v1403
    %v1412 = vmul.f32 %v1404, %v1404
    %v1413 = vmul.f32 %v1405, %v1405
    %v1422 = vcombine.low %v1406, %v1407
    %v1423 = vcombine.low %v1408, %v1409
    %v1425 = vunpack.c.l.s4 1983009808
    %v1426 = vunpack.c.0.s8 %v1425
    %v1427 = vlaneseq
    %v1428 = vshrl.u32 %v1427, 7
    %v1429 = vsub.s32 %v1426, %v1428
    %v1430 = vrot.slane %v1422, %v1429
    %v1432 = vunpack.c.l.s4 1983009808
    %v1433 = vunpack.c.0.s8 %v1432
    %v1434 = vlaneseq
    %v1435 = vshrl.u32 %v1434, 7
    %v1436 = vsub.s32 %v1433, %v1435
    %v1437 = vrot.slane %v1423, %v1436
    %v1438 = vcombine.low %v1430, %v1437
    %v1439 = vcombine.low %v1410, %v1411
    %v1440 = vcombine.low %v1412, %v1413
    %v1442 = vunpack.c.l.s4 1983009808
    %v1443 = vunpack.c.0.s8 %v1442
    %v1444 = vlaneseq
    %v1445 = vshrl.u32 %v1444, 7
    %v1446 = vsub.s32 %v1443, %v1445
    %v1447 = vrot.slane %v1439, %v1446
    %v1449 = vunpack.c.l.s4 1983009808
    %v1450 = vunpack.c.0.s8 %v1449
    %v1451 = vlaneseq
    %v1452 = vshrl.u32 %v1451, 7
    %v1453 = vsub.s32 %v1450, %v1452
    %v1454 = vrot.slane %v1440, %v1453
    %v1455 = vcombine.low %v1447, %v1454
    %v1458 = vadd.f32 %v1438, %v1455
    %v1459 = vrot.slane %v1458, 4
    %v1460 = vadd.f32 %v1458, %v1459
    %v1461 = vrot.slane %v1460, 2
    %v1462 = vadd.f32 %v1460, %v1461
    %v1463 = vrot.slane %v1462, 1
    %v1464 = vadd.f32 %v1462, %v1463
    %1465 = vrot.lane.b32.xlu0 %v1464, 16
    %v1466 = vpop.permute.xlu0 %1465
    %v1467 = vadd.f32 %v1464, %v1466
    %1468 = vrot.lane.b32.xlu0 %v1467, 32
    %v1469 = vpop.permute.xlu0 %1468
    %v1470 = vadd.f32 %v1467, %v1469
    %1471 = vrot.lane.b32.xlu0 %v1470, 64
    %v1472 = vpop.permute.xlu0 %1471
    %v1473 = vadd.f32 %v1470, %v1472
    %v1474 = vmul.f32 %v1473, 0.0078125
    %v1475 = vadd.f32 %v1474, 1e-05
    %v1476 = vrsqrt.pop %v1475
    %v1477 = vrot.slane %v131, 4
    %v1479 = vmul.f32 %v1476, %v1477
    %v1480 = vlaneseq
    %v1481 = vshrl.u32 %v1480, 7
    %v1482 = vsub.s32 0, %v1481
    %v1483 = vrot.slane %v1479, %v1482
    %v1485 = vcombine.high %v1483, %v1483
    %v1487 = vunpack.c.l.s4 1983009808
    %v1488 = vunpack.c.0.s8 %v1487
    %v1489 = vlaneseq
    %v1490 = vshrl.u32 %v1489, 7
    %v1491 = vsub.s32 %v1488, %v1490
    %v1492 = vrot.slane %v1483, %v1491
    %v1494 = vunpack.c.l.s4 1983009808
    %v1495 = vunpack.c.0.s8 %v1494
    %v1496 = vlaneseq
    %v1497 = vshrl.u32 %v1496, 7
    %v1498 = vsub.s32 %v1495, %v1497
    %v1499 = vrot.slane %v1485, %v1498
    %v1500 = vcombine.high %v1492, %v1492
    %v1501 = vcombine.high %v1499, %v1499
    %v1506 = vmul.f32 %v1398, %v1492
    %v1507 = vmul.f32 %v1399, %v1500
    %v1508 = vmul.f32 %v1400, %v1499
    %v1509 = vmul.f32 %v1401, %v1501
    %v1510 = vmul.f32 %v1402, %v1492
    %v1511 = vmul.f32 %v1403, %v1500
    %v1512 = vmul.f32 %v1404, %v1499
    %v1513 = vmul.f32 %v1405, %v1501
    %v1514 = vlaneseq
    %v1515 = vshrl.u32 %v1514, 7
    %v1516 = vsub.s32 5, %v1515
    %v1517 = vrot.slane %v131, %v1516
    %v1519 = vcombine.high %v1517, %v1517
    %v1521 = vunpack.c.l.s4 1983009808
    %v1522 = vunpack.c.0.s8 %v1521
    %v1523 = vlaneseq
    %v1524 = vshrl.u32 %v1523, 7
    %v1525 = vsub.s32 %v1522, %v1524
    %v1526 = vrot.slane %v1517, %v1525
    %v1528 = vunpack.c.l.s4 1983009808
    %v1529 = vunpack.c.0.s8 %v1528
    %v1530 = vlaneseq
    %v1531 = vshrl.u32 %v1530, 7
    %v1532 = vsub.s32 %v1529, %v1531
    %v1533 = vrot.slane %v1519, %v1532
    %v1534 = vcombine.high %v1526, %v1526
    %v1535 = vcombine.high %v1533, %v1533
    %v1540 = vadd.f32 %v1506, %v1526
    %v1541 = vadd.f32 %v1507, %v1534
    %v1542 = vadd.f32 %v1508, %v1533
    %v1543 = vadd.f32 %v1509, %v1535
    %v1544 = vadd.f32 %v1510, %v1526
    %v1545 = vadd.f32 %v1511, %v1534
    %v1546 = vadd.f32 %v1512, %v1533
    %v1547 = vadd.f32 %v1513, %v1535
    %v1548 = vmax.f32 %v1540, 0.0
    %v1549 = vmax.f32 %v1541, 0.0
    %v1550 = vmax.f32 %v1542, 0.0
    %v1551 = vmax.f32 %v1543, 0.0
    %v1552 = vmax.f32 %v1544, 0.0
    %v1553 = vmax.f32 %v1545, 0.0
    %v1554 = vmax.f32 %v1546, 0.0
    %v1555 = vmax.f32 %v1547, 0.0
    %v1556 = vadd.s32 %v176, 8
    %v1557 = vand.u32 %v176, 7
    %v1558 = vand.u32 %v1556, 7
    %vm1559 = vcmp.eq.s32.totalorder %v1557, 0
    %vm1560 = vcmp.eq.s32.totalorder %v1558, 0
    %v1569 = vcombine.low %v1548, %v1549
    %v1570 = vcombine.low %v1550, %v1551
    %v1572 = vunpack.c.l.s4 1983009808
    %v1573 = vunpack.c.0.s8 %v1572
    %v1574 = vlaneseq
    %v1575 = vshrl.u32 %v1574, 7
    %v1576 = vsub.s32 %v1573, %v1575
    %v1577 = vrot.slane %v1569, %v1576
    %v1579 = vunpack.c.l.s4 1983009808
    %v1580 = vunpack.c.0.s8 %v1579
    %v1581 = vlaneseq
    %v1582 = vshrl.u32 %v1581, 7
    %v1583 = vsub.s32 %v1580, %v1582
    %v1584 = vrot.slane %v1570, %v1583
    %v1585 = vcombine.low %v1577, %v1584
    %v1586 = vcombine.low %v1552, %v1553
    %v1587 = vcombine.low %v1554, %v1555
    %v1589 = vunpack.c.l.s4 1983009808
    %v1590 = vunpack.c.0.s8 %v1589
    %v1591 = vlaneseq
    %v1592 = vshrl.u32 %v1591, 7
    %v1593 = vsub.s32 %v1590, %v1592
    %v1594 = vrot.slane %v1586, %v1593
    %v1596 = vunpack.c.l.s4 1983009808
    %v1597 = vunpack.c.0.s8 %v1596
    %v1598 = vlaneseq
    %v1599 = vshrl.u32 %v1598, 7
    %v1600 = vsub.s32 %v1597, %v1599
    %v1601 = vrot.slane %v1587, %v1600
    %v1602 = vcombine.low %v1594, %v1601
    %v1605 = vrot.slane %v1585, 7
    %v1606 = vrot.slane %v1602, 7
    %vm1607 = vcmp.lt.s32.totalorder %v176, 1
    %v1608 = vsel %vm1607, %v1605, %v1606
    %v1609 = vsel %vm1607, %v1606, %v1605
    %v1610 = vsel %vm1559, 0.0, %v1609
    %v1611 = vsel %vm1560, 0.0, %v1608
    %vm1612 = vcmp.eq.s32.totalorder %v1557, 7
    %vm1613 = vcmp.eq.s32.totalorder %v1558, 7
    %v1614 = vrot.slane %v1585, 1
    %v1615 = vrot.slane %v1602, 1
    %vm1616 = vcmp.lt.s32.totalorder %v176, 7
    %v1617 = vsel %vm1616, %v1614, %v1615
    %v1618 = vsel %vm1616, %v1615, %v1614
    %v1619 = vsel %vm1612, 0.0, %v1617
    %v1620 = vsel %vm1613, 0.0, %v1618
    %v1621 = vpack.c.bf16 %v1602, %v1585
    %v1622 = vpack.c.bf16 %v1611, %v1610
    %v1623 = vpack.c.bf16 %v1620, %v1619
    %s1624 = scalar_lea.vmem [#allocation7], 512
    %v1625 = vld [vmem:[%s1624] sm:$0xf]
    %v1626 = vld [vmem:[%s1624 + $0x4] sm:$0xf]
    %v1627 = vld [vmem:[%s1624 + $0x8] sm:$0xf]
    %v1628 = vld [vmem:[%s1624 + $0xc] sm:$0xf]
    %v1629 = vld [vmem:[%s1624 + $0x10] sm:$0xf]
    %v1630 = vld [vmem:[%s1624 + $0x14] sm:$0xf]
    %v1631 = vld [vmem:[%s1624 + $0x18] sm:$0xf]
    %v1632 = vld [vmem:[%s1624 + $0x1c] sm:$0xf]
    %v1633 = vld [vmem:[%s1624 + $0x20] sm:$0xf]
    %v1634 = vld [vmem:[%s1624 + $0x24] sm:$0xf]
    %v1635 = vld [vmem:[%s1624 + $0x28] sm:$0xf]
    %v1636 = vld [vmem:[%s1624 + $0x2c] sm:$0xf]
    %v1637 = vld [vmem:[%s1624 + $0x30] sm:$0xf]
    %v1638 = vld [vmem:[%s1624 + $0x34] sm:$0xf]
    %v1639 = vld [vmem:[%s1624 + $0x38] sm:$0xf]
    %v1640 = vld [vmem:[%s1624 + $0x3c] sm:$0xf]
    %v1641 = vld [vmem:[%s1624 + $0x40] sm:$0xf]
    %v1642 = vld [vmem:[%s1624 + $0x44] sm:$0xf]
    %v1643 = vld [vmem:[%s1624 + $0x48] sm:$0xf]
    %v1644 = vld [vmem:[%s1624 + $0x4c] sm:$0xf]
    %v1645 = vld [vmem:[%s1624 + $0x50] sm:$0xf]
    %v1646 = vld [vmem:[%s1624 + $0x54] sm:$0xf]
    %v1647 = vld [vmem:[%s1624 + $0x58] sm:$0xf]
    %v1648 = vld [vmem:[%s1624 + $0x5c] sm:$0xf]
    %v1649 = vld [vmem:[%s1624 + $0x60] sm:$0xf]
    %v1650 = vld [vmem:[%s1624 + $0x64] sm:$0xf]
    %v1651 = vld [vmem:[%s1624 + $0x68] sm:$0xf]
    %v1652 = vld [vmem:[%s1624 + $0x6c] sm:$0xf]
    %v1653 = vld [vmem:[%s1624 + $0x70] sm:$0xf]
    %v1654 = vld [vmem:[%s1624 + $0x74] sm:$0xf]
    %v1655 = vld [vmem:[%s1624 + $0x78] sm:$0xf]
    %v1656 = vld [vmem:[%s1624 + $0x7c] sm:$0xf]
    %v1689 = vunpack.c.l.b16 %v1625
    %v1690 = vunpack.c.l.b16 %v1626
    %v1691 = vunpack.c.l.b16 %v1627
    %v1692 = vunpack.c.l.b16 %v1628
    %v1693 = vunpack.c.l.b16 %v1629
    %v1694 = vunpack.c.l.b16 %v1630
    %v1695 = vunpack.c.l.b16 %v1631
    %v1696 = vunpack.c.l.b16 %v1632
    %v1697 = vunpack.c.l.b16 %v1633
    %v1698 = vunpack.c.l.b16 %v1634
    %v1699 = vunpack.c.l.b16 %v1635
    %v1700 = vunpack.c.l.b16 %v1636
    %v1701 = vunpack.c.l.b16 %v1637
    %v1702 = vunpack.c.l.b16 %v1638
    %v1703 = vunpack.c.l.b16 %v1639
    %v1704 = vunpack.c.l.b16 %v1640
    %v1705 = vunpack.c.l.b16 %v1641
    %v1706 = vunpack.c.l.b16 %v1642
    %v1707 = vunpack.c.l.b16 %v1643
    %v1708 = vunpack.c.l.b16 %v1644
    %v1709 = vunpack.c.l.b16 %v1645
    %v1710 = vunpack.c.l.b16 %v1646
    %v1711 = vunpack.c.l.b16 %v1647
    %v1712 = vunpack.c.l.b16 %v1648
    %v1713 = vunpack.c.l.b16 %v1649
    %v1714 = vunpack.c.l.b16 %v1650
    %v1715 = vunpack.c.l.b16 %v1651
    %v1716 = vunpack.c.l.b16 %v1652
    %v1717 = vunpack.c.l.b16 %v1653
    %v1718 = vunpack.c.l.b16 %v1654
    %v1719 = vunpack.c.l.b16 %v1655
    %v1720 = vunpack.c.l.b16 %v1656
    %v1721 = vpack.c.b16 %v1690, %v1689
    %v1722 = vpack.c.b16 %v1692, %v1691
    %v1723 = vpack.c.b16 %v1694, %v1693
    %v1724 = vpack.c.b16 %v1696, %v1695
    %v1725 = vpack.c.b16 %v1698, %v1697
    %v1726 = vpack.c.b16 %v1700, %v1699
    %v1727 = vpack.c.b16 %v1702, %v1701
    %v1728 = vpack.c.b16 %v1704, %v1703
    %v1729 = vpack.c.b16 %v1706, %v1705
    %v1730 = vpack.c.b16 %v1708, %v1707
    %v1731 = vpack.c.b16 %v1710, %v1709
    %v1732 = vpack.c.b16 %v1712, %v1711
    %v1733 = vpack.c.b16 %v1714, %v1713
    %v1734 = vpack.c.b16 %v1716, %v1715
    %v1735 = vpack.c.b16 %v1718, %v1717
    %v1736 = vpack.c.b16 %v1720, %v1719
    %1753 = vmatprep.subr.bf16.mxu0 0
    %1754 = vmatpush1.bf16.msra.mxu0 %v1728
    %1755 = vmatprep.subr.bf16.mxu0 0
    %1756 = vmatpush1.bf16.msra.mxu0 %v1727
    %1757 = vmatprep.subr.bf16.mxu0 0
    %1758 = vmatpush1.bf16.msra.mxu0 %v1726
    %1759 = vmatprep.subr.bf16.mxu0 0
    %1760 = vmatpush1.bf16.msra.mxu0 %v1725
    %1761 = vmatprep.subr.bf16.mxu0 0
    %1762 = vmatpush1.bf16.msra.mxu0 %v1724
    %1763 = vmatprep.subr.bf16.mxu0 0
    %1764 = vmatpush1.bf16.msra.mxu0 %v1723
    %1765 = vmatprep.subr.bf16.mxu0 0
    %1766 = vmatpush1.bf16.msra.mxu0 %v1722
    %1767 = vmatprep.subr.bf16.mxu0 0
    %1768 = vmatpush1.bf16.msra.mxu0 %v1721
    %1769 = vmatprep.subr.bf16.mxu0 0
    %1770 = vmatpush2.bf16.msra.mxu0 %v1736
    %1771 = vmatprep.subr.bf16.mxu0 0
    %1772 = vmatpush2.bf16.msra.mxu0 %v1735
    %1773 = vmatprep.subr.bf16.mxu0 0
    %1774 = vmatpush2.bf16.msra.mxu0 %v1734
    %1775 = vmatprep.subr.bf16.mxu0 0
    %1776 = vmatpush2.bf16.msra.mxu0 %v1733
    %1777 = vmatprep.subr.bf16.mxu0 0
    %1778 = vmatpush2.bf16.msra.mxu0 %v1732
    %1779 = vmatprep.subr.bf16.mxu0 0
    %1780 = vmatpush2.bf16.msra.mxu0 %v1731
    %1781 = vmatprep.subr.bf16.mxu0 0
    %1782 = vmatpush2.bf16.msra.mxu0 %v1730
    %1783 = vmatprep.subr.bf16.mxu0 0
    %1784 = vmatpush2.bf16.msra.mxu0 %v1729
    %1785 = vmatprep.mubr.bf16.mxu0 %v1621
    %1786 = vmatmul.mubr.bf16.gmra.mxu0 %v1622
    %v1787 = vpop.f32.mrf.mxu0
    %v1788 = vadd.f32 0.0, %v1787
    %v1789 = vpop.f32.mrf.mxu0
    %v1790 = vpop.f32.mrf.mxu0
    %v1791 = vadd.f32 0.0, %v1790
    %v1792 = vpop.f32.mrf.mxu0
    %1793 = vdwg.mxu0
    %s1794 = scalar_lea.vmem [#allocation7], 640
    %v1795 = vld [vmem:[%s1794] sm:$0xf]
    %v1796 = vld [vmem:[%s1794 + $0x4] sm:$0xf]
    %v1797 = vld [vmem:[%s1794 + $0x8] sm:$0xf]
    %v1798 = vld [vmem:[%s1794 + $0xc] sm:$0xf]
    %v1799 = vld [vmem:[%s1794 + $0x10] sm:$0xf]
    %v1800 = vld [vmem:[%s1794 + $0x14] sm:$0xf]
    %v1801 = vld [vmem:[%s1794 + $0x18] sm:$0xf]
    %v1802 = vld [vmem:[%s1794 + $0x1c] sm:$0xf]
    %v1803 = vld [vmem:[%s1794 + $0x20] sm:$0xf]
    %v1804 = vld [vmem:[%s1794 + $0x24] sm:$0xf]
    %v1805 = vld [vmem:[%s1794 + $0x28] sm:$0xf]
    %v1806 = vld [vmem:[%s1794 + $0x2c] sm:$0xf]
    %v1807 = vld [vmem:[%s1794 + $0x30] sm:$0xf]
    %v1808 = vld [vmem:[%s1794 + $0x34] sm:$0xf]
    %v1809 = vld [vmem:[%s1794 + $0x38] sm:$0xf]
    %v1810 = vld [vmem:[%s1794 + $0x3c] sm:$0xf]
    %v1811 = vld [vmem:[%s1794 + $0x40] sm:$0xf]
    %v1812 = vld [vmem:[%s1794 + $0x44] sm:$0xf]
    %v1813 = vld [vmem:[%s1794 + $0x48] sm:$0xf]
    %v1814 = vld [vmem:[%s1794 + $0x4c] sm:$0xf]
    %v1815 = vld [vmem:[%s1794 + $0x50] sm:$0xf]
    %v1816 = vld [vmem:[%s1794 + $0x54] sm:$0xf]
    %v1817 = vld [vmem:[%s1794 + $0x58] sm:$0xf]
    %v1818 = vld [vmem:[%s1794 + $0x5c] sm:$0xf]
    %v1819 = vld [vmem:[%s1794 + $0x60] sm:$0xf]
    %v1820 = vld [vmem:[%s1794 + $0x64] sm:$0xf]
    %v1821 = vld [vmem:[%s1794 + $0x68] sm:$0xf]
    %v1822 = vld [vmem:[%s1794 + $0x6c] sm:$0xf]
    %v1823 = vld [vmem:[%s1794 + $0x70] sm:$0xf]
    %v1824 = vld [vmem:[%s1794 + $0x74] sm:$0xf]
    %v1825 = vld [vmem:[%s1794 + $0x78] sm:$0xf]
    %v1826 = vld [vmem:[%s1794 + $0x7c] sm:$0xf]
    %v1859 = vunpack.c.l.b16 %v1795
    %v1860 = vunpack.c.l.b16 %v1796
    %v1861 = vunpack.c.l.b16 %v1797
    %v1862 = vunpack.c.l.b16 %v1798
    %v1863 = vunpack.c.l.b16 %v1799
    %v1864 = vunpack.c.l.b16 %v1800
    %v1865 = vunpack.c.l.b16 %v1801
    %v1866 = vunpack.c.l.b16 %v1802
    %v1867 = vunpack.c.l.b16 %v1803
    %v1868 = vunpack.c.l.b16 %v1804
    %v1869 = vunpack.c.l.b16 %v1805
    %v1870 = vunpack.c.l.b16 %v1806
    %v1871 = vunpack.c.l.b16 %v1807
    %v1872 = vunpack.c.l.b16 %v1808
    %v1873 = vunpack.c.l.b16 %v1809
    %v1874 = vunpack.c.l.b16 %v1810
    %v1875 = vunpack.c.l.b16 %v1811
    %v1876 = vunpack.c.l.b16 %v1812
    %v1877 = vunpack.c.l.b16 %v1813
    %v1878 = vunpack.c.l.b16 %v1814
    %v1879 = vunpack.c.l.b16 %v1815
    %v1880 = vunpack.c.l.b16 %v1816
    %v1881 = vunpack.c.l.b16 %v1817
    %v1882 = vunpack.c.l.b16 %v1818
    %v1883 = vunpack.c.l.b16 %v1819
    %v1884 = vunpack.c.l.b16 %v1820
    %v1885 = vunpack.c.l.b16 %v1821
    %v1886 = vunpack.c.l.b16 %v1822
    %v1887 = vunpack.c.l.b16 %v1823
    %v1888 = vunpack.c.l.b16 %v1824
    %v1889 = vunpack.c.l.b16 %v1825
    %v1890 = vunpack.c.l.b16 %v1826
    %v1891 = vpack.c.b16 %v1860, %v1859
    %v1892 = vpack.c.b16 %v1862, %v1861
    %v1893 = vpack.c.b16 %v1864, %v1863
    %v1894 = vpack.c.b16 %v1866, %v1865
    %v1895 = vpack.c.b16 %v1868, %v1867
    %v1896 = vpack.c.b16 %v1870, %v1869
    %v1897 = vpack.c.b16 %v1872, %v1871
    %v1898 = vpack.c.b16 %v1874, %v1873
    %v1899 = vpack.c.b16 %v1876, %v1875
    %v1900 = vpack.c.b16 %v1878, %v1877
    %v1901 = vpack.c.b16 %v1880, %v1879
    %v1902 = vpack.c.b16 %v1882, %v1881
    %v1903 = vpack.c.b16 %v1884, %v1883
    %v1904 = vpack.c.b16 %v1886, %v1885
    %v1905 = vpack.c.b16 %v1888, %v1887
    %v1906 = vpack.c.b16 %v1890, %v1889
    %1923 = vmatprep.subr.bf16.mxu0 0
    %1924 = vmatpush1.bf16.msra.mxu0 %v1898
    %1925 = vmatprep.subr.bf16.mxu0 0
    %1926 = vmatpush1.bf16.msra.mxu0 %v1897
    %1927 = vmatprep.subr.bf16.mxu0 0
    %1928 = vmatpush1.bf16.msra.mxu0 %v1896
    %1929 = vmatprep.subr.bf16.mxu0 0
    %1930 = vmatpush1.bf16.msra.mxu0 %v1895
    %1931 = vmatprep.subr.bf16.mxu0 0
    %1932 = vmatpush1.bf16.msra.mxu0 %v1894
    %1933 = vmatprep.subr.bf16.mxu0 0
    %1934 = vmatpush1.bf16.msra.mxu0 %v1893
    %1935 = vmatprep.subr.bf16.mxu0 0
    %1936 = vmatpush1.bf16.msra.mxu0 %v1892
    %1937 = vmatprep.subr.bf16.mxu0 0
    %1938 = vmatpush1.bf16.msra.mxu0 %v1891
    %1939 = vmatprep.subr.bf16.mxu0 0
    %1940 = vmatpush2.bf16.msra.mxu0 %v1906
    %1941 = vmatprep.subr.bf16.mxu0 0
    %1942 = vmatpush2.bf16.msra.mxu0 %v1905
    %1943 = vmatprep.subr.bf16.mxu0 0
    %1944 = vmatpush2.bf16.msra.mxu0 %v1904
    %1945 = vmatprep.subr.bf16.mxu0 0
    %1946 = vmatpush2.bf16.msra.mxu0 %v1903
    %1947 = vmatprep.subr.bf16.mxu0 0
    %1948 = vmatpush2.bf16.msra.mxu0 %v1902
    %1949 = vmatprep.subr.bf16.mxu0 0
    %1950 = vmatpush2.bf16.msra.mxu0 %v1901
    %1951 = vmatprep.subr.bf16.mxu0 0
    %1952 = vmatpush2.bf16.msra.mxu0 %v1900
    %1953 = vmatprep.subr.bf16.mxu0 0
    %1954 = vmatpush2.bf16.msra.mxu0 %v1899
    %1955 = vmatprep.mubr.bf16.mxu0 %v1623
    %1956 = vmatmul.mubr.bf16.gmra.mxu0 %v1621
    %v1957 = vpop.f32.mrf.mxu0
    %v1958 = vadd.f32 0.0, %v1957
    %v1959 = vpop.f32.mrf.mxu0
    %v1960 = vpop.f32.mrf.mxu0
    %v1961 = vadd.f32 0.0, %v1960
    %v1962 = vpop.f32.mrf.mxu0
    %1963 = vdwg.mxu0
    %v1966 = vcombine.high %v1788, %v1788
    %v1968 = vunpack.c.l.s4 1966171168
    %v1969 = vunpack.c.0.s8 %v1968
    %v1970 = vlaneseq
    %v1971 = vshrl.u32 %v1970, 7
    %v1972 = vsub.s32 %v1969, %v1971
    %v1973 = vrot.slane %v1788, %v1972
    %v1975 = vunpack.c.l.s4 1966171168
    %v1976 = vunpack.c.0.s8 %v1975
    %v1977 = vlaneseq
    %v1978 = vshrl.u32 %v1977, 7
    %v1979 = vsub.s32 %v1976, %v1978
    %v1980 = vrot.slane %v1966, %v1979
    %v1981 = vcombine.high %v1973, %v1973
    %v1982 = vcombine.high %v1980, %v1980
    %v1984 = vunpack.c.l.s4 1966171168
    %v1985 = vunpack.c.0.s8 %v1984
    %v1986 = vlaneseq
    %v1987 = vshrl.u32 %v1986, 7
    %v1988 = vsub.s32 %v1985, %v1987
    %v1989 = vrot.slane %v1973, %v1988
    %v1991 = vunpack.c.l.s4 1966171168
    %v1992 = vunpack.c.0.s8 %v1991
    %v1993 = vlaneseq
    %v1994 = vshrl.u32 %v1993, 7
    %v1995 = vsub.s32 %v1992, %v1994
    %v1996 = vrot.slane %v1980, %v1995
    %v1998 = vunpack.c.l.s4 1966171168
    %v1999 = vunpack.c.0.s8 %v1998
    %v2000 = vlaneseq
    %v2001 = vshrl.u32 %v2000, 7
    %v2002 = vsub.s32 %v1999, %v2001
    %v2003 = vrot.slane %v1981, %v2002
    %v2005 = vunpack.c.l.s4 1966171168
    %v2006 = vunpack.c.0.s8 %v2005
    %v2007 = vlaneseq
    %v2008 = vshrl.u32 %v2007, 7
    %v2009 = vsub.s32 %v2006, %v2008
    %v2010 = vrot.slane %v1982, %v2009
    %v2011 = vcombine.high %v1989, %v1989
    %v2012 = vcombine.high %v1996, %v1996
    %v2013 = vcombine.high %v2003, %v2003
    %v2014 = vcombine.high %v2010, %v2010
    %v2015 = vcombine.high %v1791, %v1791
    %v2017 = vunpack.c.l.s4 1966171168
    %v2018 = vunpack.c.0.s8 %v2017
    %v2019 = vlaneseq
    %v2020 = vshrl.u32 %v2019, 7
    %v2021 = vsub.s32 %v2018, %v2020
    %v2022 = vrot.slane %v1791, %v2021
    %v2024 = vunpack.c.l.s4 1966171168
    %v2025 = vunpack.c.0.s8 %v2024
    %v2026 = vlaneseq
    %v2027 = vshrl.u32 %v2026, 7
    %v2028 = vsub.s32 %v2025, %v2027
    %v2029 = vrot.slane %v2015, %v2028
    %v2030 = vcombine.high %v2022, %v2022
    %v2031 = vcombine.high %v2029, %v2029
    %v2033 = vunpack.c.l.s4 1966171168
    %v2034 = vunpack.c.0.s8 %v2033
    %v2035 = vlaneseq
    %v2036 = vshrl.u32 %v2035, 7
    %v2037 = vsub.s32 %v2034, %v2036
    %v2038 = vrot.slane %v2022, %v2037
    %v2040 = vunpack.c.l.s4 1966171168
    %v2041 = vunpack.c.0.s8 %v2040
    %v2042 = vlaneseq
    %v2043 = vshrl.u32 %v2042, 7
    %v2044 = vsub.s32 %v2041, %v2043
    %v2045 = vrot.slane %v2029, %v2044
    %v2047 = vunpack.c.l.s4 1966171168
    %v2048 = vunpack.c.0.s8 %v2047
    %v2049 = vlaneseq
    %v2050 = vshrl.u32 %v2049, 7
    %v2051 = vsub.s32 %v2048, %v2050
    %v2052 = vrot.slane %v2030, %v2051
    %v2054 = vunpack.c.l.s4 1966171168
    %v2055 = vunpack.c.0.s8 %v2054
    %v2056 = vlaneseq
    %v2057 = vshrl.u32 %v2056, 7
    %v2058 = vsub.s32 %v2055, %v2057
    %v2059 = vrot.slane %v2031, %v2058
    %v2060 = vcombine.high %v2038, %v2038
    %v2061 = vcombine.high %v2045, %v2045
    %v2062 = vcombine.high %v2052, %v2052
    %v2063 = vcombine.high %v2059, %v2059
    %v2082 = vcombine.high %v1958, %v1958
    %v2084 = vunpack.c.l.s4 1966171168
    %v2085 = vunpack.c.0.s8 %v2084
    %v2086 = vlaneseq
    %v2087 = vshrl.u32 %v2086, 7
    %v2088 = vsub.s32 %v2085, %v2087
    %v2089 = vrot.slane %v1958, %v2088
    %v2091 = vunpack.c.l.s4 1966171168
    %v2092 = vunpack.c.0.s8 %v2091
    %v2093 = vlaneseq
    %v2094 = vshrl.u32 %v2093, 7
    %v2095 = vsub.s32 %v2092, %v2094
    %v2096 = vrot.slane %v2082, %v2095
    %v2097 = vcombine.high %v2089, %v2089
    %v2098 = vcombine.high %v2096, %v2096
    %v2100 = vunpack.c.l.s4 1966171168
    %v2101 = vunpack.c.0.s8 %v2100
    %v2102 = vlaneseq
    %v2103 = vshrl.u32 %v2102, 7
    %v2104 = vsub.s32 %v2101, %v2103
    %v2105 = vrot.slane %v2089, %v2104
    %v2107 = vunpack.c.l.s4 1966171168
    %v2108 = vunpack.c.0.s8 %v2107
    %v2109 = vlaneseq
    %v2110 = vshrl.u32 %v2109, 7
    %v2111 = vsub.s32 %v2108, %v2110
    %v2112 = vrot.slane %v2096, %v2111
    %v2114 = vunpack.c.l.s4 1966171168
    %v2115 = vunpack.c.0.s8 %v2114
    %v2116 = vlaneseq
    %v2117 = vshrl.u32 %v2116, 7
    %v2118 = vsub.s32 %v2115, %v2117
    %v2119 = vrot.slane %v2097, %v2118
    %v2121 = vunpack.c.l.s4 1966171168
    %v2122 = vunpack.c.0.s8 %v2121
    %v2123 = vlaneseq
    %v2124 = vshrl.u32 %v2123, 7
    %v2125 = vsub.s32 %v2122, %v2124
    %v2126 = vrot.slane %v2098, %v2125
    %v2127 = vcombine.high %v2105, %v2105
    %v2128 = vcombine.high %v2112, %v2112
    %v2129 = vcombine.high %v2119, %v2119
    %v2130 = vcombine.high %v2126, %v2126
    %v2131 = vcombine.high %v1961, %v1961
    %v2133 = vunpack.c.l.s4 1966171168
    %v2134 = vunpack.c.0.s8 %v2133
    %v2135 = vlaneseq
    %v2136 = vshrl.u32 %v2135, 7
    %v2137 = vsub.s32 %v2134, %v2136
    %v2138 = vrot.slane %v1961, %v2137
    %v2140 = vunpack.c.l.s4 1966171168
    %v2141 = vunpack.c.0.s8 %v2140
    %v2142 = vlaneseq
    %v2143 = vshrl.u32 %v2142, 7
    %v2144 = vsub.s32 %v2141, %v2143
    %v2145 = vrot.slane %v2131, %v2144
    %v2146 = vcombine.high %v2138, %v2138
    %v2147 = vcombine.high %v2145, %v2145
    %v2149 = vunpack.c.l.s4 1966171168
    %v2150 = vunpack.c.0.s8 %v2149
    %v2151 = vlaneseq
    %v2152 = vshrl.u32 %v2151, 7
    %v2153 = vsub.s32 %v2150, %v2152
    %v2154 = vrot.slane %v2138, %v2153
    %v2156 = vunpack.c.l.s4 1966171168
    %v2157 = vunpack.c.0.s8 %v2156
    %v2158 = vlaneseq
    %v2159 = vshrl.u32 %v2158, 7
    %v2160 = vsub.s32 %v2157, %v2159
    %v2161 = vrot.slane %v2145, %v2160
    %v2163 = vunpack.c.l.s4 1966171168
    %v2164 = vunpack.c.0.s8 %v2163
    %v2165 = vlaneseq
    %v2166 = vshrl.u32 %v2165, 7
    %v2167 = vsub.s32 %v2164, %v2166
    %v2168 = vrot.slane %v2146, %v2167
    %v2170 = vunpack.c.l.s4 1966171168
    %v2171 = vunpack.c.0.s8 %v2170
    %v2172 = vlaneseq
    %v2173 = vshrl.u32 %v2172, 7
    %v2174 = vsub.s32 %v2171, %v2173
    %v2175 = vrot.slane %v2147, %v2174
    %v2176 = vcombine.high %v2154, %v2154
    %v2177 = vcombine.high %v2161, %v2161
    %v2178 = vcombine.high %v2168, %v2168
    %v2179 = vcombine.high %v2175, %v2175
    %v2180 = vlaneseq
    %v2181 = vshrl.u32 %v2180, 7
    %v2182 = vsub.s32 0, %v2181
    %v2183 = vrot.slane %v2105, %v2182
    %v2184 = vlaneseq
    %v2185 = vshrl.u32 %v2184, 7
    %v2186 = vsub.s32 0, %v2185
    %v2187 = vrot.slane %v2119, %v2186
    %v2188 = vlaneseq
    %v2189 = vshrl.u32 %v2188, 7
    %v2190 = vsub.s32 0, %v2189
    %v2191 = vrot.slane %v2127, %v2190
    %v2192 = vlaneseq
    %v2193 = vshrl.u32 %v2192, 7
    %v2194 = vsub.s32 0, %v2193
    %v2195 = vrot.slane %v2129, %v2194
    %v2196 = vlaneseq
    %v2197 = vshrl.u32 %v2196, 7
    %v2198 = vsub.s32 0, %v2197
    %v2199 = vrot.slane %v2112, %v2198
    %v2200 = vlaneseq
    %v2201 = vshrl.u32 %v2200, 7
    %v2202 = vsub.s32 0, %v2201
    %v2203 = vrot.slane %v2126, %v2202
    %v2204 = vlaneseq
    %v2205 = vshrl.u32 %v2204, 7
    %v2206 = vsub.s32 0, %v2205
    %v2207 = vrot.slane %v2128, %v2206
    %v2208 = vlaneseq
    %v2209 = vshrl.u32 %v2208, 7
    %v2210 = vsub.s32 0, %v2209
    %v2211 = vrot.slane %v2130, %v2210
    %v2212 = vlaneseq
    %v2213 = vshrl.u32 %v2212, 7
    %v2214 = vsub.s32 0, %v2213
    %v2215 = vrot.slane %v2154, %v2214
    %v2216 = vlaneseq
    %v2217 = vshrl.u32 %v2216, 7
    %v2218 = vsub.s32 0, %v2217
    %v2219 = vrot.slane %v2168, %v2218
    %v2220 = vlaneseq
    %v2221 = vshrl.u32 %v2220, 7
    %v2222 = vsub.s32 0, %v2221
    %v2223 = vrot.slane %v2176, %v2222
    %v2224 = vlaneseq
    %v2225 = vshrl.u32 %v2224, 7
    %v2226 = vsub.s32 0, %v2225
    %v2227 = vrot.slane %v2178, %v2226
    %v2228 = vlaneseq
    %v2229 = vshrl.u32 %v2228, 7
    %v2230 = vsub.s32 0, %v2229
    %v2231 = vrot.slane %v2161, %v2230
    %v2232 = vlaneseq
    %v2233 = vshrl.u32 %v2232, 7
    %v2234 = vsub.s32 0, %v2233
    %v2235 = vrot.slane %v2175, %v2234
    %v2236 = vlaneseq
    %v2237 = vshrl.u32 %v2236, 7
    %v2238 = vsub.s32 0, %v2237
    %v2239 = vrot.slane %v2177, %v2238
    %v2240 = vlaneseq
    %v2241 = vshrl.u32 %v2240, 7
    %v2242 = vsub.s32 0, %v2241
    %v2243 = vrot.slane %v2179, %v2242
    %v2260 = vsel %vm606, %v1989, %v2183
    %v2261 = vsel %vm606, %v2003, %v2187
    %v2262 = vsel %vm606, %v2011, %v2191
    %v2263 = vsel %vm606, %v2013, %v2195
    %v2264 = vsel %vm606, %v1996, %v2199
    %v2265 = vsel %vm606, %v2010, %v2203
    %v2266 = vsel %vm606, %v2012, %v2207
    %v2267 = vsel %vm606, %v2014, %v2211
    %v2268 = vsel %vm606, %v2038, %v2215
    %v2269 = vsel %vm606, %v2052, %v2219
    %v2270 = vsel %vm606, %v2060, %v2223
    %v2271 = vsel %vm606, %v2062, %v2227
    %v2272 = vsel %vm606, %v2045, %v2231
    %v2273 = vsel %vm606, %v2059, %v2235
    %v2274 = vsel %vm606, %v2061, %v2239
    %v2275 = vsel %vm606, %v2063, %v2243
    %v2292 = vcombine.low %v2260, %v2261
    %v2293 = vcombine.low %v2262, %v2263
    %v2295 = vunpack.c.l.s4 1983009808
    %v2296 = vunpack.c.0.s8 %v2295
    %v2297 = vlaneseq
    %v2298 = vshrl.u32 %v2297, 7
    %v2299 = vsub.s32 %v2296, %v2298
    %v2300 = vrot.slane %v2292, %v2299
    %v2302 = vunpack.c.l.s4 1983009808
    %v2303 = vunpack.c.0.s8 %v2302
    %v2304 = vlaneseq
    %v2305 = vshrl.u32 %v2304, 7
    %v2306 = vsub.s32 %v2303, %v2305
    %v2307 = vrot.slane %v2293, %v2306
    %v2308 = vcombine.low %v2300, %v2307
    %v2309 = vcombine.low %v2264, %v2265
    %v2310 = vcombine.low %v2266, %v2267
    %v2312 = vunpack.c.l.s4 1983009808
    %v2313 = vunpack.c.0.s8 %v2312
    %v2314 = vlaneseq
    %v2315 = vshrl.u32 %v2314, 7
    %v2316 = vsub.s32 %v2313, %v2315
    %v2317 = vrot.slane %v2309, %v2316
    %v2319 = vunpack.c.l.s4 1983009808
    %v2320 = vunpack.c.0.s8 %v2319
    %v2321 = vlaneseq
    %v2322 = vshrl.u32 %v2321, 7
    %v2323 = vsub.s32 %v2320, %v2322
    %v2324 = vrot.slane %v2310, %v2323
    %v2325 = vcombine.low %v2317, %v2324
    %v2326 = vcombine.low %v2268, %v2269
    %v2327 = vcombine.low %v2270, %v2271
    %v2329 = vunpack.c.l.s4 1983009808
    %v2330 = vunpack.c.0.s8 %v2329
    %v2331 = vlaneseq
    %v2332 = vshrl.u32 %v2331, 7
    %v2333 = vsub.s32 %v2330, %v2332
    %v2334 = vrot.slane %v2326, %v2333
    %v2336 = vunpack.c.l.s4 1983009808
    %v2337 = vunpack.c.0.s8 %v2336
    %v2338 = vlaneseq
    %v2339 = vshrl.u32 %v2338, 7
    %v2340 = vsub.s32 %v2337, %v2339
    %v2341 = vrot.slane %v2327, %v2340
    %v2342 = vcombine.low %v2334, %v2341
    %v2343 = vcombine.low %v2272, %v2273
    %v2344 = vcombine.low %v2274, %v2275
    %v2346 = vunpack.c.l.s4 1983009808
    %v2347 = vunpack.c.0.s8 %v2346
    %v2348 = vlaneseq
    %v2349 = vshrl.u32 %v2348, 7
    %v2350 = vsub.s32 %v2347, %v2349
    %v2351 = vrot.slane %v2343, %v2350
    %v2353 = vunpack.c.l.s4 1983009808
    %v2354 = vunpack.c.0.s8 %v2353
    %v2355 = vlaneseq
    %v2356 = vshrl.u32 %v2355, 7
    %v2357 = vsub.s32 %v2354, %v2356
    %v2358 = vrot.slane %v2344, %v2357
    %v2359 = vcombine.low %v2351, %v2358
    %v2364 = vadd.f32 %v2308, %v2325
    %v2365 = vadd.f32 %v2364, %v2342
    %v2366 = vadd.f32 %v2365, %v2359
    %v2367 = vrot.slane %v2366, 4
    %v2368 = vadd.f32 %v2366, %v2367
    %v2369 = vrot.slane %v2368, 2
    %v2370 = vadd.f32 %v2368, %v2369
    %v2371 = vrot.slane %v2370, 1
    %v2372 = vadd.f32 %v2370, %v2371
    %2373 = vrot.lane.b32.xlu0 %v2372, 8
    %v2374 = vpop.permute.xlu0 %2373
    %v2375 = vadd.f32 %v2372, %v2374
    %2376 = vrot.lane.b32.xlu0 %v2375, 16
    %v2377 = vpop.permute.xlu0 %2376
    %v2378 = vadd.f32 %v2375, %v2377
    %2379 = vrot.lane.b32.xlu0 %v2378, 32
    %v2380 = vpop.permute.xlu0 %2379
    %v2381 = vadd.f32 %v2378, %v2380
    %2382 = vrot.lane.b32.xlu0 %v2381, 64
    %v2383 = vpop.permute.xlu0 %2382
    %v2384 = vadd.f32 %v2381, %v2383
    %v2385 = vmul.f32 %v2384, 0.001953125
    %v2386 = vlaneseq
    %v2387 = vshrl.u32 %v2386, 7
    %v2388 = vsub.s32 0, %v2387
    %v2389 = vrot.slane %v2385, %v2388
    %v2391 = vcombine.high %v2389, %v2389
    %v2393 = vunpack.c.l.s4 1983009808
    %v2394 = vunpack.c.0.s8 %v2393
    %v2395 = vlaneseq
    %v2396 = vshrl.u32 %v2395, 7
    %v2397 = vsub.s32 %v2394, %v2396
    %v2398 = vrot.slane %v2389, %v2397
    %v2400 = vunpack.c.l.s4 1983009808
    %v2401 = vunpack.c.0.s8 %v2400
    %v2402 = vlaneseq
    %v2403 = vshrl.u32 %v2402, 7
    %v2404 = vsub.s32 %v2401, %v2403
    %v2405 = vrot.slane %v2391, %v2404
    %v2406 = vcombine.high %v2398, %v2398
    %v2407 = vcombine.high %v2405, %v2405
    %v2412 = vsub.f32 %v2260, %v2398
    %v2413 = vsub.f32 %v2261, %v2406
    %v2414 = vsub.f32 %v2262, %v2405
    %v2415 = vsub.f32 %v2263, %v2407
    %v2416 = vsub.f32 %v2264, %v2398
    %v2417 = vsub.f32 %v2265, %v2406
    %v2418 = vsub.f32 %v2266, %v2405
    %v2419 = vsub.f32 %v2267, %v2407
    %v2420 = vsub.f32 %v2268, %v2398
    %v2421 = vsub.f32 %v2269, %v2406
    %v2422 = vsub.f32 %v2270, %v2405
    %v2423 = vsub.f32 %v2271, %v2407
    %v2424 = vsub.f32 %v2272, %v2398
    %v2425 = vsub.f32 %v2273, %v2406
    %v2426 = vsub.f32 %v2274, %v2405
    %v2427 = vsub.f32 %v2275, %v2407
    %v2428 = vmul.f32 %v2412, %v2412
    %v2429 = vmul.f32 %v2413, %v2413
    %v2430 = vmul.f32 %v2414, %v2414
    %v2431 = vmul.f32 %v2415, %v2415
    %v2432 = vmul.f32 %v2416, %v2416
    %v2433 = vmul.f32 %v2417, %v2417
    %v2434 = vmul.f32 %v2418, %v2418
    %v2435 = vmul.f32 %v2419, %v2419
    %v2436 = vmul.f32 %v2420, %v2420
    %v2437 = vmul.f32 %v2421, %v2421
    %v2438 = vmul.f32 %v2422, %v2422
    %v2439 = vmul.f32 %v2423, %v2423
    %v2440 = vmul.f32 %v2424, %v2424
    %v2441 = vmul.f32 %v2425, %v2425
    %v2442 = vmul.f32 %v2426, %v2426
    %v2443 = vmul.f32 %v2427, %v2427
    %v2460 = vcombine.low %v2428, %v2429
    %v2461 = vcombine.low %v2430, %v2431
    %v2463 = vunpack.c.l.s4 1983009808
    %v2464 = vunpack.c.0.s8 %v2463
    %v2465 = vlaneseq
    %v2466 = vshrl.u32 %v2465, 7
    %v2467 = vsub.s32 %v2464, %v2466
    %v2468 = vrot.slane %v2460, %v2467
    %v2470 = vunpack.c.l.s4 1983009808
    %v2471 = vunpack.c.0.s8 %v2470
    %v2472 = vlaneseq
    %v2473 = vshrl.u32 %v2472, 7
    %v2474 = vsub.s32 %v2471, %v2473
    %v2475 = vrot.slane %v2461, %v2474
    %v2476 = vcombine.low %v2468, %v2475
    %v2477 = vcombine.low %v2432, %v2433
    %v2478 = vcombine.low %v2434, %v2435
    %v2480 = vunpack.c.l.s4 1983009808
    %v2481 = vunpack.c.0.s8 %v2480
    %v2482 = vlaneseq
    %v2483 = vshrl.u32 %v2482, 7
    %v2484 = vsub.s32 %v2481, %v2483
    %v2485 = vrot.slane %v2477, %v2484
    %v2487 = vunpack.c.l.s4 1983009808
    %v2488 = vunpack.c.0.s8 %v2487
    %v2489 = vlaneseq
    %v2490 = vshrl.u32 %v2489, 7
    %v2491 = vsub.s32 %v2488, %v2490
    %v2492 = vrot.slane %v2478, %v2491
    %v2493 = vcombine.low %v2485, %v2492
    %v2494 = vcombine.low %v2436, %v2437
    %v2495 = vcombine.low %v2438, %v2439
    %v2497 = vunpack.c.l.s4 1983009808
    %v2498 = vunpack.c.0.s8 %v2497
    %v2499 = vlaneseq
    %v2500 = vshrl.u32 %v2499, 7
    %v2501 = vsub.s32 %v2498, %v2500
    %v2502 = vrot.slane %v2494, %v2501
    %v2504 = vunpack.c.l.s4 1983009808
    %v2505 = vunpack.c.0.s8 %v2504
    %v2506 = vlaneseq
    %v2507 = vshrl.u32 %v2506, 7
    %v2508 = vsub.s32 %v2505, %v2507
    %v2509 = vrot.slane %v2495, %v2508
    %v2510 = vcombine.low %v2502, %v2509
    %v2511 = vcombine.low %v2440, %v2441
    %v2512 = vcombine.low %v2442, %v2443
    %v2514 = vunpack.c.l.s4 1983009808
    %v2515 = vunpack.c.0.s8 %v2514
    %v2516 = vlaneseq
    %v2517 = vshrl.u32 %v2516, 7
    %v2518 = vsub.s32 %v2515, %v2517
    %v2519 = vrot.slane %v2511, %v2518
    %v2521 = vunpack.c.l.s4 1983009808
    %v2522 = vunpack.c.0.s8 %v2521
    %v2523 = vlaneseq
    %v2524 = vshrl.u32 %v2523, 7
    %v2525 = vsub.s32 %v2522, %v2524
    %v2526 = vrot.slane %v2512, %v2525
    %v2527 = vcombine.low %v2519, %v2526
    %v2532 = vadd.f32 %v2476, %v2493
    %v2533 = vadd.f32 %v2532, %v2510
    %v2534 = vadd.f32 %v2533, %v2527
    %v2535 = vrot.slane %v2534, 4
    %v2536 = vadd.f32 %v2534, %v2535
    %v2537 = vrot.slane %v2536, 2
    %v2538 = vadd.f32 %v2536, %v2537
    %v2539 = vrot.slane %v2538, 1
    %v2540 = vadd.f32 %v2538, %v2539
    %2541 = vrot.lane.b32.xlu0 %v2540, 8
    %v2542 = vpop.permute.xlu0 %2541
    %v2543 = vadd.f32 %v2540, %v2542
    %2544 = vrot.lane.b32.xlu0 %v2543, 16
    %v2545 = vpop.permute.xlu0 %2544
    %v2546 = vadd.f32 %v2543, %v2545
    %2547 = vrot.lane.b32.xlu0 %v2546, 32
    %v2548 = vpop.permute.xlu0 %2547
    %v2549 = vadd.f32 %v2546, %v2548
    %2550 = vrot.lane.b32.xlu0 %v2549, 64
    %v2551 = vpop.permute.xlu0 %2550
    %v2552 = vadd.f32 %v2549, %v2551
    %v2553 = vmul.f32 %v2552, 0.001953125
    %v2554 = vadd.f32 %v2553, 1e-05
    %v2555 = vrsqrt.pop %v2554
    %v2556 = vrot.slane %v131, 6
    %v2558 = vmul.f32 %v2555, %v2556
    %v2559 = vlaneseq
    %v2560 = vshrl.u32 %v2559, 7
    %v2561 = vsub.s32 0, %v2560
    %v2562 = vrot.slane %v2558, %v2561
    %v2564 = vcombine.high %v2562, %v2562
    %v2566 = vunpack.c.l.s4 1983009808
    %v2567 = vunpack.c.0.s8 %v2566
    %v2568 = vlaneseq
    %v2569 = vshrl.u32 %v2568, 7
    %v2570 = vsub.s32 %v2567, %v2569
    %v2571 = vrot.slane %v2562, %v2570
    %v2573 = vunpack.c.l.s4 1983009808
    %v2574 = vunpack.c.0.s8 %v2573
    %v2575 = vlaneseq
    %v2576 = vshrl.u32 %v2575, 7
    %v2577 = vsub.s32 %v2574, %v2576
    %v2578 = vrot.slane %v2564, %v2577
    %v2579 = vcombine.high %v2571, %v2571
    %v2580 = vcombine.high %v2578, %v2578
    %v2585 = vmul.f32 %v2412, %v2571
    %v2586 = vmul.f32 %v2413, %v2579
    %v2587 = vmul.f32 %v2414, %v2578
    %v2588 = vmul.f32 %v2415, %v2580
    %v2589 = vmul.f32 %v2416, %v2571
    %v2590 = vmul.f32 %v2417, %v2579
    %v2591 = vmul.f32 %v2418, %v2578
    %v2592 = vmul.f32 %v2419, %v2580
    %v2593 = vmul.f32 %v2420, %v2571
    %v2594 = vmul.f32 %v2421, %v2579
    %v2595 = vmul.f32 %v2422, %v2578
    %v2596 = vmul.f32 %v2423, %v2580
    %v2597 = vmul.f32 %v2424, %v2571
    %v2598 = vmul.f32 %v2425, %v2579
    %v2599 = vmul.f32 %v2426, %v2578
    %v2600 = vmul.f32 %v2427, %v2580
    %v2601 = vlaneseq
    %v2602 = vshrl.u32 %v2601, 7
    %v2603 = vsub.s32 7, %v2602
    %v2604 = vrot.slane %v131, %v2603
    %v2606 = vcombine.high %v2604, %v2604
    %v2608 = vunpack.c.l.s4 1983009808
    %v2609 = vunpack.c.0.s8 %v2608
    %v2610 = vlaneseq
    %v2611 = vshrl.u32 %v2610, 7
    %v2612 = vsub.s32 %v2609, %v2611
    %v2613 = vrot.slane %v2604, %v2612
    %v2615 = vunpack.c.l.s4 1983009808
    %v2616 = vunpack.c.0.s8 %v2615
    %v2617 = vlaneseq
    %v2618 = vshrl.u32 %v2617, 7
    %v2619 = vsub.s32 %v2616, %v2618
    %v2620 = vrot.slane %v2606, %v2619
    %v2621 = vcombine.high %v2613, %v2613
    %v2622 = vcombine.high %v2620, %v2620
    %v2627 = vadd.f32 %v2585, %v2613
    %v2628 = vadd.f32 %v2586, %v2621
    %v2629 = vadd.f32 %v2587, %v2620
    %v2630 = vadd.f32 %v2588, %v2622
    %v2631 = vadd.f32 %v2589, %v2613
    %v2632 = vadd.f32 %v2590, %v2621
    %v2633 = vadd.f32 %v2591, %v2620
    %v2634 = vadd.f32 %v2592, %v2622
    %v2635 = vadd.f32 %v2593, %v2613
    %v2636 = vadd.f32 %v2594, %v2621
    %v2637 = vadd.f32 %v2595, %v2620
    %v2638 = vadd.f32 %v2596, %v2622
    %v2639 = vadd.f32 %v2597, %v2613
    %v2640 = vadd.f32 %v2598, %v2621
    %v2641 = vadd.f32 %v2599, %v2620
    %v2642 = vadd.f32 %v2600, %v2622
    %v2643 = vmax.f32 %v2627, 0.0
    %v2644 = vmax.f32 %v2628, 0.0
    %v2645 = vmax.f32 %v2629, 0.0
    %v2646 = vmax.f32 %v2630, 0.0
    %v2647 = vmax.f32 %v2631, 0.0
    %v2648 = vmax.f32 %v2632, 0.0
    %v2649 = vmax.f32 %v2633, 0.0
    %v2650 = vmax.f32 %v2634, 0.0
    %v2651 = vmax.f32 %v2635, 0.0
    %v2652 = vmax.f32 %v2636, 0.0
    %v2653 = vmax.f32 %v2637, 0.0
    %v2654 = vmax.f32 %v2638, 0.0
    %v2655 = vmax.f32 %v2639, 0.0
    %v2656 = vmax.f32 %v2640, 0.0
    %v2657 = vmax.f32 %v2641, 0.0
    %v2658 = vmax.f32 %v2642, 0.0
    %v2659 = vadd.s32 %v176, 16
    %v2660 = vadd.s32 %v176, 24
    %v2661 = vand.u32 %v176, 15
    %v2662 = vand.u32 %v1556, 15
    %v2663 = vand.u32 %v2659, 15
    %v2664 = vand.u32 %v2660, 15
    %vm2665 = vcmp.eq.s32.totalorder %v2661, 0
    %vm2666 = vcmp.eq.s32.totalorder %v2662, 0
    %vm2667 = vcmp.eq.s32.totalorder %v2663, 0
    %vm2668 = vcmp.eq.s32.totalorder %v2664, 0
    %v2685 = vcombine.low %v2643, %v2644
    %v2686 = vcombine.low %v2645, %v2646
    %v2688 = vunpack.c.l.s4 1983009808
    %v2689 = vunpack.c.0.s8 %v2688
    %v2690 = vlaneseq
    %v2691 = vshrl.u32 %v2690, 7
    %v2692 = vsub.s32 %v2689, %v2691
    %v2693 = vrot.slane %v2685, %v2692
    %v2695 = vunpack.c.l.s4 1983009808
    %v2696 = vunpack.c.0.s8 %v2695
    %v2697 = vlaneseq
    %v2698 = vshrl.u32 %v2697, 7
    %v2699 = vsub.s32 %v2696, %v2698
    %v2700 = vrot.slane %v2686, %v2699
    %v2701 = vcombine.low %v2693, %v2700
    %v2702 = vcombine.low %v2647, %v2648
    %v2703 = vcombine.low %v2649, %v2650
    %v2705 = vunpack.c.l.s4 1983009808
    %v2706 = vunpack.c.0.s8 %v2705
    %v2707 = vlaneseq
    %v2708 = vshrl.u32 %v2707, 7
    %v2709 = vsub.s32 %v2706, %v2708
    %v2710 = vrot.slane %v2702, %v2709
    %v2712 = vunpack.c.l.s4 1983009808
    %v2713 = vunpack.c.0.s8 %v2712
    %v2714 = vlaneseq
    %v2715 = vshrl.u32 %v2714, 7
    %v2716 = vsub.s32 %v2713, %v2715
    %v2717 = vrot.slane %v2703, %v2716
    %v2718 = vcombine.low %v2710, %v2717
    %v2719 = vcombine.low %v2651, %v2652
    %v2720 = vcombine.low %v2653, %v2654
    %v2722 = vunpack.c.l.s4 1983009808
    %v2723 = vunpack.c.0.s8 %v2722
    %v2724 = vlaneseq
    %v2725 = vshrl.u32 %v2724, 7
    %v2726 = vsub.s32 %v2723, %v2725
    %v2727 = vrot.slane %v2719, %v2726
    %v2729 = vunpack.c.l.s4 1983009808
    %v2730 = vunpack.c.0.s8 %v2729
    %v2731 = vlaneseq
    %v2732 = vshrl.u32 %v2731, 7
    %v2733 = vsub.s32 %v2730, %v2732
    %v2734 = vrot.slane %v2720, %v2733
    %v2735 = vcombine.low %v2727, %v2734
    %v2736 = vcombine.low %v2655, %v2656
    %v2737 = vcombine.low %v2657, %v2658
    %v2739 = vunpack.c.l.s4 1983009808
    %v2740 = vunpack.c.0.s8 %v2739
    %v2741 = vlaneseq
    %v2742 = vshrl.u32 %v2741, 7
    %v2743 = vsub.s32 %v2740, %v2742
    %v2744 = vrot.slane %v2736, %v2743
    %v2746 = vunpack.c.l.s4 1983009808
    %v2747 = vunpack.c.0.s8 %v2746
    %v2748 = vlaneseq
    %v2749 = vshrl.u32 %v2748, 7
    %v2750 = vsub.s32 %v2747, %v2749
    %v2751 = vrot.slane %v2737, %v2750
    %v2752 = vcombine.low %v2744, %v2751
    %v2757 = vrot.slane %v2701, 7
    %v2758 = vrot.slane %v2718, 7
    %v2759 = vrot.slane %v2735, 7
    %v2760 = vrot.slane %v2752, 7
    %v2761 = vsel %vm1607, %v2759, %v2760
    %v2762 = vsel %vm1607, %v2758, %v2759
    %v2763 = vsel %vm1607, %v2757, %v2758
    %v2764 = vsel %vm1607, %v2760, %v2757
    %v2765 = vsel %vm2665, 0.0, %v2764
    %v2766 = vsel %vm2666, 0.0, %v2763
    %v2767 = vsel %vm2667, 0.0, %v2762
    %v2768 = vsel %vm2668, 0.0, %v2761
    %vm2769 = vcmp.eq.s32.totalorder %v2661, 15
    %vm2770 = vcmp.eq.s32.totalorder %v2662, 15
    %vm2771 = vcmp.eq.s32.totalorder %v2663, 15
    %vm2772 = vcmp.eq.s32.totalorder %v2664, 15
    %v2773 = vrot.slane %v2701, 1
    %v2774 = vrot.slane %v2718, 1
    %v2775 = vrot.slane %v2735, 1
    %v2776 = vrot.slane %v2752, 1
    %v2777 = vsel %vm1616, %v2775, %v2776
    %v2778 = vsel %vm1616, %v2774, %v2775
    %v2779 = vsel %vm1616, %v2773, %v2774
    %v2780 = vsel %vm1616, %v2776, %v2773
    %v2781 = vsel %vm2769, 0.0, %v2779
    %v2782 = vsel %vm2770, 0.0, %v2778
    %v2783 = vsel %vm2771, 0.0, %v2777
    %v2784 = vsel %vm2772, 0.0, %v2780
    %v2785 = vpack.c.bf16 %v2718, %v2701
    %v2786 = vpack.c.bf16 %v2752, %v2735
    %v2787 = vpack.c.bf16 %v2766, %v2765
    %v2788 = vpack.c.bf16 %v2768, %v2767
    %v2789 = vpack.c.bf16 %v2782, %v2781
    %v2790 = vpack.c.bf16 %v2784, %v2783
    %s2791 = scalar_lea.vmem [#allocation7], 768
    %v2792 = vld [vmem:[%s2791] sm:$0xf]
    %v2793 = vld [vmem:[%s2791 + $0x4] sm:$0xf]
    %v2794 = vld [vmem:[%s2791 + $0x8] sm:$0xf]
    %v2795 = vld [vmem:[%s2791 + $0xc] sm:$0xf]
    %v2796 = vld [vmem:[%s2791 + $0x10] sm:$0xf]
    %v2797 = vld [vmem:[%s2791 + $0x14] sm:$0xf]
    %v2798 = vld [vmem:[%s2791 + $0x18] sm:$0xf]
    %v2799 = vld [vmem:[%s2791 + $0x1c] sm:$0xf]
    %v2800 = vld [vmem:[%s2791 + $0x20] sm:$0xf]
    %v2801 = vld [vmem:[%s2791 + $0x24] sm:$0xf]
    %v2802 = vld [vmem:[%s2791 + $0x28] sm:$0xf]
    %v2803 = vld [vmem:[%s2791 + $0x2c] sm:$0xf]
    %v2804 = vld [vmem:[%s2791 + $0x30] sm:$0xf]
    %v2805 = vld [vmem:[%s2791 + $0x34] sm:$0xf]
    %v2806 = vld [vmem:[%s2791 + $0x38] sm:$0xf]
    %v2807 = vld [vmem:[%s2791 + $0x3c] sm:$0xf]
    %v2808 = vld [vmem:[%s2791 + $0x40] sm:$0xf]
    %v2809 = vld [vmem:[%s2791 + $0x44] sm:$0xf]
    %v2810 = vld [vmem:[%s2791 + $0x48] sm:$0xf]
    %v2811 = vld [vmem:[%s2791 + $0x4c] sm:$0xf]
    %v2812 = vld [vmem:[%s2791 + $0x50] sm:$0xf]
    %v2813 = vld [vmem:[%s2791 + $0x54] sm:$0xf]
    %v2814 = vld [vmem:[%s2791 + $0x58] sm:$0xf]
    %v2815 = vld [vmem:[%s2791 + $0x5c] sm:$0xf]
    %v2816 = vld [vmem:[%s2791 + $0x60] sm:$0xf]
    %v2817 = vld [vmem:[%s2791 + $0x64] sm:$0xf]
    %v2818 = vld [vmem:[%s2791 + $0x68] sm:$0xf]
    %v2819 = vld [vmem:[%s2791 + $0x6c] sm:$0xf]
    %v2820 = vld [vmem:[%s2791 + $0x70] sm:$0xf]
    %v2821 = vld [vmem:[%s2791 + $0x74] sm:$0xf]
    %v2822 = vld [vmem:[%s2791 + $0x78] sm:$0xf]
    %v2823 = vld [vmem:[%s2791 + $0x7c] sm:$0xf]
    %v2856 = vunpack.c.l.b16 %v2792
    %v2857 = vunpack.c.l.b16 %v2793
    %v2858 = vunpack.c.l.b16 %v2794
    %v2859 = vunpack.c.l.b16 %v2795
    %v2860 = vunpack.c.l.b16 %v2796
    %v2861 = vunpack.c.l.b16 %v2797
    %v2862 = vunpack.c.l.b16 %v2798
    %v2863 = vunpack.c.l.b16 %v2799
    %v2864 = vunpack.c.l.b16 %v2800
    %v2865 = vunpack.c.l.b16 %v2801
    %v2866 = vunpack.c.l.b16 %v2802
    %v2867 = vunpack.c.l.b16 %v2803
    %v2868 = vunpack.c.l.b16 %v2804
    %v2869 = vunpack.c.l.b16 %v2805
    %v2870 = vunpack.c.l.b16 %v2806
    %v2871 = vunpack.c.l.b16 %v2807
    %v2872 = vunpack.c.l.b16 %v2808
    %v2873 = vunpack.c.l.b16 %v2809
    %v2874 = vunpack.c.l.b16 %v2810
    %v2875 = vunpack.c.l.b16 %v2811
    %v2876 = vunpack.c.l.b16 %v2812
    %v2877 = vunpack.c.l.b16 %v2813
    %v2878 = vunpack.c.l.b16 %v2814
    %v2879 = vunpack.c.l.b16 %v2815
    %v2880 = vunpack.c.l.b16 %v2816
    %v2881 = vunpack.c.l.b16 %v2817
    %v2882 = vunpack.c.l.b16 %v2818
    %v2883 = vunpack.c.l.b16 %v2819
    %v2884 = vunpack.c.l.b16 %v2820
    %v2885 = vunpack.c.l.b16 %v2821
    %v2886 = vunpack.c.l.b16 %v2822
    %v2887 = vunpack.c.l.b16 %v2823
    %v2888 = vpack.c.b16 %v2857, %v2856
    %v2889 = vpack.c.b16 %v2859, %v2858
    %v2890 = vpack.c.b16 %v2861, %v2860
    %v2891 = vpack.c.b16 %v2863, %v2862
    %v2892 = vpack.c.b16 %v2865, %v2864
    %v2893 = vpack.c.b16 %v2867, %v2866
    %v2894 = vpack.c.b16 %v2869, %v2868
    %v2895 = vpack.c.b16 %v2871, %v2870
    %v2896 = vpack.c.b16 %v2873, %v2872
    %v2897 = vpack.c.b16 %v2875, %v2874
    %v2898 = vpack.c.b16 %v2877, %v2876
    %v2899 = vpack.c.b16 %v2879, %v2878
    %v2900 = vpack.c.b16 %v2881, %v2880
    %v2901 = vpack.c.b16 %v2883, %v2882
    %v2902 = vpack.c.b16 %v2885, %v2884
    %v2903 = vpack.c.b16 %v2887, %v2886
    %2920 = vmatprep.subr.bf16.mxu0 0
    %2921 = vmatpush1.bf16.msra.mxu0 %v2895
    %2922 = vmatprep.subr.bf16.mxu0 0
    %2923 = vmatpush1.bf16.msra.mxu0 %v2894
    %2924 = vmatprep.subr.bf16.mxu0 0
    %2925 = vmatpush1.bf16.msra.mxu0 %v2893
    %2926 = vmatprep.subr.bf16.mxu0 0
    %2927 = vmatpush1.bf16.msra.mxu0 %v2892
    %2928 = vmatprep.subr.bf16.mxu0 0
    %2929 = vmatpush1.bf16.msra.mxu0 %v2891
    %2930 = vmatprep.subr.bf16.mxu0 0
    %2931 = vmatpush1.bf16.msra.mxu0 %v2890
    %2932 = vmatprep.subr.bf16.mxu0 0
    %2933 = vmatpush1.bf16.msra.mxu0 %v2889
    %2934 = vmatprep.subr.bf16.mxu0 0
    %2935 = vmatpush1.bf16.msra.mxu0 %v2888
    %2936 = vmatprep.subr.bf16.mxu0 0
    %2937 = vmatpush2.bf16.msra.mxu0 %v2903
    %2938 = vmatprep.subr.bf16.mxu0 0
    %2939 = vmatpush2.bf16.msra.mxu0 %v2902
    %2940 = vmatprep.subr.bf16.mxu0 0
    %2941 = vmatpush2.bf16.msra.mxu0 %v2901
    %2942 = vmatprep.subr.bf16.mxu0 0
    %2943 = vmatpush2.bf16.msra.mxu0 %v2900
    %2944 = vmatprep.subr.bf16.mxu0 0
    %2945 = vmatpush2.bf16.msra.mxu0 %v2899
    %2946 = vmatprep.subr.bf16.mxu0 0
    %2947 = vmatpush2.bf16.msra.mxu0 %v2898
    %2948 = vmatprep.subr.bf16.mxu0 0
    %2949 = vmatpush2.bf16.msra.mxu0 %v2897
    %2950 = vmatprep.subr.bf16.mxu0 0
    %2951 = vmatpush2.bf16.msra.mxu0 %v2896
    %2952 = vmatprep.mubr.bf16.mxu0 %v2785
    %2953 = vmatmul.mubr.bf16.gmra.mxu0 %v2787
    %v2954 = vpop.f32.mrf.mxu0
    %v2955 = vadd.f32 0.0, %v2954
    %v2956 = vpop.f32.mrf.mxu0
    %v2957 = vpop.f32.mrf.mxu0
    %v2958 = vadd.f32 0.0, %v2957
    %v2959 = vpop.f32.mrf.mxu0
    %2960 = vmatprep.mubr.bf16.mxu0 %v2786
    %2961 = vmatmul.mubr.bf16.gmra.mxu0 %v2788
    %v2962 = vpop.f32.mrf.mxu0
    %v2963 = vadd.f32 0.0, %v2962
    %v2964 = vpop.f32.mrf.mxu0
    %v2965 = vpop.f32.mrf.mxu0
    %v2966 = vadd.f32 0.0, %v2965
    %v2967 = vpop.f32.mrf.mxu0
    %2968 = vdwg.mxu0
    %s2969 = scalar_lea.vmem [#allocation7], 896
    %v2970 = vld [vmem:[%s2969] sm:$0xf]
    %v2971 = vld [vmem:[%s2969 + $0x4] sm:$0xf]
    %v2972 = vld [vmem:[%s2969 + $0x8] sm:$0xf]
    %v2973 = vld [vmem:[%s2969 + $0xc] sm:$0xf]
    %v2974 = vld [vmem:[%s2969 + $0x10] sm:$0xf]
    %v2975 = vld [vmem:[%s2969 + $0x14] sm:$0xf]
    %v2976 = vld [vmem:[%s2969 + $0x18] sm:$0xf]
    %v2977 = vld [vmem:[%s2969 + $0x1c] sm:$0xf]
    %v2978 = vld [vmem:[%s2969 + $0x20] sm:$0xf]
    %v2979 = vld [vmem:[%s2969 + $0x24] sm:$0xf]
    %v2980 = vld [vmem:[%s2969 + $0x28] sm:$0xf]
    %v2981 = vld [vmem:[%s2969 + $0x2c] sm:$0xf]
    %v2982 = vld [vmem:[%s2969 + $0x30] sm:$0xf]
    %v2983 = vld [vmem:[%s2969 + $0x34] sm:$0xf]
    %v2984 = vld [vmem:[%s2969 + $0x38] sm:$0xf]
    %v2985 = vld [vmem:[%s2969 + $0x3c] sm:$0xf]
    %v2986 = vld [vmem:[%s2969 + $0x40] sm:$0xf]
    %v2987 = vld [vmem:[%s2969 + $0x44] sm:$0xf]
    %v2988 = vld [vmem:[%s2969 + $0x48] sm:$0xf]
    %v2989 = vld [vmem:[%s2969 + $0x4c] sm:$0xf]
    %v2990 = vld [vmem:[%s2969 + $0x50] sm:$0xf]
    %v2991 = vld [vmem:[%s2969 + $0x54] sm:$0xf]
    %v2992 = vld [vmem:[%s2969 + $0x58] sm:$0xf]
    %v2993 = vld [vmem:[%s2969 + $0x5c] sm:$0xf]
    %v2994 = vld [vmem:[%s2969 + $0x60] sm:$0xf]
    %v2995 = vld [vmem:[%s2969 + $0x64] sm:$0xf]
    %v2996 = vld [vmem:[%s2969 + $0x68] sm:$0xf]
    %v2997 = vld [vmem:[%s2969 + $0x6c] sm:$0xf]
    %v2998 = vld [vmem:[%s2969 + $0x70] sm:$0xf]
    %v2999 = vld [vmem:[%s2969 + $0x74] sm:$0xf]
    %v3000 = vld [vmem:[%s2969 + $0x78] sm:$0xf]
    %v3001 = vld [vmem:[%s2969 + $0x7c] sm:$0xf]
    %v3034 = vunpack.c.l.b16 %v2970
    %v3035 = vunpack.c.l.b16 %v2971
    %v3036 = vunpack.c.l.b16 %v2972
    %v3037 = vunpack.c.l.b16 %v2973
    %v3038 = vunpack.c.l.b16 %v2974
    %v3039 = vunpack.c.l.b16 %v2975
    %v3040 = vunpack.c.l.b16 %v2976
    %v3041 = vunpack.c.l.b16 %v2977
    %v3042 = vunpack.c.l.b16 %v2978
    %v3043 = vunpack.c.l.b16 %v2979
    %v3044 = vunpack.c.l.b16 %v2980
    %v3045 = vunpack.c.l.b16 %v2981
    %v3046 = vunpack.c.l.b16 %v2982
    %v3047 = vunpack.c.l.b16 %v2983
    %v3048 = vunpack.c.l.b16 %v2984
    %v3049 = vunpack.c.l.b16 %v2985
    %v3050 = vunpack.c.l.b16 %v2986
    %v3051 = vunpack.c.l.b16 %v2987
    %v3052 = vunpack.c.l.b16 %v2988
    %v3053 = vunpack.c.l.b16 %v2989
    %v3054 = vunpack.c.l.b16 %v2990
    %v3055 = vunpack.c.l.b16 %v2991
    %v3056 = vunpack.c.l.b16 %v2992
    %v3057 = vunpack.c.l.b16 %v2993
    %v3058 = vunpack.c.l.b16 %v2994
    %v3059 = vunpack.c.l.b16 %v2995
    %v3060 = vunpack.c.l.b16 %v2996
    %v3061 = vunpack.c.l.b16 %v2997
    %v3062 = vunpack.c.l.b16 %v2998
    %v3063 = vunpack.c.l.b16 %v2999
    %v3064 = vunpack.c.l.b16 %v3000
    %v3065 = vunpack.c.l.b16 %v3001
    %v3066 = vpack.c.b16 %v3035, %v3034
    %v3067 = vpack.c.b16 %v3037, %v3036
    %v3068 = vpack.c.b16 %v3039, %v3038
    %v3069 = vpack.c.b16 %v3041, %v3040
    %v3070 = vpack.c.b16 %v3043, %v3042
    %v3071 = vpack.c.b16 %v3045, %v3044
    %v3072 = vpack.c.b16 %v3047, %v3046
    %v3073 = vpack.c.b16 %v3049, %v3048
    %v3074 = vpack.c.b16 %v3051, %v3050
    %v3075 = vpack.c.b16 %v3053, %v3052
    %v3076 = vpack.c.b16 %v3055, %v3054
    %v3077 = vpack.c.b16 %v3057, %v3056
    %v3078 = vpack.c.b16 %v3059, %v3058
    %v3079 = vpack.c.b16 %v3061, %v3060
    %v3080 = vpack.c.b16 %v3063, %v3062
    %v3081 = vpack.c.b16 %v3065, %v3064
    %3098 = vmatprep.subr.bf16.mxu0 0
    %3099 = vmatpush1.bf16.msra.mxu0 %v3073
    %3100 = vmatprep.subr.bf16.mxu0 0
    %3101 = vmatpush1.bf16.msra.mxu0 %v3072
    %3102 = vmatprep.subr.bf16.mxu0 0
    %3103 = vmatpush1.bf16.msra.mxu0 %v3071
    %3104 = vmatprep.subr.bf16.mxu0 0
    %3105 = vmatpush1.bf16.msra.mxu0 %v3070
    %3106 = vmatprep.subr.bf16.mxu0 0
    %3107 = vmatpush1.bf16.msra.mxu0 %v3069
    %3108 = vmatprep.subr.bf16.mxu0 0
    %3109 = vmatpush1.bf16.msra.mxu0 %v3068
    %3110 = vmatprep.subr.bf16.mxu0 0
    %3111 = vmatpush1.bf16.msra.mxu0 %v3067
    %3112 = vmatprep.subr.bf16.mxu0 0
    %3113 = vmatpush1.bf16.msra.mxu0 %v3066
    %3114 = vmatprep.subr.bf16.mxu0 0
    %3115 = vmatpush2.bf16.msra.mxu0 %v3081
    %3116 = vmatprep.subr.bf16.mxu0 0
    %3117 = vmatpush2.bf16.msra.mxu0 %v3080
    %3118 = vmatprep.subr.bf16.mxu0 0
    %3119 = vmatpush2.bf16.msra.mxu0 %v3079
    %3120 = vmatprep.subr.bf16.mxu0 0
    %3121 = vmatpush2.bf16.msra.mxu0 %v3078
    %3122 = vmatprep.subr.bf16.mxu0 0
    %3123 = vmatpush2.bf16.msra.mxu0 %v3077
    %3124 = vmatprep.subr.bf16.mxu0 0
    %3125 = vmatpush2.bf16.msra.mxu0 %v3076
    %3126 = vmatprep.subr.bf16.mxu0 0
    %3127 = vmatpush2.bf16.msra.mxu0 %v3075
    %3128 = vmatprep.subr.bf16.mxu0 0
    %3129 = vmatpush2.bf16.msra.mxu0 %v3074
    %3130 = vmatprep.mubr.bf16.mxu0 %v2789
    %3131 = vmatmul.mubr.bf16.gmra.mxu0 %v2785
    %v3132 = vpop.f32.mrf.mxu0
    %v3133 = vadd.f32 0.0, %v3132
    %v3134 = vpop.f32.mrf.mxu0
    %v3135 = vpop.f32.mrf.mxu0
    %v3136 = vadd.f32 0.0, %v3135
    %v3137 = vpop.f32.mrf.mxu0
    %3138 = vmatprep.mubr.bf16.mxu0 %v2790
    %3139 = vmatmul.mubr.bf16.gmra.mxu0 %v2786
    %v3140 = vpop.f32.mrf.mxu0
    %v3141 = vadd.f32 0.0, %v3140
    %v3142 = vpop.f32.mrf.mxu0
    %v3143 = vpop.f32.mrf.mxu0
    %v3144 = vadd.f32 0.0, %v3143
    %v3145 = vpop.f32.mrf.mxu0
    %3146 = vdwg.mxu0
    %v3151 = vcombine.high %v2955, %v2955
    %v3153 = vunpack.c.l.s4 1966171168
    %v3154 = vunpack.c.0.s8 %v3153
    %v3155 = vlaneseq
    %v3156 = vshrl.u32 %v3155, 7
    %v3157 = vsub.s32 %v3154, %v3156
    %v3158 = vrot.slane %v2955, %v3157
    %v3160 = vunpack.c.l.s4 1966171168
    %v3161 = vunpack.c.0.s8 %v3160
    %v3162 = vlaneseq
    %v3163 = vshrl.u32 %v3162, 7
    %v3164 = vsub.s32 %v3161, %v3163
    %v3165 = vrot.slane %v3151, %v3164
    %v3166 = vcombine.high %v3158, %v3158
    %v3167 = vcombine.high %v3165, %v3165
    %v3169 = vunpack.c.l.s4 1966171168
    %v3170 = vunpack.c.0.s8 %v3169
    %v3171 = vlaneseq
    %v3172 = vshrl.u32 %v3171, 7
    %v3173 = vsub.s32 %v3170, %v3172
    %v3174 = vrot.slane %v3158, %v3173
    %v3176 = vunpack.c.l.s4 1966171168
    %v3177 = vunpack.c.0.s8 %v3176
    %v3178 = vlaneseq
    %v3179 = vshrl.u32 %v3178, 7
    %v3180 = vsub.s32 %v3177, %v3179
    %v3181 = vrot.slane %v3165, %v3180
    %v3183 = vunpack.c.l.s4 1966171168
    %v3184 = vunpack.c.0.s8 %v3183
    %v3185 = vlaneseq
    %v3186 = vshrl.u32 %v3185, 7
    %v3187 = vsub.s32 %v3184, %v3186
    %v3188 = vrot.slane %v3166, %v3187
    %v3190 = vunpack.c.l.s4 1966171168
    %v3191 = vunpack.c.0.s8 %v3190
    %v3192 = vlaneseq
    %v3193 = vshrl.u32 %v3192, 7
    %v3194 = vsub.s32 %v3191, %v3193
    %v3195 = vrot.slane %v3167, %v3194
    %v3196 = vcombine.high %v3174, %v3174
    %v3197 = vcombine.high %v3181, %v3181
    %v3198 = vcombine.high %v3188, %v3188
    %v3199 = vcombine.high %v3195, %v3195
    %v3200 = vcombine.high %v2958, %v2958
    %v3202 = vunpack.c.l.s4 1966171168
    %v3203 = vunpack.c.0.s8 %v3202
    %v3204 = vlaneseq
    %v3205 = vshrl.u32 %v3204, 7
    %v3206 = vsub.s32 %v3203, %v3205
    %v3207 = vrot.slane %v2958, %v3206
    %v3209 = vunpack.c.l.s4 1966171168
    %v3210 = vunpack.c.0.s8 %v3209
    %v3211 = vlaneseq
    %v3212 = vshrl.u32 %v3211, 7
    %v3213 = vsub.s32 %v3210, %v3212
    %v3214 = vrot.slane %v3200, %v3213
    %v3215 = vcombine.high %v3207, %v3207
    %v3216 = vcombine.high %v3214, %v3214
    %v3218 = vunpack.c.l.s4 1966171168
    %v3219 = vunpack.c.0.s8 %v3218
    %v3220 = vlaneseq
    %v3221 = vshrl.u32 %v3220, 7
    %v3222 = vsub.s32 %v3219, %v3221
    %v3223 = vrot.slane %v3207, %v3222
    %v3225 = vunpack.c.l.s4 1966171168
    %v3226 = vunpack.c.0.s8 %v3225
    %v3227 = vlaneseq
    %v3228 = vshrl.u32 %v3227, 7
    %v3229 = vsub.s32 %v3226, %v3228
    %v3230 = vrot.slane %v3214, %v3229
    %v3232 = vunpack.c.l.s4 1966171168
    %v3233 = vunpack.c.0.s8 %v3232
    %v3234 = vlaneseq
    %v3235 = vshrl.u32 %v3234, 7
    %v3236 = vsub.s32 %v3233, %v3235
    %v3237 = vrot.slane %v3215, %v3236
    %v3239 = vunpack.c.l.s4 1966171168
    %v3240 = vunpack.c.0.s8 %v3239
    %v3241 = vlaneseq
    %v3242 = vshrl.u32 %v3241, 7
    %v3243 = vsub.s32 %v3240, %v3242
    %v3244 = vrot.slane %v3216, %v3243
    %v3245 = vcombine.high %v3223, %v3223
    %v3246 = vcombine.high %v3230, %v3230
    %v3247 = vcombine.high %v3237, %v3237
    %v3248 = vcombine.high %v3244, %v3244
    %v3249 = vcombine.high %v2963, %v2963
    %v3251 = vunpack.c.l.s4 1966171168
    %v3252 = vunpack.c.0.s8 %v3251
    %v3253 = vlaneseq
    %v3254 = vshrl.u32 %v3253, 7
    %v3255 = vsub.s32 %v3252, %v3254
    %v3256 = vrot.slane %v2963, %v3255
    %v3258 = vunpack.c.l.s4 1966171168
    %v3259 = vunpack.c.0.s8 %v3258
    %v3260 = vlaneseq
    %v3261 = vshrl.u32 %v3260, 7
    %v3262 = vsub.s32 %v3259, %v3261
    %v3263 = vrot.slane %v3249, %v3262
    %v3264 = vcombine.high %v3256, %v3256
    %v3265 = vcombine.high %v3263, %v3263
    %v3267 = vunpack.c.l.s4 1966171168
    %v3268 = vunpack.c.0.s8 %v3267
    %v3269 = vlaneseq
    %v3270 = vshrl.u32 %v3269, 7
    %v3271 = vsub.s32 %v3268, %v3270
    %v3272 = vrot.slane %v3256, %v3271
    %v3274 = vunpack.c.l.s4 1966171168
    %v3275 = vunpack.c.0.s8 %v3274
    %v3276 = vlaneseq
    %v3277 = vshrl.u32 %v3276, 7
    %v3278 = vsub.s32 %v3275, %v3277
    %v3279 = vrot.slane %v3263, %v3278
    %v3281 = vunpack.c.l.s4 1966171168
    %v3282 = vunpack.c.0.s8 %v3281
    %v3283 = vlaneseq
    %v3284 = vshrl.u32 %v3283, 7
    %v3285 = vsub.s32 %v3282, %v3284
    %v3286 = vrot.slane %v3264, %v3285
    %v3288 = vunpack.c.l.s4 1966171168
    %v3289 = vunpack.c.0.s8 %v3288
    %v3290 = vlaneseq
    %v3291 = vshrl.u32 %v3290, 7
    %v3292 = vsub.s32 %v3289, %v3291
    %v3293 = vrot.slane %v3265, %v3292
    %v3294 = vcombine.high %v3272, %v3272
    %v3295 = vcombine.high %v3279, %v3279
    %v3296 = vcombine.high %v3286, %v3286
    %v3297 = vcombine.high %v3293, %v3293
    %v3298 = vcombine.high %v2966, %v2966
    %v3300 = vunpack.c.l.s4 1966171168
    %v3301 = vunpack.c.0.s8 %v3300
    %v3302 = vlaneseq
    %v3303 = vshrl.u32 %v3302, 7
    %v3304 = vsub.s32 %v3301, %v3303
    %v3305 = vrot.slane %v2966, %v3304
    %v3307 = vunpack.c.l.s4 1966171168
    %v3308 = vunpack.c.0.s8 %v3307
    %v3309 = vlaneseq
    %v3310 = vshrl.u32 %v3309, 7
    %v3311 = vsub.s32 %v3308, %v3310
    %v3312 = vrot.slane %v3298, %v3311
    %v3313 = vcombine.high %v3305, %v3305
    %v3314 = vcombine.high %v3312, %v3312
    %v3316 = vunpack.c.l.s4 1966171168
    %v3317 = vunpack.c.0.s8 %v3316
    %v3318 = vlaneseq
    %v3319 = vshrl.u32 %v3318, 7
    %v3320 = vsub.s32 %v3317, %v3319
    %v3321 = vrot.slane %v3305, %v3320
    %v3323 = vunpack.c.l.s4 1966171168
    %v3324 = vunpack.c.0.s8 %v3323
    %v3325 = vlaneseq
    %v3326 = vshrl.u32 %v3325, 7
    %v3327 = vsub.s32 %v3324, %v3326
    %v3328 = vrot.slane %v3312, %v3327
    %v3330 = vunpack.c.l.s4 1966171168
    %v3331 = vunpack.c.0.s8 %v3330
    %v3332 = vlaneseq
    %v3333 = vshrl.u32 %v3332, 7
    %v3334 = vsub.s32 %v3331, %v3333
    %v3335 = vrot.slane %v3313, %v3334
    %v3337 = vunpack.c.l.s4 1966171168
    %v3338 = vunpack.c.0.s8 %v3337
    %v3339 = vlaneseq
    %v3340 = vshrl.u32 %v3339, 7
    %v3341 = vsub.s32 %v3338, %v3340
    %v3342 = vrot.slane %v3314, %v3341
    %v3343 = vcombine.high %v3321, %v3321
    %v3344 = vcombine.high %v3328, %v3328
    %v3345 = vcombine.high %v3335, %v3335
    %v3346 = vcombine.high %v3342, %v3342
    %v3383 = vcombine.high %v3133, %v3133
    %v3385 = vunpack.c.l.s4 1966171168
    %v3386 = vunpack.c.0.s8 %v3385
    %v3387 = vlaneseq
    %v3388 = vshrl.u32 %v3387, 7
    %v3389 = vsub.s32 %v3386, %v3388
    %v3390 = vrot.slane %v3133, %v3389
    %v3392 = vunpack.c.l.s4 1966171168
    %v3393 = vunpack.c.0.s8 %v3392
    %v3394 = vlaneseq
    %v3395 = vshrl.u32 %v3394, 7
    %v3396 = vsub.s32 %v3393, %v3395
    %v3397 = vrot.slane %v3383, %v3396
    %v3398 = vcombine.high %v3390, %v3390
    %v3399 = vcombine.high %v3397, %v3397
    %v3401 = vunpack.c.l.s4 1966171168
    %v3402 = vunpack.c.0.s8 %v3401
    %v3403 = vlaneseq
    %v3404 = vshrl.u32 %v3403, 7
    %v3405 = vsub.s32 %v3402, %v3404
    %v3406 = vrot.slane %v3390, %v3405
    %v3408 = vunpack.c.l.s4 1966171168
    %v3409 = vunpack.c.0.s8 %v3408
    %v3410 = vlaneseq
    %v3411 = vshrl.u32 %v3410, 7
    %v3412 = vsub.s32 %v3409, %v3411
    %v3413 = vrot.slane %v3397, %v3412
    %v3415 = vunpack.c.l.s4 1966171168
    %v3416 = vunpack.c.0.s8 %v3415
    %v3417 = vlaneseq
    %v3418 = vshrl.u32 %v3417, 7
    %v3419 = vsub.s32 %v3416, %v3418
    %v3420 = vrot.slane %v3398, %v3419
    %v3422 = vunpack.c.l.s4 1966171168
    %v3423 = vunpack.c.0.s8 %v3422
    %v3424 = vlaneseq
    %v3425 = vshrl.u32 %v3424, 7
    %v3426 = vsub.s32 %v3423, %v3425
    %v3427 = vrot.slane %v3399, %v3426
    %v3428 = vcombine.high %v3406, %v3406
    %v3429 = vcombine.high %v3413, %v3413
    %v3430 = vcombine.high %v3420, %v3420
    %v3431 = vcombine.high %v3427, %v3427
    %v3432 = vcombine.high %v3136, %v3136
    %v3434 = vunpack.c.l.s4 1966171168
    %v3435 = vunpack.c.0.s8 %v3434
    %v3436 = vlaneseq
    %v3437 = vshrl.u32 %v3436, 7
    %v3438 = vsub.s32 %v3435, %v3437
    %v3439 = vrot.slane %v3136, %v3438
    %v3441 = vunpack.c.l.s4 1966171168
    %v3442 = vunpack.c.0.s8 %v3441
    %v3443 = vlaneseq
    %v3444 = vshrl.u32 %v3443, 7
    %v3445 = vsub.s32 %v3442, %v3444
    %v3446 = vrot.slane %v3432, %v3445
    %v3447 = vcombine.high %v3439, %v3439
    %v3448 = vcombine.high %v3446, %v3446
    %v3450 = vunpack.c.l.s4 1966171168
    %v3451 = vunpack.c.0.s8 %v3450
    %v3452 = vlaneseq
    %v3453 = vshrl.u32 %v3452, 7
    %v3454 = vsub.s32 %v3451, %v3453
    %v3455 = vrot.slane %v3439, %v3454
    %v3457 = vunpack.c.l.s4 1966171168
    %v3458 = vunpack.c.0.s8 %v3457
    %v3459 = vlaneseq
    %v3460 = vshrl.u32 %v3459, 7
    %v3461 = vsub.s32 %v3458, %v3460
    %v3462 = vrot.slane %v3446, %v3461
    %v3464 = vunpack.c.l.s4 1966171168
    %v3465 = vunpack.c.0.s8 %v3464
    %v3466 = vlaneseq
    %v3467 = vshrl.u32 %v3466, 7
    %v3468 = vsub.s32 %v3465, %v3467
    %v3469 = vrot.slane %v3447, %v3468
    %v3471 = vunpack.c.l.s4 1966171168
    %v3472 = vunpack.c.0.s8 %v3471
    %v3473 = vlaneseq
    %v3474 = vshrl.u32 %v3473, 7
    %v3475 = vsub.s32 %v3472, %v3474
    %v3476 = vrot.slane %v3448, %v3475
    %v3477 = vcombine.high %v3455, %v3455
    %v3478 = vcombine.high %v3462, %v3462
    %v3479 = vcombine.high %v3469, %v3469
    %v3480 = vcombine.high %v3476, %v3476
    %v3481 = vcombine.high %v3141, %v3141
    %v3483 = vunpack.c.l.s4 1966171168
    %v3484 = vunpack.c.0.s8 %v3483
    %v3485 = vlaneseq
    %v3486 = vshrl.u32 %v3485, 7
    %v3487 = vsub.s32 %v3484, %v3486
    %v3488 = vrot.slane %v3141, %v3487
    %v3490 = vunpack.c.l.s4 1966171168
    %v3491 = vunpack.c.0.s8 %v3490
    %v3492 = vlaneseq
    %v3493 = vshrl.u32 %v3492, 7
    %v3494 = vsub.s32 %v3491, %v3493
    %v3495 = vrot.slane %v3481, %v3494
    %v3496 = vcombine.high %v3488, %v3488
    %v3497 = vcombine.high %v3495, %v3495
    %v3499 = vunpack.c.l.s4 1966171168
    %v3500 = vunpack.c.0.s8 %v3499
    %v3501 = vlaneseq
    %v3502 = vshrl.u32 %v3501, 7
    %v3503 = vsub.s32 %v3500, %v3502
    %v3504 = vrot.slane %v3488, %v3503
    %v3506 = vunpack.c.l.s4 1966171168
    %v3507 = vunpack.c.0.s8 %v3506
    %v3508 = vlaneseq
    %v3509 = vshrl.u32 %v3508, 7
    %v3510 = vsub.s32 %v3507, %v3509
    %v3511 = vrot.slane %v3495, %v3510
    %v3513 = vunpack.c.l.s4 1966171168
    %v3514 = vunpack.c.0.s8 %v3513
    %v3515 = vlaneseq
    %v3516 = vshrl.u32 %v3515, 7
    %v3517 = vsub.s32 %v3514, %v3516
    %v3518 = vrot.slane %v3496, %v3517
    %v3520 = vunpack.c.l.s4 1966171168
    %v3521 = vunpack.c.0.s8 %v3520
    %v3522 = vlaneseq
    %v3523 = vshrl.u32 %v3522, 7
    %v3524 = vsub.s32 %v3521, %v3523
    %v3525 = vrot.slane %v3497, %v3524
    %v3526 = vcombine.high %v3504, %v3504
    %v3527 = vcombine.high %v3511, %v3511
    %v3528 = vcombine.high %v3518, %v3518
    %v3529 = vcombine.high %v3525, %v3525
    %v3530 = vcombine.high %v3144, %v3144
    %v3532 = vunpack.c.l.s4 1966171168
    %v3533 = vunpack.c.0.s8 %v3532
    %v3534 = vlaneseq
    %v3535 = vshrl.u32 %v3534, 7
    %v3536 = vsub.s32 %v3533, %v3535
    %v3537 = vrot.slane %v3144, %v3536
    %v3539 = vunpack.c.l.s4 1966171168
    %v3540 = vunpack.c.0.s8 %v3539
    %v3541 = vlaneseq
    %v3542 = vshrl.u32 %v3541, 7
    %v3543 = vsub.s32 %v3540, %v3542
    %v3544 = vrot.slane %v3530, %v3543
    %v3545 = vcombine.high %v3537, %v3537
    %v3546 = vcombine.high %v3544, %v3544
    %v3548 = vunpack.c.l.s4 1966171168
    %v3549 = vunpack.c.0.s8 %v3548
    %v3550 = vlaneseq
    %v3551 = vshrl.u32 %v3550, 7
    %v3552 = vsub.s32 %v3549, %v3551
    %v3553 = vrot.slane %v3537, %v3552
    %v3555 = vunpack.c.l.s4 1966171168
    %v3556 = vunpack.c.0.s8 %v3555
    %v3557 = vlaneseq
    %v3558 = vshrl.u32 %v3557, 7
    %v3559 = vsub.s32 %v3556, %v3558
    %v3560 = vrot.slane %v3544, %v3559
    %v3562 = vunpack.c.l.s4 1966171168
    %v3563 = vunpack.c.0.s8 %v3562
    %v3564 = vlaneseq
    %v3565 = vshrl.u32 %v3564, 7
    %v3566 = vsub.s32 %v3563, %v3565
    %v3567 = vrot.slane %v3545, %v3566
    %v3569 = vunpack.c.l.s4 1966171168
    %v3570 = vunpack.c.0.s8 %v3569
    %v3571 = vlaneseq
    %v3572 = vshrl.u32 %v3571, 7
    %v3573 = vsub.s32 %v3570, %v3572
    %v3574 = vrot.slane %v3546, %v3573
    %v3575 = vcombine.high %v3553, %v3553
    %v3576 = vcombine.high %v3560, %v3560
    %v3577 = vcombine.high %v3567, %v3567
    %v3578 = vcombine.high %v3574, %v3574
    %v3579 = vlaneseq
    %v3580 = vshrl.u32 %v3579, 7
    %v3581 = vsub.s32 0, %v3580
    %v3582 = vrot.slane %v3406, %v3581
    %v3583 = vlaneseq
    %v3584 = vshrl.u32 %v3583, 7
    %v3585 = vsub.s32 0, %v3584
    %v3586 = vrot.slane %v3420, %v3585
    %v3587 = vlaneseq
    %v3588 = vshrl.u32 %v3587, 7
    %v3589 = vsub.s32 0, %v3588
    %v3590 = vrot.slane %v3428, %v3589
    %v3591 = vlaneseq
    %v3592 = vshrl.u32 %v3591, 7
    %v3593 = vsub.s32 0, %v3592
    %v3594 = vrot.slane %v3430, %v3593
    %v3595 = vlaneseq
    %v3596 = vshrl.u32 %v3595, 7
    %v3597 = vsub.s32 0, %v3596
    %v3598 = vrot.slane %v3413, %v3597
    %v3599 = vlaneseq
    %v3600 = vshrl.u32 %v3599, 7
    %v3601 = vsub.s32 0, %v3600
    %v3602 = vrot.slane %v3427, %v3601
    %v3603 = vlaneseq
    %v3604 = vshrl.u32 %v3603, 7
    %v3605 = vsub.s32 0, %v3604
    %v3606 = vrot.slane %v3429, %v3605
    %v3607 = vlaneseq
    %v3608 = vshrl.u32 %v3607, 7
    %v3609 = vsub.s32 0, %v3608
    %v3610 = vrot.slane %v3431, %v3609
    %v3611 = vlaneseq
    %v3612 = vshrl.u32 %v3611, 7
    %v3613 = vsub.s32 0, %v3612
    %v3614 = vrot.slane %v3455, %v3613
    %v3615 = vlaneseq
    %v3616 = vshrl.u32 %v3615, 7
    %v3617 = vsub.s32 0, %v3616
    %v3618 = vrot.slane %v3469, %v3617
    %v3619 = vlaneseq
    %v3620 = vshrl.u32 %v3619, 7
    %v3621 = vsub.s32 0, %v3620
    %v3622 = vrot.slane %v3477, %v3621
    %v3623 = vlaneseq
    %v3624 = vshrl.u32 %v3623, 7
    %v3625 = vsub.s32 0, %v3624
    %v3626 = vrot.slane %v3479, %v3625
    %v3627 = vlaneseq
    %v3628 = vshrl.u32 %v3627, 7
    %v3629 = vsub.s32 0, %v3628
    %v3630 = vrot.slane %v3462, %v3629
    %v3631 = vlaneseq
    %v3632 = vshrl.u32 %v3631, 7
    %v3633 = vsub.s32 0, %v3632
    %v3634 = vrot.slane %v3476, %v3633
    %v3635 = vlaneseq
    %v3636 = vshrl.u32 %v3635, 7
    %v3637 = vsub.s32 0, %v3636
    %v3638 = vrot.slane %v3478, %v3637
    %v3639 = vlaneseq
    %v3640 = vshrl.u32 %v3639, 7
    %v3641 = vsub.s32 0, %v3640
    %v3642 = vrot.slane %v3480, %v3641
    %v3643 = vlaneseq
    %v3644 = vshrl.u32 %v3643, 7
    %v3645 = vsub.s32 0, %v3644
    %v3646 = vrot.slane %v3504, %v3645
    %v3647 = vlaneseq
    %v3648 = vshrl.u32 %v3647, 7
    %v3649 = vsub.s32 0, %v3648
    %v3650 = vrot.slane %v3518, %v3649
    %v3651 = vlaneseq
    %v3652 = vshrl.u32 %v3651, 7
    %v3653 = vsub.s32 0, %v3652
    %v3654 = vrot.slane %v3526, %v3653
    %v3655 = vlaneseq
    %v3656 = vshrl.u32 %v3655, 7
    %v3657 = vsub.s32 0, %v3656
    %v3658 = vrot.slane %v3528, %v3657
    %v3659 = vlaneseq
    %v3660 = vshrl.u32 %v3659, 7
    %v3661 = vsub.s32 0, %v3660
    %v3662 = vrot.slane %v3511, %v3661
    %v3663 = vlaneseq
    %v3664 = vshrl.u32 %v3663, 7
    %v3665 = vsub.s32 0, %v3664
    %v3666 = vrot.slane %v3525, %v3665
    %v3667 = vlaneseq
    %v3668 = vshrl.u32 %v3667, 7
    %v3669 = vsub.s32 0, %v3668
    %v3670 = vrot.slane %v3527, %v3669
    %v3671 = vlaneseq
    %v3672 = vshrl.u32 %v3671, 7
    %v3673 = vsub.s32 0, %v3672
    %v3674 = vrot.slane %v3529, %v3673
    %v3675 = vlaneseq
    %v3676 = vshrl.u32 %v3675, 7
    %v3677 = vsub.s32 0, %v3676
    %v3678 = vrot.slane %v3553, %v3677
    %v3679 = vlaneseq
    %v3680 = vshrl.u32 %v3679, 7
    %v3681 = vsub.s32 0, %v3680
    %v3682 = vrot.slane %v3567, %v3681
    %v3683 = vlaneseq
    %v3684 = vshrl.u32 %v3683, 7
    %v3685 = vsub.s32 0, %v3684
    %v3686 = vrot.slane %v3575, %v3685
    %v3687 = vlaneseq
    %v3688 = vshrl.u32 %v3687, 7
    %v3689 = vsub.s32 0, %v3688
    %v3690 = vrot.slane %v3577, %v3689
    %v3691 = vlaneseq
    %v3692 = vshrl.u32 %v3691, 7
    %v3693 = vsub.s32 0, %v3692
    %v3694 = vrot.slane %v3560, %v3693
    %v3695 = vlaneseq
    %v3696 = vshrl.u32 %v3695, 7
    %v3697 = vsub.s32 0, %v3696
    %v3698 = vrot.slane %v3574, %v3697
    %v3699 = vlaneseq
    %v3700 = vshrl.u32 %v3699, 7
    %v3701 = vsub.s32 0, %v3700
    %v3702 = vrot.slane %v3576, %v3701
    %v3703 = vlaneseq
    %v3704 = vshrl.u32 %v3703, 7
    %v3705 = vsub.s32 0, %v3704
    %v3706 = vrot.slane %v3578, %v3705
    %v3739 = vsel %vm606, %v3174, %v3582
    %v3740 = vsel %vm606, %v3188, %v3586
    %v3741 = vsel %vm606, %v3196, %v3590
    %v3742 = vsel %vm606, %v3198, %v3594
    %v3743 = vsel %vm606, %v3181, %v3598
    %v3744 = vsel %vm606, %v3195, %v3602
    %v3745 = vsel %vm606, %v3197, %v3606
    %v3746 = vsel %vm606, %v3199, %v3610
    %v3747 = vsel %vm606, %v3223, %v3614
    %v3748 = vsel %vm606, %v3237, %v3618
    %v3749 = vsel %vm606, %v3245, %v3622
    %v3750 = vsel %vm606, %v3247, %v3626
    %v3751 = vsel %vm606, %v3230, %v3630
    %v3752 = vsel %vm606, %v3244, %v3634
    %v3753 = vsel %vm606, %v3246, %v3638
    %v3754 = vsel %vm606, %v3248, %v3642
    %v3755 = vsel %vm606, %v3272, %v3646
    %v3756 = vsel %vm606, %v3286, %v3650
    %v3757 = vsel %vm606, %v3294, %v3654
    %v3758 = vsel %vm606, %v3296, %v3658
    %v3759 = vsel %vm606, %v3279, %v3662
    %v3760 = vsel %vm606, %v3293, %v3666
    %v3761 = vsel %vm606, %v3295, %v3670
    %v3762 = vsel %vm606, %v3297, %v3674
    %v3763 = vsel %vm606, %v3321, %v3678
    %v3764 = vsel %vm606, %v3335, %v3682
    %v3765 = vsel %vm606, %v3343, %v3686
    %v3766 = vsel %vm606, %v3345, %v3690
    %v3767 = vsel %vm606, %v3328, %v3694
    %v3768 = vsel %vm606, %v3342, %v3698
    %v3769 = vsel %vm606, %v3344, %v3702
    %v3770 = vsel %vm606, %v3346, %v3706
    %v3771 = vtanh.pop %v3739
    %v3772 = vtanh.pop %v3740
    %v3773 = vtanh.pop %v3741
    %v3774 = vtanh.pop %v3742
    %v3775 = vtanh.pop %v3743
    %v3776 = vtanh.pop %v3744
    %v3777 = vtanh.pop %v3745
    %v3778 = vtanh.pop %v3746
    %v3779 = vtanh.pop %v3747
    %v3780 = vtanh.pop %v3748
    %v3781 = vtanh.pop %v3749
    %v3782 = vtanh.pop %v3750
    %v3783 = vtanh.pop %v3751
    %v3784 = vtanh.pop %v3752
    %v3785 = vtanh.pop %v3753
    %v3786 = vtanh.pop %v3754
    %v3787 = vtanh.pop %v3755
    %v3788 = vtanh.pop %v3756
    %v3789 = vtanh.pop %v3757
    %v3790 = vtanh.pop %v3758
    %v3791 = vtanh.pop %v3759
    %v3792 = vtanh.pop %v3760
    %v3793 = vtanh.pop %v3761
    %v3794 = vtanh.pop %v3762
    %v3795 = vtanh.pop %v3763
    %v3796 = vtanh.pop %v3764
    %v3797 = vtanh.pop %v3765
    %v3798 = vtanh.pop %v3766
    %v3799 = vtanh.pop %v3767
    %v3800 = vtanh.pop %v3768
    %v3801 = vtanh.pop %v3769
    %v3802 = vtanh.pop %v3770
    %v3835 = vcombine.low %v3771, %v3772
    %v3836 = vcombine.low %v3773, %v3774
    %v3838 = vunpack.c.l.s4 1983009808
    %v3839 = vunpack.c.0.s8 %v3838
    %v3840 = vlaneseq
    %v3841 = vshrl.u32 %v3840, 7
    %v3842 = vsub.s32 %v3839, %v3841
    %v3843 = vrot.slane %v3835, %v3842
    %v3845 = vunpack.c.l.s4 1983009808
    %v3846 = vunpack.c.0.s8 %v3845
    %v3847 = vlaneseq
    %v3848 = vshrl.u32 %v3847, 7
    %v3849 = vsub.s32 %v3846, %v3848
    %v3850 = vrot.slane %v3836, %v3849
    %v3851 = vcombine.low %v3843, %v3850
    %v3852 = vcombine.low %v3775, %v3776
    %v3853 = vcombine.low %v3777, %v3778
    %v3855 = vunpack.c.l.s4 1983009808
    %v3856 = vunpack.c.0.s8 %v3855
    %v3857 = vlaneseq
    %v3858 = vshrl.u32 %v3857, 7
    %v3859 = vsub.s32 %v3856, %v3858
    %v3860 = vrot.slane %v3852, %v3859
    %v3862 = vunpack.c.l.s4 1983009808
    %v3863 = vunpack.c.0.s8 %v3862
    %v3864 = vlaneseq
    %v3865 = vshrl.u32 %v3864, 7
    %v3866 = vsub.s32 %v3863, %v3865
    %v3867 = vrot.slane %v3853, %v3866
    %v3868 = vcombine.low %v3860, %v3867
    %v3869 = vcombine.low %v3779, %v3780
    %v3870 = vcombine.low %v3781, %v3782
    %v3872 = vunpack.c.l.s4 1983009808
    %v3873 = vunpack.c.0.s8 %v3872
    %v3874 = vlaneseq
    %v3875 = vshrl.u32 %v3874, 7
    %v3876 = vsub.s32 %v3873, %v3875
    %v3877 = vrot.slane %v3869, %v3876
    %v3879 = vunpack.c.l.s4 1983009808
    %v3880 = vunpack.c.0.s8 %v3879
    %v3881 = vlaneseq
    %v3882 = vshrl.u32 %v3881, 7
    %v3883 = vsub.s32 %v3880, %v3882
    %v3884 = vrot.slane %v3870, %v3883
    %v3885 = vcombine.low %v3877, %v3884
    %v3886 = vcombine.low %v3783, %v3784
    %v3887 = vcombine.low %v3785, %v3786
    %v3889 = vunpack.c.l.s4 1983009808
    %v3890 = vunpack.c.0.s8 %v3889
    %v3891 = vlaneseq
    %v3892 = vshrl.u32 %v3891, 7
    %v3893 = vsub.s32 %v3890, %v3892
    %v3894 = vrot.slane %v3886, %v3893
    %v3896 = vunpack.c.l.s4 1983009808
    %v3897 = vunpack.c.0.s8 %v3896
    %v3898 = vlaneseq
    %v3899 = vshrl.u32 %v3898, 7
    %v3900 = vsub.s32 %v3897, %v3899
    %v3901 = vrot.slane %v3887, %v3900
    %v3902 = vcombine.low %v3894, %v3901
    %v3903 = vcombine.low %v3787, %v3788
    %v3904 = vcombine.low %v3789, %v3790
    %v3906 = vunpack.c.l.s4 1983009808
    %v3907 = vunpack.c.0.s8 %v3906
    %v3908 = vlaneseq
    %v3909 = vshrl.u32 %v3908, 7
    %v3910 = vsub.s32 %v3907, %v3909
    %v3911 = vrot.slane %v3903, %v3910
    %v3913 = vunpack.c.l.s4 1983009808
    %v3914 = vunpack.c.0.s8 %v3913
    %v3915 = vlaneseq
    %v3916 = vshrl.u32 %v3915, 7
    %v3917 = vsub.s32 %v3914, %v3916
    %v3918 = vrot.slane %v3904, %v3917
    %v3919 = vcombine.low %v3911, %v3918
    %v3920 = vcombine.low %v3791, %v3792
    %v3921 = vcombine.low %v3793, %v3794
    %v3923 = vunpack.c.l.s4 1983009808
    %v3924 = vunpack.c.0.s8 %v3923
    %v3925 = vlaneseq
    %v3926 = vshrl.u32 %v3925, 7
    %v3927 = vsub.s32 %v3924, %v3926
    %v3928 = vrot.slane %v3920, %v3927
    %v3930 = vunpack.c.l.s4 1983009808
    %v3931 = vunpack.c.0.s8 %v3930
    %v3932 = vlaneseq
    %v3933 = vshrl.u32 %v3932, 7
    %v3934 = vsub.s32 %v3931, %v3933
    %v3935 = vrot.slane %v3921, %v3934
    %v3936 = vcombine.low %v3928, %v3935
    %v3937 = vcombine.low %v3795, %v3796
    %v3938 = vcombine.low %v3797, %v3798
    %v3940 = vunpack.c.l.s4 1983009808
    %v3941 = vunpack.c.0.s8 %v3940
    %v3942 = vlaneseq
    %v3943 = vshrl.u32 %v3942, 7
    %v3944 = vsub.s32 %v3941, %v3943
    %v3945 = vrot.slane %v3937, %v3944
    %v3947 = vunpack.c.l.s4 1983009808
    %v3948 = vunpack.c.0.s8 %v3947
    %v3949 = vlaneseq
    %v3950 = vshrl.u32 %v3949, 7
    %v3951 = vsub.s32 %v3948, %v3950
    %v3952 = vrot.slane %v3938, %v3951
    %v3953 = vcombine.low %v3945, %v3952
    %v3954 = vcombine.low %v3799, %v3800
    %v3955 = vcombine.low %v3801, %v3802
    %v3957 = vunpack.c.l.s4 1983009808
    %v3958 = vunpack.c.0.s8 %v3957
    %v3959 = vlaneseq
    %v3960 = vshrl.u32 %v3959, 7
    %v3961 = vsub.s32 %v3958, %v3960
    %v3962 = vrot.slane %v3954, %v3961
    %v3964 = vunpack.c.l.s4 1983009808
    %v3965 = vunpack.c.0.s8 %v3964
    %v3966 = vlaneseq
    %v3967 = vshrl.u32 %v3966, 7
    %v3968 = vsub.s32 %v3965, %v3967
    %v3969 = vrot.slane %v3955, %v3968
    %v3970 = vcombine.low %v3962, %v3969
    %3979 = vst [vmem:[#allocation10] sm:$0xff] %v3851
    %3980 = vst [vmem:[#allocation10 + $0x8] sm:$0xff] %v3868
    %3981 = vst [vmem:[#allocation10 + $0x10] sm:$0xff] %v3885
    %3982 = vst [vmem:[#allocation10 + $0x18] sm:$0xff] %v3902
    %3983 = vst [vmem:[#allocation10 + $0x20] sm:$0xff] %v3919
    %3984 = vst [vmem:[#allocation10 + $0x28] sm:$0xff] %v3936
    %3985 = vst [vmem:[#allocation10 + $0x30] sm:$0xff] %v3953
    %3986 = vst [vmem:[#allocation10 + $0x38] sm:$0xff] %v3970
    // Predicated region
    $region34: #{tpu_custom_call.1} parent=1 // pred_check
      _
    $region35: #{tpu_custom_call.1} parent=1 // pred_check_branch
      %3988 = sbr.rel (0) target = $region37
    $region36: #{tpu_custom_call.1} parent=1 // pred_region
      %s3990 = ssub.s32 1024, 1024
      %3991 = vsyncadd [#allocation4], %s3990
      %s3992 = sshll.u32 [#allocation10], 4
      %s3993 = int_to_ptr.vmem [resolvable:$true] %s3992
      %3998 = dma.vmem_to_hbm [thread:$0]  %s3993, 1024, %s4, [#allocation4], 128, 128, 8
    $region37: #{tpu_custom_call.1} parent=1 // pred_fallthru
      _
    // Predicated region
    $region38: #{tpu_custom_call.1} parent=1 // pred_check
      _
    $region39: #{tpu_custom_call.1} parent=1 // pred_check_branch
      %4000 = sbr.rel (0) target = $region41
    $region40: #{tpu_custom_call.1} parent=1 // pred_region
      %4001 = dma.done [#allocation4], 1024
    $region41: #{tpu_custom_call.1} parent=1 // pred_fallthru
      _
    %4002 = vsyncpa [#allocation3], 1
    %4003 = vsyncpa [#allocation6], 1
    %4004 = vsyncpa [#allocation9], 1
    %4005 = vsyncpa [#allocation4], 1

</llo_original>
